<compile_context>
chip_gen: v6e
topology: v6e:2x2x1
jax: 0.10.0
libtpu: 0.0.40
codegen_flags: <defaults>
</compile_context>

<pallas_src>
import jax
import jax.numpy as jnp
import numpy as np
from jax.experimental import pallas as pl
from jax.experimental.pallas import tpu as pltpu

V = 778                              # MANO vertex count
VPAD = 896                           # 778 padded up to a multiple of 128
JPAD = 128                           # 21 regressor columns padded to a full lane tile
NUM_BETAS = 10
NUM_POSE = 15                        # articulated joints (excl. root)
NUM_JOINTS = 16                      # root + 15
NUM_REG = 21                         # J_regressor cols (16 joints + 5 fingertips)
POSE_FEAT = NUM_POSE * 9             # 135
BLEND_DIM = NUM_BETAS + POSE_FEAT    # 145
BLEND_IN = BLEND_DIM + 1             # 146: [beta | pose_feature | 1] (1 folds v_template)
PARENTS = (0, 0, 1, 2, 0, 4, 5, 0, 7, 8, 0, 10, 11, 0, 13, 14)
TB_CAP = 128                         # batch-block cap (raise toward 256 on v6e/v7x for huge B)


def _round_up(x, m):
    return ((x + m - 1) // m) * m


# ---------------------------------------------------------------------------
# Fused Pallas kernel: blendshapes -> skinning -> joint regression
# ---------------------------------------------------------------------------

def _fused_vertex_kernel(blend_ref, at_ref, dirs_ref, wT_ref, jreg_ref,
                         verts_ref, joints_ref):
    # blend_ref : (TB, 146)         [beta | pose_feature | 1] per batch row
    # at_ref    : (16*TB, 16)       k-major stacked A_flat^T: row k*TB+b = A_t[b, k, :]
    # dirs_ref  : (146, 3*VPAD)     [shapedirs ; posedirs ; v_template], component-wide
    # wT_ref    : (16, VPAD)        skinning weights^T, zero-padded
    # jreg_ref  : (VPAD, 128)       joint regressor, zero-padded rows/cols
    # verts_ref : (3, TB, VPAD)     skinned vertices, component-major
    # joints_ref: (3, TB, 128)      regressed joints, component-major (cols 21.. are 0)
    tb = blend_ref.shape[0]

    # One wide MXU contraction for shape+pose blendshapes (+ v_template fold):
    # (TB,146) @ (146, 2688) -> (TB, 2688); xyz slabs are free 128-aligned slices.
    vposed = jnp.dot(blend_ref[...], dirs_ref[...],
                     preferred_element_type=jnp.float32)
    vx = vposed[:, 0 * VPAD:1 * VPAD]                       # (TB, VPAD)
    vy = vposed[:, 1 * VPAD:2 * VPAD]
    vz = vposed[:, 2 * VPAD:3 * VPAD]

    # All per-batch bone transforms in ONE stacked matmul:
    # (16*TB, 16) @ (16, VPAD) -> (16*TB, VPAD); row k*TB+b is T^T[b, k, :].
    tT = jnp.dot(at_ref[...], wT_ref[...], preferred_element_type=jnp.float32)

    def trow(k):                                            # (TB, VPAD) static slice
        return tT[k * tb:(k + 1) * tb, :]

    # LBS on the VPU; the homogeneous '1' is handled by adding the k%4==3 rows.
    vx_o = trow(0) * vx + trow(1) * vy + trow(2) * vz + trow(3)
    vy_o = trow(4) * vx + trow(5) * vy + trow(6) * vz + trow(7)
    vz_o = trow(8) * vx + trow(9) * vy + trow(10) * vz + trow(11)

    # Direct full-slab stores (no sublane concatenation / relayout).
    verts_ref[0, :, :] = vx_o
    verts_ref[1, :, :] = vy_o
    verts_ref[2, :, :] = vz_o

    # Posed-joint regression on 128-padded lanes -> unmasked stores.
    jreg = jreg_ref[...]
    joints_ref[0, :, :] = jnp.dot(vx_o, jreg, preferred_element_type=jnp.float32)
    joints_ref[1, :, :] = jnp.dot(vy_o, jreg, preferred_element_type=jnp.float32)
    joints_ref[2, :, :] = jnp.dot(vz_o, jreg, preferred_element_type=jnp.float32)


def fused_vertex_pass(blend_in, at_stacked, consts, tb):
    bpad = blend_in.shape[0]
    nblocks = bpad // tb
    return pl.pallas_call(
        _fused_vertex_kernel,
        out_shape=(jax.ShapeDtypeStruct((3, bpad, VPAD), jnp.float32),
                   jax.ShapeDtypeStruct((3, bpad, JPAD), jnp.float32)),
        grid=(nblocks,),
        in_specs=[
            pl.BlockSpec((tb, BLEND_IN), lambda b: (b, 0)),
            pl.BlockSpec((NUM_JOINTS * tb, NUM_JOINTS), lambda b: (b, 0)),
            pl.BlockSpec((BLEND_IN, 3 * VPAD), lambda b: (0, 0)),
            pl.BlockSpec((NUM_JOINTS, VPAD), lambda b: (0, 0)),
            pl.BlockSpec((VPAD, JPAD), lambda b: (0, 0)),
        ],
        out_specs=(pl.BlockSpec((3, tb, VPAD), lambda b: (0, b, 0)),
                   pl.BlockSpec((3, tb, JPAD), lambda b: (0, b, 0))),
        compiler_params=pltpu.CompilerParams(
            dimension_semantics=("parallel",)),   # batch blocks across TCs on v7x
    )(blend_in, at_stacked, consts["dirs_wide"], consts["wT"], consts["jreg_pad"])


# ---------------------------------------------------------------------------
# Offline constant preparation (done once, outside the jitted forward)
# ---------------------------------------------------------------------------

def precompute_constants(params):
    shapedirs = params["shapedirs"]                                   # (10, V*3)
    posedirs = params["posedirs"]                                     # (135, V*3)
    dirs = jnp.concatenate([shapedirs, posedirs], axis=0)             # (145, V*3)
    # columns are (v, xyz)-interleaved (col = 3*v + c); go component-wide + pad.
    dirs3 = jnp.transpose(dirs.reshape(BLEND_DIM, V, 3), (0, 2, 1))   # (145, 3, V)
    dirs3 = jnp.pad(dirs3, ((0, 0), (0, 0), (0, VPAD - V)))           # (145, 3, VPAD)
    vt3 = jnp.pad(params["v_template"].T, ((0, 0), (0, VPAD - V)))[None]  # (1, 3, VPAD)
    dirs_wide = jnp.concatenate([dirs3, vt3], axis=0).reshape(BLEND_IN, 3 * VPAD)

    wT = jnp.pad(params["weights"].T, ((0, 0), (0, VPAD - V)))        # (16, VPAD)
    jreg_pad = jnp.pad(params["J_regressor"],
                       ((0, VPAD - V), (0, JPAD - NUM_REG)))          # (VPAD, 128)

    # Fold J_regressor into v_template / shapedirs so rest-pose joints come
    # straight from beta (removes a whole pass and v_shaped entirely).
    jreg16 = params["J_regressor"][:, :NUM_JOINTS]                    # (V, 16)
    j_template = jreg16.T @ params["v_template"]                      # (16, 3)
    j_dirs = jnp.einsum("vj,kvc->kjc", jreg16,
                        shapedirs.reshape(NUM_BETAS, V, 3))           # (10, 16, 3)
    return {
        "dirs_wide": dirs_wide,
        "wT": wT,
        "jreg_pad": jreg_pad,
        "j_template": j_template,
        "j_dirs": j_dirs.reshape(NUM_BETAS, NUM_JOINTS * 3),
    }


# ---------------------------------------------------------------------------
# Plain-JAX glue (tiny per-joint math, sequential kinematic chain)
# ---------------------------------------------------------------------------

def quat2mat(quat):
    nq = quat / jnp.linalg.norm(quat, axis=1, keepdims=True)
    w, x, y, z = nq[:, 0], nq[:, 1], nq[:, 2], nq[:, 3]
    w2, x2, y2, z2 = w * w, x * x, y * y, z * z
    wx, wy, wz = w * x, w * y, w * z
    xy, xz, yz = x * y, x * z, y * z
    rot = jnp.stack([w2 + x2 - y2 - z2, 2 * xy - 2 * wz, 2 * wy + 2 * xz,
                     2 * wz + 2 * xy, w2 - x2 + y2 - z2, 2 * yz - 2 * wx,
                     2 * xz - 2 * wy, 2 * wx + 2 * yz, w2 - x2 - y2 + z2],
                    axis=1)
    return rot.reshape(-1, 3, 3)


def batch_rodrigues(theta):
    # (preserves the original module's +1e-8 quirk before the norm)
    l1norm = jnp.linalg.norm(theta + 1e-8, axis=1)
    angle = l1norm[:, None]
    normalized = theta / angle
    half = angle * 0.5
    quat = jnp.concatenate([jnp.cos(half), jnp.sin(half) * normalized], axis=1)
    return quat2mat(quat)


def qmul(q, r):
    w1, x1, y1, z1 = q[:, 0], q[:, 1], q[:, 2], q[:, 3]
    w2, x2, y2, z2 = r[:, 0], r[:, 1], r[:, 2], r[:, 3]
    w = w1 * w2 - x1 * x2 - y1 * y2 - z1 * z2
    x = w1 * x2 + x1 * w2 + y1 * z2 - z1 * y2
    y = w1 * y2 - x1 * z2 + y1 * w2 + z1 * x2
    z = w1 * z2 + x1 * y2 - y1 * x2 + z1 * w2
    return jnp.stack([w, x, y, z], axis=1)


def batch_global_rigid_transformation(Rs, Js, parents):
    # TODO(synk): the 16-step kinematic chain is inherently sequential 4x4 math;
    #             kept in plain JAX rather than a Pallas kernel.
    N = Rs.shape[0]
    Js = Js[..., None]                                                # (N, 16, 3, 1)

    def make_A(R, t):
        R_homo = jnp.pad(R, ((0, 0), (0, 1), (0, 0)))                 # (N, 4, 3)
        t_homo = jnp.concatenate(
            [t, jnp.ones((N, 1, 1), dtype=R.dtype)], axis=1)          # (N, 4, 1)
        return jnp.concatenate([R_homo, t_homo], axis=2)              # (N, 4, 4)

    results = [make_A(Rs[:, 0], Js[:, 0])]
    for i in range(1, len(parents)):
        j_here = Js[:, i] - Js[:, parents[i]]
        A_here = make_A(Rs[:, i], j_here)
        results.append(jnp.matmul(results[parents[i]], A_here))
    results = jnp.stack(results, axis=1)                              # (N, 16, 4, 4)
    new_J = results[:, :, :3, 3]
    Js_w0 = jnp.concatenate(
        [Js, jnp.zeros((N, NUM_JOINTS, 1, 1), dtype=Rs.dtype)], axis=2)
    init_bone = jnp.matmul(results, Js_w0)                            # (N, 16, 4, 1)
    init_bone = jnp.pad(init_bone, ((0, 0), (0, 0), (0, 0), (3, 0)))
    A = results - init_bone
    return new_J, A


# ---------------------------------------------------------------------------
# Full forward pass (== MANO_NEW.forward with get_skin=True, use_pca=False)
# ---------------------------------------------------------------------------

def mano_forward(params, consts, theta, delta_quat):
    B = theta.shape[0]
    beta = jnp.tile(params["user_shape"][None, :], (B, 1))            # (B, 10)

    # pose rotations from axis-angle
    Rs = batch_rodrigues(theta.reshape(-1, 3)).reshape(B, NUM_POSE, 3, 3)
    pose_feature = (Rs - jnp.eye(3, dtype=jnp.float32)).reshape(B, POSE_FEAT)

    # rest-pose joints directly from beta (J_regressor folded offline)
    J_rest = (consts["j_template"][None, :, :]
              + (beta @ consts["j_dirs"]).reshape(B, NUM_JOINTS, 3))  # (B, 16, 3)

    # global root rotation from quaternions
    init_quat = jnp.tile(params["init_quat"][None, :], (B, 1))
    quat = qmul(delta_quat, init_quat)
    root_R = quat2mat(quat).reshape(B, 1, 3, 3)
    Rs_full = jnp.concatenate([root_R, Rs], axis=1)                   # (B, 16, 3, 3)

    _, A = batch_global_rigid_transformation(Rs_full, J_rest, PARENTS)

    # --- batch blocking: TB rows per grid step, TB a multiple of 8, <= TB_CAP.
    tb = min(_round_up(B, 8), TB_CAP)
    bpad = _round_up(B, tb)
    nblocks = bpad // tb

    # blend input: [beta | pose_feature | 1]; the 1 folds v_template into dirs.
    blend_in = jnp.concatenate(
        [beta, pose_feature, jnp.ones((B, 1), jnp.float32)], axis=1)  # (B, 146)
    blend_in = jnp.pad(blend_in, ((0, bpad - B), (0, 0)))

    # A_flat^T per batch row, k-major stacked within each batch block so the
    # kernel can read tT[b, k, :] via static contiguous sublane slices.
    A_t = jnp.swapaxes(A.reshape(B, NUM_JOINTS, NUM_JOINTS), 1, 2)    # (B, 16, 16)
    A_t = jnp.pad(A_t, ((0, bpad - B), (0, 0), (0, 0)))
    at_stacked = (A_t.reshape(nblocks, tb, NUM_JOINTS, NUM_JOINTS)
                  .transpose(0, 2, 1, 3)
                  .reshape(nblocks * NUM_JOINTS * tb, NUM_JOINTS))    # (16*bpad, 16)

    # fused blend + skin + joint regression (single Pallas kernel)
    verts_cm, joints_cm = fused_vertex_pass(blend_in, at_stacked, consts, tb)

    trans = params["init_trans"].reshape(B, 1, 3)
    # TODO(synk): final transpose to (B, V, 3) kept for API parity with the
    #             torch module; downstream consumers of component-major data
    #             could take verts_cm directly and skip this relayout.
    verts = jnp.transpose(verts_cm[:, :B, :V], (1, 2, 0)) + trans     # (B, 778, 3)
    joints = jnp.transpose(joints_cm[:, :B, :NUM_REG], (1, 2, 0)) + trans  # (B, 21, 3)
    return verts, joints, Rs


# ---------------------------------------------------------------------------
# Pure-JAX reference (mirrors the torch module) for validation
# ---------------------------------------------------------------------------

def mano_forward_reference(params, theta, delta_quat):
    B = theta.shape[0]
    beta = jnp.tile(params["user_shape"][None, :], (B, 1))
    v_shaped = (beta @ params["shapedirs"]).reshape(B, V, 3) + params["v_template"][None]
    J = jnp.einsum("bvc,vj->bjc", v_shaped, params["J_regressor"])    # (B, 21, 3)
    Rs = batch_rodrigues(theta.reshape(-1, 3)).reshape(B, NUM_POSE, 3, 3)
    pose_feature = (Rs - jnp.eye(3, dtype=jnp.float32)).reshape(B, POSE_FEAT)
    v_posed = (pose_feature @ params["posedirs"]).reshape(B, V, 3) + v_shaped
    init_quat = jnp.tile(params["init_quat"][None, :], (B, 1))
    quat = qmul(delta_quat, init_quat)
    root_R = quat2mat(quat).reshape(B, 1, 3, 3)
    Rs_full = jnp.concatenate([root_R, Rs], axis=1)
    _, A = batch_global_rigid_transformation(Rs_full, J[:, :NUM_JOINTS], PARENTS)
    W = jnp.tile(params["weights"][None], (B, 1, 1))                  # (B, V, 16)
    T = jnp.matmul(W, A.reshape(B, NUM_JOINTS, NUM_JOINTS)).reshape(B, V, 4, 4)
    v_homo = jnp.concatenate([v_posed, jnp.ones((B, V, 1), jnp.float32)], axis=2)
    verts = jnp.matmul(T, v_homo[..., None])[:, :, :3, 0]
    joints = jnp.einsum("bvc,vj->bjc", verts, params["J_regressor"])
    trans = params["init_trans"].reshape(B, 1, 3)
    return verts + trans, joints + trans, Rs


# ---------------------------------------------------------------------------
# Deterministic synthetic parameters & inputs
# ---------------------------------------------------------------------------

def make_params(key, batch):
    ks = jax.random.split(key, 8)
    return {
        "v_template": 0.01 * jax.random.normal(ks[0], (V, 3), jnp.float32),
        "shapedirs": 0.01 * jax.random.normal(ks[1], (NUM_BETAS, V * 3),
                                              jnp.float32),
        "posedirs": 0.01 * jax.random.normal(ks[2], (POSE_FEAT, V * 3),
                                             jnp.float32),
        "J_regressor": jax.nn.softmax(
            jax.random.normal(ks[3], (V, NUM_REG), jnp.float32), axis=0),
        "weights": jax.nn.softmax(
            jax.random.normal(ks[4], (V, NUM_JOINTS), jnp.float32), axis=1),
        "user_shape": 0.1 * jax.random.normal(ks[5], (NUM_BETAS,), jnp.float32),
        "init_quat": jnp.array([1.0, 0.0, 0.0, 0.0], jnp.float32),
        "init_trans": 0.05 * jax.random.normal(ks[6], (batch, 3), jnp.float32),
    }


if __name__ == "__main__":
    B = 2
    key = jax.random.PRNGKey(0)
    pkey, tkey, qkey = jax.random.split(key, 3)

    params = make_params(pkey, B)
    consts = precompute_constants(params)

    theta = 0.1 * jax.random.normal(tkey, (B, NUM_POSE * 3), jnp.float32)  # (2, 45)
    dq = jax.random.normal(qkey, (B, 4), jnp.float32)
    delta_quat = dq / jnp.linalg.norm(dq, axis=1, keepdims=True)

    fwd = jax.jit(mano_forward)
    verts, joints, Rs = fwd(params, consts, theta, delta_quat)
    jax.block_until_ready((verts, joints, Rs))

    assert verts.shape == (B, V, 3)
    assert joints.shape == (B, NUM_REG, 3)
    assert Rs.shape == (B, NUM_POSE, 3, 3)

    # Validate against the plain-JAX reference of the original torch module.
    v_ref, j_ref, r_ref = mano_forward_reference(params, theta, delta_quat)
    np.testing.assert_allclose(np.asarray(verts), np.asarray(v_ref),
                               atol=1e-4, rtol=1e-3)
    np.testing.assert_allclose(np.asarray(joints), np.asarray(j_ref),
                               atol=1e-4, rtol=1e-3)
    np.testing.assert_allclose(np.asarray(Rs), np.asarray(r_ref),
                               atol=1e-5, rtol=1e-5)
    print("KERNEL_OK")
</pallas_src>

<mosaic_0001>
module attributes {stable_mosaic.version = 11 : i64} {
  func.func @_fused_vertex_kernel(%arg0: i32, %arg1: memref<8x146xf32, #tpu.memory_space<vmem>>, %arg2: memref<128x16xf32, #tpu.memory_space<vmem>>, %arg3: memref<146x2688xf32, #tpu.memory_space<vmem>>, %arg4: memref<16x896xf32, #tpu.memory_space<vmem>>, %arg5: memref<896x128xf32, #tpu.memory_space<vmem>>, %arg6: memref<3x8x896xf32, #tpu.memory_space<vmem>>, %arg7: memref<3x8x128xf32, #tpu.memory_space<vmem>>) attributes {dimension_semantics = [#tpu.dimension_semantics<parallel>], iteration_bounds = array<i64: 1>, scalar_prefetch = 0 : i64, scratch_operands = 0 : i64, tpu.core_type = #tpu.core_type<tc>, window_params = [{transform_indices = @transform_0, window_bounds = array<i64: 8, 146>}, {transform_indices = @transform_1, window_bounds = array<i64: 128, 16>}, {pipeline_mode = #tpu.pipeline_mode<synchronous>, transform_indices = @transform_2, window_bounds = array<i64: 146, 2688>}, {pipeline_mode = #tpu.pipeline_mode<synchronous>, transform_indices = @transform_3, window_bounds = array<i64: 16, 896>}, {pipeline_mode = #tpu.pipeline_mode<synchronous>, transform_indices = @transform_4, window_bounds = array<i64: 896, 128>}, {transform_indices = @transform_5, window_bounds = array<i64: 3, 8, 896>}, {transform_indices = @transform_6, window_bounds = array<i64: 3, 8, 128>}]} {
    %c0 = arith.constant 0 : index
    %c0_0 = arith.constant 0 : index
    %0 = vector.load %arg1[%c0, %c0_0] : memref<8x146xf32, #tpu.memory_space<vmem>>, vector<8x146xf32>
    %c0_1 = arith.constant 0 : index
    %c0_2 = arith.constant 0 : index
    %1 = vector.load %arg3[%c0_1, %c0_2] : memref<146x2688xf32, #tpu.memory_space<vmem>>, vector<146x2688xf32>
    %cst = arith.constant dense<0.000000e+00> : vector<8x2688xf32>
    %2 = tpu.matmul %0, %1, %cst {dimension_numbers = #tpu.dot_dimension_numbers<[1], [0], [0], [1], [0, 0, 1, 1], [], []>} : vector<8x146xf32>, vector<146x2688xf32>, vector<8x2688xf32> -> vector<8x2688xf32>
    %3 = vector.extract_strided_slice %2 {offsets = [0, 0], sizes = [8, 896], strides = [1, 1]} : vector<8x2688xf32> to vector<8x896xf32>
    %4 = vector.extract_strided_slice %2 {offsets = [0, 896], sizes = [8, 896], strides = [1, 1]} : vector<8x2688xf32> to vector<8x896xf32>
    %5 = vector.extract_strided_slice %2 {offsets = [0, 1792], sizes = [8, 896], strides = [1, 1]} : vector<8x2688xf32> to vector<8x896xf32>
    %c0_3 = arith.constant 0 : index
    %c0_4 = arith.constant 0 : index
    %6 = vector.load %arg2[%c0_3, %c0_4] : memref<128x16xf32, #tpu.memory_space<vmem>>, vector<128x16xf32>
    %c0_5 = arith.constant 0 : index
    %c0_6 = arith.constant 0 : index
    %7 = vector.load %arg4[%c0_5, %c0_6] : memref<16x896xf32, #tpu.memory_space<vmem>>, vector<16x896xf32>
    %cst_7 = arith.constant dense<0.000000e+00> : vector<128x896xf32>
    %8 = tpu.matmul %6, %7, %cst_7 {dimension_numbers = #tpu.dot_dimension_numbers<[1], [0], [0], [1], [0, 0, 1, 1], [], []>} : vector<128x16xf32>, vector<16x896xf32>, vector<128x896xf32> -> vector<128x896xf32>
    %9 = vector.extract_strided_slice %8 {offsets = [0, 0], sizes = [8, 896], strides = [1, 1]} : vector<128x896xf32> to vector<8x896xf32>
    %10 = arith.mulf %9, %3 : vector<8x896xf32>
    %11 = vector.extract_strided_slice %8 {offsets = [8, 0], sizes = [8, 896], strides = [1, 1]} : vector<128x896xf32> to vector<8x896xf32>
    %12 = arith.mulf %11, %4 : vector<8x896xf32>
    %13 = arith.addf %10, %12 : vector<8x896xf32>
    %14 = vector.extract_strided_slice %8 {offsets = [16, 0], sizes = [8, 896], strides = [1, 1]} : vector<128x896xf32> to vector<8x896xf32>
    %15 = arith.mulf %14, %5 : vector<8x896xf32>
    %16 = arith.addf %13, %15 : vector<8x896xf32>
    %17 = vector.extract_strided_slice %8 {offsets = [24, 0], sizes = [8, 896], strides = [1, 1]} : vector<128x896xf32> to vector<8x896xf32>
    %18 = arith.addf %16, %17 : vector<8x896xf32>
    %19 = vector.extract_strided_slice %8 {offsets = [32, 0], sizes = [8, 896], strides = [1, 1]} : vector<128x896xf32> to vector<8x896xf32>
    %20 = arith.mulf %19, %3 : vector<8x896xf32>
    %21 = vector.extract_strided_slice %8 {offsets = [40, 0], sizes = [8, 896], strides = [1, 1]} : vector<128x896xf32> to vector<8x896xf32>
    %22 = arith.mulf %21, %4 : vector<8x896xf32>
    %23 = arith.addf %20, %22 : vector<8x896xf32>
    %24 = vector.extract_strided_slice %8 {offsets = [48, 0], sizes = [8, 896], strides = [1, 1]} : vector<128x896xf32> to vector<8x896xf32>
    %25 = arith.mulf %24, %5 : vector<8x896xf32>
    %26 = arith.addf %23, %25 : vector<8x896xf32>
    %27 = vector.extract_strided_slice %8 {offsets = [56, 0], sizes = [8, 896], strides = [1, 1]} : vector<128x896xf32> to vector<8x896xf32>
    %28 = arith.addf %26, %27 : vector<8x896xf32>
    %29 = vector.extract_strided_slice %8 {offsets = [64, 0], sizes = [8, 896], strides = [1, 1]} : vector<128x896xf32> to vector<8x896xf32>
    %30 = arith.mulf %29, %3 : vector<8x896xf32>
    %31 = vector.extract_strided_slice %8 {offsets = [72, 0], sizes = [8, 896], strides = [1, 1]} : vector<128x896xf32> to vector<8x896xf32>
    %32 = arith.mulf %31, %4 : vector<8x896xf32>
    %33 = arith.addf %30, %32 : vector<8x896xf32>
    %34 = vector.extract_strided_slice %8 {offsets = [80, 0], sizes = [8, 896], strides = [1, 1]} : vector<128x896xf32> to vector<8x896xf32>
    %35 = arith.mulf %34, %5 : vector<8x896xf32>
    %36 = arith.addf %33, %35 : vector<8x896xf32>
    %37 = vector.extract_strided_slice %8 {offsets = [88, 0], sizes = [8, 896], strides = [1, 1]} : vector<128x896xf32> to vector<8x896xf32>
    %38 = arith.addf %36, %37 : vector<8x896xf32>
    %c0_8 = arith.constant 0 : index
    %c0_9 = arith.constant 0 : index
    %c0_10 = arith.constant 0 : index
    %39 = vector.load %arg6[%c0_8, %c0_9, %c0_10] : memref<3x8x896xf32, #tpu.memory_space<vmem>>, vector<1x8x896xf32>
    %40 = vector.shape_cast %39 : vector<1x8x896xf32> to vector<8x896xf32>
    %41 = vector.shape_cast %18 : vector<8x896xf32> to vector<1x8x896xf32>
    tpu.vector_store %arg6[%c0_8, %c0_9, %c0_10], %41 {strides = array<i32>} : memref<3x8x896xf32, #tpu.memory_space<vmem>>, vector<1x8x896xf32>,
    %c1 = arith.constant 1 : index
    %c0_11 = arith.constant 0 : index
    %c0_12 = arith.constant 0 : index
    %42 = vector.load %arg6[%c1, %c0_11, %c0_12] : memref<3x8x896xf32, #tpu.memory_space<vmem>>, vector<1x8x896xf32>
    %43 = vector.shape_cast %42 : vector<1x8x896xf32> to vector<8x896xf32>
    %44 = vector.shape_cast %28 : vector<8x896xf32> to vector<1x8x896xf32>
    tpu.vector_store %arg6[%c1, %c0_11, %c0_12], %44 {strides = array<i32>} : memref<3x8x896xf32, #tpu.memory_space<vmem>>, vector<1x8x896xf32>,
    %c2 = arith.constant 2 : index
    %c0_13 = arith.constant 0 : index
    %c0_14 = arith.constant 0 : index
    %45 = vector.load %arg6[%c2, %c0_13, %c0_14] : memref<3x8x896xf32, #tpu.memory_space<vmem>>, vector<1x8x896xf32>
    %46 = vector.shape_cast %45 : vector<1x8x896xf32> to vector<8x896xf32>
    %47 = vector.shape_cast %38 : vector<8x896xf32> to vector<1x8x896xf32>
    tpu.vector_store %arg6[%c2, %c0_13, %c0_14], %47 {strides = array<i32>} : memref<3x8x896xf32, #tpu.memory_space<vmem>>, vector<1x8x896xf32>,
    %c0_15 = arith.constant 0 : index
    %c0_16 = arith.constant 0 : index
    %48 = vector.load %arg5[%c0_15, %c0_16] : memref<896x128xf32, #tpu.memory_space<vmem>>, vector<896x128xf32>
    %cst_17 = arith.constant dense<0.000000e+00> : vector<8x128xf32>
    %49 = tpu.matmul %18, %48, %cst_17 {dimension_numbers = #tpu.dot_dimension_numbers<[1], [0], [0], [1], [0, 0, 1, 1], [], []>} : vector<8x896xf32>, vector<896x128xf32>, vector<8x128xf32> -> vector<8x128xf32>
    %c0_18 = arith.constant 0 : index
    %c0_19 = arith.constant 0 : index
    %c0_20 = arith.constant 0 : index
    %50 = vector.load %arg7[%c0_18, %c0_19, %c0_20] : memref<3x8x128xf32, #tpu.memory_space<vmem>>, vector<1x8x128xf32>
    %51 = vector.shape_cast %50 : vector<1x8x128xf32> to vector<8x128xf32>
    %52 = vector.shape_cast %49 : vector<8x128xf32> to vector<1x8x128xf32>
    tpu.vector_store %arg7[%c0_18, %c0_19, %c0_20], %52 {strides = array<i32>} : memref<3x8x128xf32, #tpu.memory_space<vmem>>, vector<1x8x128xf32>,
    %cst_21 = arith.constant dense<0.000000e+00> : vector<8x128xf32>
    %53 = tpu.matmul %28, %48, %cst_21 {dimension_numbers = #tpu.dot_dimension_numbers<[1], [0], [0], [1], [0, 0, 1, 1], [], []>} : vector<8x896xf32>, vector<896x128xf32>, vector<8x128xf32> -> vector<8x128xf32>
    %c1_22 = arith.constant 1 : index
    %c0_23 = arith.constant 0 : index
    %c0_24 = arith.constant 0 : index
    %54 = vector.load %arg7[%c1_22, %c0_23, %c0_24] : memref<3x8x128xf32, #tpu.memory_space<vmem>>, vector<1x8x128xf32>
    %55 = vector.shape_cast %54 : vector<1x8x128xf32> to vector<8x128xf32>
    %56 = vector.shape_cast %53 : vector<8x128xf32> to vector<1x8x128xf32>
    tpu.vector_store %arg7[%c1_22, %c0_23, %c0_24], %56 {strides = array<i32>} : memref<3x8x128xf32, #tpu.memory_space<vmem>>, vector<1x8x128xf32>,
    %cst_25 = arith.constant dense<0.000000e+00> : vector<8x128xf32>
    %57 = tpu.matmul %38, %48, %cst_25 {dimension_numbers = #tpu.dot_dimension_numbers<[1], [0], [0], [1], [0, 0, 1, 1], [], []>} : vector<8x896xf32>, vector<896x128xf32>, vector<8x128xf32> -> vector<8x128xf32>
    %c2_26 = arith.constant 2 : index
    %c0_27 = arith.constant 0 : index
    %c0_28 = arith.constant 0 : index
    %58 = vector.load %arg7[%c2_26, %c0_27, %c0_28] : memref<3x8x128xf32, #tpu.memory_space<vmem>>, vector<1x8x128xf32>
    %59 = vector.shape_cast %58 : vector<1x8x128xf32> to vector<8x128xf32>
    %60 = vector.shape_cast %57 : vector<8x128xf32> to vector<1x8x128xf32>
    tpu.vector_store %arg7[%c2_26, %c0_27, %c0_28], %60 {strides = array<i32>} : memref<3x8x128xf32, #tpu.memory_space<vmem>>, vector<1x8x128xf32>,
    return
  }
  func.func @transform_0(%arg0: i32) -> (i32, i32) {
    %c0_i32 = arith.constant 0 : i32
    %c0_i32_0 = arith.constant 0 : i32
    return %arg0, %c0_i32 : i32, i32
  }
  func.func @transform_1(%arg0: i32) -> (i32, i32) {
    %c0_i32 = arith.constant 0 : i32
    %c0_i32_0 = arith.constant 0 : i32
    return %arg0, %c0_i32 : i32, i32
  }
  func.func @transform_2(%arg0: i32) -> (i32, i32) {
    %c0_i32 = arith.constant 0 : i32
    %c0_i32_0 = arith.constant 0 : i32
    %c0_i32_1 = arith.constant 0 : i32
    return %c0_i32, %c0_i32_0 : i32, i32
  }
  func.func @transform_3(%arg0: i32) -> (i32, i32) {
    %c0_i32 = arith.constant 0 : i32
    %c0_i32_0 = arith.constant 0 : i32
    %c0_i32_1 = arith.constant 0 : i32
    return %c0_i32, %c0_i32_0 : i32, i32
  }
  func.func @transform_4(%arg0: i32) -> (i32, i32) {
    %c0_i32 = arith.constant 0 : i32
    %c0_i32_0 = arith.constant 0 : i32
    %c0_i32_1 = arith.constant 0 : i32
    return %c0_i32, %c0_i32_0 : i32, i32
  }
  func.func @transform_5(%arg0: i32) -> (i32, i32, i32) {
    %c0_i32 = arith.constant 0 : i32
    %c0_i32_0 = arith.constant 0 : i32
    %c0_i32_1 = arith.constant 0 : i32
    return %c0_i32, %arg0, %c0_i32_0 : i32, i32, i32
  }
  func.func @transform_6(%arg0: i32) -> (i32, i32, i32) {
    %c0_i32 = arith.constant 0 : i32
    %c0_i32_0 = arith.constant 0 : i32
    %c0_i32_1 = arith.constant 0 : i32
    return %c0_i32, %arg0, %c0_i32_0 : i32, i32, i32
  }
}

</mosaic_0001>

<llo_original>
// kernel: mano_forward.1
$region0: #{mano_forward.1}
  #allocation0 [shape = 'u32[]', space=smem, size = 0x4, offset = 0x4, fixed_abs, tag = 'smem constant byte address 0x4 - core index']
  #allocation1 [shape = 'u32[144,128]{1,0:T(1,128)}', space=vmem, size = 0x12000, scoped, tag = 'internal scratch']
  %s0 = inlined_call_operand.vmem [shape: f32[8,146], index: 0, kind: input, shape index: {}]
  %s1 = inlined_call_operand.vmem [shape: f32[128,16], index: 1, kind: input, shape index: {}]
  %s2 = inlined_call_operand.vmem [shape: f32[146,2688], index: 2, kind: input, shape index: {}]
  %s3 = inlined_call_operand.vmem [shape: f32[16,896], index: 3, kind: input, shape index: {}]
  %s4 = inlined_call_operand.hbm [shape: f32[896,128], index: 4, kind: input, shape index: {}]
  %s5 = inlined_call_operand.vmem [shape: f32[3,8,896], index: 5, kind: output, shape index: {0}]
  %s6 = inlined_call_operand.vmem [shape: f32[3,8,128], index: 6, kind: output, shape index: {1}]
  %7 = xla_tuple %s5, %s6
  %s8 = sld [smem:[#allocation0]]
  $region42: #{mano_forward.1} parent=0
    _
  %s10 = ssub.s32 1, %s8
  %s11 = scalar_select 0, %s10, %s8
  $region1: #{mano_forward.1} parent=0
    #allocation2 [shape = 'u8[458752]{0}', space=vmem, size = 0x70000, scoped, tag = 'input window, operand 4, single buffered']
    #allocation3 [shape = 's32[1]{0}', space=sflag, size = 0x4, scoped, tag = 'scoped memory for mano_forward.1']
    %12 = vsyncpa [#allocation3], 0
    // Predicated region
    $region2: #{mano_forward.1} parent=1 // pred_check
      _
    $region3: #{mano_forward.1} parent=1 // pred_check_branch
      %14 = sbr.rel (0) target = $region5
    $region4: #{mano_forward.1} parent=1 // pred_region
      _
    $region5: #{mano_forward.1} parent=1 // pred_fallthru
      _
    // Predicated region
    $region6: #{mano_forward.1} parent=1 // pred_check
      _
    $region7: #{mano_forward.1} parent=1 // pred_check_branch
      %16 = sbr.rel (0) target = $region9
    $region8: #{mano_forward.1} parent=1 // pred_region
      _
    $region9: #{mano_forward.1} parent=1 // pred_fallthru
      _
    // Predicated region
    $region10: #{mano_forward.1} parent=1 // pred_check
      _
    $region11: #{mano_forward.1} parent=1 // pred_check_branch
      %18 = sbr.rel (0) target = $region13
    $region12: #{mano_forward.1} parent=1 // pred_region
      _
    $region13: #{mano_forward.1} parent=1 // pred_fallthru
      _
    // Predicated region
    $region14: #{mano_forward.1} parent=1 // pred_check
      _
    $region15: #{mano_forward.1} parent=1 // pred_check_branch
      %20 = sbr.rel (0) target = $region17
    $region16: #{mano_forward.1} parent=1 // pred_region
      _
    $region17: #{mano_forward.1} parent=1 // pred_fallthru
      _
    // Predicated region
    $region18: #{mano_forward.1} parent=1 // pred_check
      _
    $region19: #{mano_forward.1} parent=1 // pred_check_branch
      %22 = sbr.rel (0) target = $region21
    $region20: #{mano_forward.1} parent=1 // pred_region
      %s24 = ssub.s32 14336, 14336
      %25 = vsyncadd [#allocation3], %s24
      %s26 = sshll.u32 [#allocation2], 4
      %s27 = int_to_ptr.vmem [resolvable:$true] %s26
      %32 = dma.hbm_to_vmem [thread:$0]  %s4, 14336, %s27, [#allocation3], 128, 128, 8
    $region21: #{mano_forward.1} parent=1 // pred_fallthru
      _
    // Predicated region
    $region22: #{mano_forward.1} parent=1 // pred_check
      _
    $region23: #{mano_forward.1} parent=1 // pred_check_branch
      %34 = sbr.rel (0) target = $region25
    $region24: #{mano_forward.1} parent=1 // pred_region
      %35 = dma.done [#allocation3], 14336
    $region25: #{mano_forward.1} parent=1 // pred_fallthru
      _
    %v36 = vld [vmem:[%s0] sm:$0xff]
    %v37 = vld [vmem:[%s0 + $0x8] sm:$0xff]
    %v38 = vld [vmem:[%s2] sm:$0xff]
    %v39 = vld [vmem:[%s2 + $0x8] sm:$0xff]
    %v40 = vld [vmem:[%s2 + $0x10] sm:$0xff]
    %v41 = vld [vmem:[%s2 + $0x18] sm:$0xff]
    %v42 = vld [vmem:[%s2 + $0x20] sm:$0xff]
    %v43 = vld [vmem:[%s2 + $0x28] sm:$0xff]
    %v44 = vld [vmem:[%s2 + $0x30] sm:$0xff]
    %v45 = vld [vmem:[%s2 + $0x38] sm:$0xff]
    %v46 = vld [vmem:[%s2 + $0x40] sm:$0xff]
    %v47 = vld [vmem:[%s2 + $0x48] sm:$0xff]
    %v48 = vld [vmem:[%s2 + $0x50] sm:$0xff]
    %v49 = vld [vmem:[%s2 + $0x58] sm:$0xff]
    %v50 = vld [vmem:[%s2 + $0x60] sm:$0xff]
    %v51 = vld [vmem:[%s2 + $0x68] sm:$0xff]
    %v52 = vld [vmem:[%s2 + $0x70] sm:$0xff]
    %v53 = vld [vmem:[%s2 + $0x78] sm:$0xff]
    %v54 = vld [vmem:[%s2 + $0x80] sm:$0xff]
    %v55 = vld [vmem:[%s2 + $0x88] sm:$0xff]
    %v56 = vld [vmem:[%s2 + $0x90] sm:$0xff]
    %v57 = vld [vmem:[%s2 + $0x98] sm:$0xff]
    %v58 = vld [vmem:[%s2 + $0xa0] sm:$0xff]
    %v59 = vld [vmem:[%s2 + $0xa8] sm:$0xff]
    %v60 = vld [vmem:[%s2 + $0xb0] sm:$0xff]
    %v61 = vld [vmem:[%s2 + $0xb8] sm:$0xff]
    %v62 = vld [vmem:[%s2 + $0xc0] sm:$0xff]
    %v63 = vld [vmem:[%s2 + $0xc8] sm:$0xff]
    %v64 = vld [vmem:[%s2 + $0xd0] sm:$0xff]
    %v65 = vld [vmem:[%s2 + $0xd8] sm:$0xff]
    %v66 = vld [vmem:[%s2 + $0xe0] sm:$0xff]
    %v67 = vld [vmem:[%s2 + $0xe8] sm:$0xff]
    %v68 = vld [vmem:[%s2 + $0xf0] sm:$0xff]
    %v69 = vld [vmem:[%s2 + $0xf8] sm:$0xff]
    %v70 = vld [vmem:[%s2 + $0x100] sm:$0xff]
    %v71 = vld [vmem:[%s2 + $0x108] sm:$0xff]
    %v72 = vld [vmem:[%s2 + $0x110] sm:$0xff]
    %v73 = vld [vmem:[%s2 + $0x118] sm:$0xff]
    %v74 = vld [vmem:[%s2 + $0x120] sm:$0xff]
    %v75 = vld [vmem:[%s2 + $0x128] sm:$0xff]
    %v76 = vld [vmem:[%s2 + $0x130] sm:$0xff]
    %v77 = vld [vmem:[%s2 + $0x138] sm:$0xff]
    %v78 = vld [vmem:[%s2 + $0x140] sm:$0xff]
    %v79 = vld [vmem:[%s2 + $0x148] sm:$0xff]
    %v80 = vld [vmem:[%s2 + $0x150] sm:$0xff]
    %v81 = vld [vmem:[%s2 + $0x158] sm:$0xff]
    %v82 = vld [vmem:[%s2 + $0x160] sm:$0xff]
    %v83 = vld [vmem:[%s2 + $0x168] sm:$0xff]
    %v84 = vld [vmem:[%s2 + $0x170] sm:$0xff]
    %v85 = vld [vmem:[%s2 + $0x178] sm:$0xff]
    %v86 = vld [vmem:[%s2 + $0x180] sm:$0xff]
    %v87 = vld [vmem:[%s2 + $0x188] sm:$0xff]
    %v88 = vld [vmem:[%s2 + $0x190] sm:$0xff]
    %v89 = vld [vmem:[%s2 + $0x198] sm:$0xff]
    %v90 = vld [vmem:[%s2 + $0x1a0] sm:$0xff]
    %v91 = vld [vmem:[%s2 + $0x1a8] sm:$0xff]
    %v92 = vld [vmem:[%s2 + $0x1b0] sm:$0xff]
    %v93 = vld [vmem:[%s2 + $0x1b8] sm:$0xff]
    %v94 = vld [vmem:[%s2 + $0x1c0] sm:$0xff]
    %v95 = vld [vmem:[%s2 + $0x1c8] sm:$0xff]
    %v96 = vld [vmem:[%s2 + $0x1d0] sm:$0xff]
    %v97 = vld [vmem:[%s2 + $0x1d8] sm:$0xff]
    %v98 = vld [vmem:[%s2 + $0x1e0] sm:$0xff]
    %v99 = vld [vmem:[%s2 + $0x1e8] sm:$0xff]
    %v100 = vld [vmem:[%s2 + $0x1f0] sm:$0xff]
    %v101 = vld [vmem:[%s2 + $0x1f8] sm:$0xff]
    %v102 = vld [vmem:[%s2 + $0x200] sm:$0xff]
    %v103 = vld [vmem:[%s2 + $0x208] sm:$0xff]
    %v104 = vld [vmem:[%s2 + $0x210] sm:$0xff]
    %v105 = vld [vmem:[%s2 + $0x218] sm:$0xff]
    %v106 = vld [vmem:[%s2 + $0x220] sm:$0xff]
    %v107 = vld [vmem:[%s2 + $0x228] sm:$0xff]
    %v108 = vld [vmem:[%s2 + $0x230] sm:$0xff]
    %v109 = vld [vmem:[%s2 + $0x238] sm:$0xff]
    %v110 = vld [vmem:[%s2 + $0x240] sm:$0xff]
    %v111 = vld [vmem:[%s2 + $0x248] sm:$0xff]
    %v112 = vld [vmem:[%s2 + $0x250] sm:$0xff]
    %v113 = vld [vmem:[%s2 + $0x258] sm:$0xff]
    %v114 = vld [vmem:[%s2 + $0x260] sm:$0xff]
    %v115 = vld [vmem:[%s2 + $0x268] sm:$0xff]
    %v116 = vld [vmem:[%s2 + $0x270] sm:$0xff]
    %v117 = vld [vmem:[%s2 + $0x278] sm:$0xff]
    %v118 = vld [vmem:[%s2 + $0x280] sm:$0xff]
    %v119 = vld [vmem:[%s2 + $0x288] sm:$0xff]
    %v120 = vld [vmem:[%s2 + $0x290] sm:$0xff]
    %v121 = vld [vmem:[%s2 + $0x298] sm:$0xff]
    %v122 = vld [vmem:[%s2 + $0x2a0] sm:$0xff]
    %v123 = vld [vmem:[%s2 + $0x2a8] sm:$0xff]
    %v124 = vld [vmem:[%s2 + $0x2b0] sm:$0xff]
    %v125 = vld [vmem:[%s2 + $0x2b8] sm:$0xff]
    %v126 = vld [vmem:[%s2 + $0x2c0] sm:$0xff]
    %v127 = vld [vmem:[%s2 + $0x2c8] sm:$0xff]
    %v128 = vld [vmem:[%s2 + $0x2d0] sm:$0xff]
    %v129 = vld [vmem:[%s2 + $0x2d8] sm:$0xff]
    %v130 = vld [vmem:[%s2 + $0x2e0] sm:$0xff]
    %v131 = vld [vmem:[%s2 + $0x2e8] sm:$0xff]
    %v132 = vld [vmem:[%s2 + $0x2f0] sm:$0xff]
    %v133 = vld [vmem:[%s2 + $0x2f8] sm:$0xff]
    %v134 = vld [vmem:[%s2 + $0x300] sm:$0xff]
    %v135 = vld [vmem:[%s2 + $0x308] sm:$0xff]
    %v136 = vld [vmem:[%s2 + $0x310] sm:$0xff]
    %v137 = vld [vmem:[%s2 + $0x318] sm:$0xff]
    %v138 = vld [vmem:[%s2 + $0x320] sm:$0xff]
    %v139 = vld [vmem:[%s2 + $0x328] sm:$0xff]
    %v140 = vld [vmem:[%s2 + $0x330] sm:$0xff]
    %v141 = vld [vmem:[%s2 + $0x338] sm:$0xff]
    %v142 = vld [vmem:[%s2 + $0x340] sm:$0xff]
    %v143 = vld [vmem:[%s2 + $0x348] sm:$0xff]
    %v144 = vld [vmem:[%s2 + $0x350] sm:$0xff]
    %v145 = vld [vmem:[%s2 + $0x358] sm:$0xff]
    %v146 = vld [vmem:[%s2 + $0x360] sm:$0xff]
    %v147 = vld [vmem:[%s2 + $0x368] sm:$0xff]
    %v148 = vld [vmem:[%s2 + $0x370] sm:$0xff]
    %v149 = vld [vmem:[%s2 + $0x378] sm:$0xff]
    %v150 = vld [vmem:[%s2 + $0x380] sm:$0xff]
    %v151 = vld [vmem:[%s2 + $0x388] sm:$0xff]
    %v152 = vld [vmem:[%s2 + $0x390] sm:$0xff]
    %v153 = vld [vmem:[%s2 + $0x398] sm:$0xff]
    %v154 = vld [vmem:[%s2 + $0x3a0] sm:$0xff]
    %v155 = vld [vmem:[%s2 + $0x3a8] sm:$0xff]
    %v156 = vld [vmem:[%s2 + $0x3b0] sm:$0xff]
    %v157 = vld [vmem:[%s2 + $0x3b8] sm:$0xff]
    %v158 = vld [vmem:[%s2 + $0x3c0] sm:$0xff]
    %v159 = vld [vmem:[%s2 + $0x3c8] sm:$0xff]
    %v160 = vld [vmem:[%s2 + $0x3d0] sm:$0xff]
    %v161 = vld [vmem:[%s2 + $0x3d8] sm:$0xff]
    %v162 = vld [vmem:[%s2 + $0x3e0] sm:$0xff]
    %v163 = vld [vmem:[%s2 + $0x3e8] sm:$0xff]
    %v164 = vld [vmem:[%s2 + $0x3f0] sm:$0xff]
    %v165 = vld [vmem:[%s2 + $0x3f8] sm:$0xff]
    %v166 = vld [vmem:[%s2 + $0x400] sm:$0xff]
    %v167 = vld [vmem:[%s2 + $0x408] sm:$0xff]
    %v168 = vld [vmem:[%s2 + $0x410] sm:$0xff]
    %v169 = vld [vmem:[%s2 + $0x418] sm:$0xff]
    %v170 = vld [vmem:[%s2 + $0x420] sm:$0xff]
    %v171 = vld [vmem:[%s2 + $0x428] sm:$0xff]
    %v172 = vld [vmem:[%s2 + $0x430] sm:$0xff]
    %v173 = vld [vmem:[%s2 + $0x438] sm:$0xff]
    %v174 = vld [vmem:[%s2 + $0x440] sm:$0xff]
    %v175 = vld [vmem:[%s2 + $0x448] sm:$0xff]
    %v176 = vld [vmem:[%s2 + $0x450] sm:$0xff]
    %v177 = vld [vmem:[%s2 + $0x458] sm:$0xff]
    %v178 = vld [vmem:[%s2 + $0x460] sm:$0xff]
    %v179 = vld [vmem:[%s2 + $0x468] sm:$0xff]
    %v180 = vld [vmem:[%s2 + $0x470] sm:$0xff]
    %v181 = vld [vmem:[%s2 + $0x478] sm:$0xff]
    %v182 = vld [vmem:[%s2 + $0x480] sm:$0xff]
    %v183 = vld [vmem:[%s2 + $0x488] sm:$0xff]
    %v184 = vld [vmem:[%s2 + $0x490] sm:$0xff]
    %v185 = vld [vmem:[%s2 + $0x498] sm:$0xff]
    %v186 = vld [vmem:[%s2 + $0x4a0] sm:$0xff]
    %v187 = vld [vmem:[%s2 + $0x4a8] sm:$0xff]
    %v188 = vld [vmem:[%s2 + $0x4b0] sm:$0xff]
    %v189 = vld [vmem:[%s2 + $0x4b8] sm:$0xff]
    %v190 = vld [vmem:[%s2 + $0x4c0] sm:$0xff]
    %v191 = vld [vmem:[%s2 + $0x4c8] sm:$0xff]
    %v192 = vld [vmem:[%s2 + $0x4d0] sm:$0xff]
    %v193 = vld [vmem:[%s2 + $0x4d8] sm:$0xff]
    %v194 = vld [vmem:[%s2 + $0x4e0] sm:$0xff]
    %v195 = vld [vmem:[%s2 + $0x4e8] sm:$0xff]
    %v196 = vld [vmem:[%s2 + $0x4f0] sm:$0xff]
    %v197 = vld [vmem:[%s2 + $0x4f8] sm:$0xff]
    %v198 = vld [vmem:[%s2 + $0x500] sm:$0xff]
    %v199 = vld [vmem:[%s2 + $0x508] sm:$0xff]
    %v200 = vld [vmem:[%s2 + $0x510] sm:$0xff]
    %v201 = vld [vmem:[%s2 + $0x518] sm:$0xff]
    %v202 = vld [vmem:[%s2 + $0x520] sm:$0xff]
    %v203 = vld [vmem:[%s2 + $0x528] sm:$0xff]
    %v204 = vld [vmem:[%s2 + $0x530] sm:$0xff]
    %v205 = vld [vmem:[%s2 + $0x538] sm:$0xff]
    %v206 = vld [vmem:[%s2 + $0x540] sm:$0xff]
    %v207 = vld [vmem:[%s2 + $0x548] sm:$0xff]
    %v208 = vld [vmem:[%s2 + $0x550] sm:$0xff]
    %v209 = vld [vmem:[%s2 + $0x558] sm:$0xff]
    %v210 = vld [vmem:[%s2 + $0x560] sm:$0xff]
    %v211 = vld [vmem:[%s2 + $0x568] sm:$0xff]
    %v212 = vld [vmem:[%s2 + $0x570] sm:$0xff]
    %v213 = vld [vmem:[%s2 + $0x578] sm:$0xff]
    %v214 = vld [vmem:[%s2 + $0x580] sm:$0xff]
    %v215 = vld [vmem:[%s2 + $0x588] sm:$0xff]
    %v216 = vld [vmem:[%s2 + $0x590] sm:$0xff]
    %v217 = vld [vmem:[%s2 + $0x598] sm:$0xff]
    %v218 = vld [vmem:[%s2 + $0x5a0] sm:$0xff]
    %v219 = vld [vmem:[%s2 + $0x5a8] sm:$0xff]
    %v220 = vld [vmem:[%s2 + $0x5b0] sm:$0xff]
    %v221 = vld [vmem:[%s2 + $0x5b8] sm:$0xff]
    %v222 = vld [vmem:[%s2 + $0x5c0] sm:$0xff]
    %v223 = vld [vmem:[%s2 + $0x5c8] sm:$0xff]
    %v224 = vld [vmem:[%s2 + $0x5d0] sm:$0xff]
    %v225 = vld [vmem:[%s2 + $0x5d8] sm:$0xff]
    %v226 = vld [vmem:[%s2 + $0x5e0] sm:$0xff]
    %v227 = vld [vmem:[%s2 + $0x5e8] sm:$0xff]
    %v228 = vld [vmem:[%s2 + $0x5f0] sm:$0xff]
    %v229 = vld [vmem:[%s2 + $0x5f8] sm:$0xff]
    %v230 = vld [vmem:[%s2 + $0x600] sm:$0xff]
    %v231 = vld [vmem:[%s2 + $0x608] sm:$0xff]
    %v232 = vld [vmem:[%s2 + $0x610] sm:$0xff]
    %v233 = vld [vmem:[%s2 + $0x618] sm:$0xff]
    %v234 = vld [vmem:[%s2 + $0x620] sm:$0xff]
    %v235 = vld [vmem:[%s2 + $0x628] sm:$0xff]
    %v236 = vld [vmem:[%s2 + $0x630] sm:$0xff]
    %v237 = vld [vmem:[%s2 + $0x638] sm:$0xff]
    %v238 = vld [vmem:[%s2 + $0x640] sm:$0xff]
    %v239 = vld [vmem:[%s2 + $0x648] sm:$0xff]
    %v240 = vld [vmem:[%s2 + $0x650] sm:$0xff]
    %v241 = vld [vmem:[%s2 + $0x658] sm:$0xff]
    %v242 = vld [vmem:[%s2 + $0x660] sm:$0xff]
    %v243 = vld [vmem:[%s2 + $0x668] sm:$0xff]
    %v244 = vld [vmem:[%s2 + $0x670] sm:$0xff]
    %v245 = vld [vmem:[%s2 + $0x678] sm:$0xff]
    %v246 = vld [vmem:[%s2 + $0x680] sm:$0xff]
    %v247 = vld [vmem:[%s2 + $0x688] sm:$0xff]
    %v248 = vld [vmem:[%s2 + $0x690] sm:$0xff]
    %v249 = vld [vmem:[%s2 + $0x698] sm:$0xff]
    %v250 = vld [vmem:[%s2 + $0x6a0] sm:$0xff]
    %v251 = vld [vmem:[%s2 + $0x6a8] sm:$0xff]
    %v252 = vld [vmem:[%s2 + $0x6b0] sm:$0xff]
    %v253 = vld [vmem:[%s2 + $0x6b8] sm:$0xff]
    %v254 = vld [vmem:[%s2 + $0x6c0] sm:$0xff]
    %v255 = vld [vmem:[%s2 + $0x6c8] sm:$0xff]
    %v256 = vld [vmem:[%s2 + $0x6d0] sm:$0xff]
    %v257 = vld [vmem:[%s2 + $0x6d8] sm:$0xff]
    %v258 = vld [vmem:[%s2 + $0x6e0] sm:$0xff]
    %v259 = vld [vmem:[%s2 + $0x6e8] sm:$0xff]
    %v260 = vld [vmem:[%s2 + $0x6f0] sm:$0xff]
    %v261 = vld [vmem:[%s2 + $0x6f8] sm:$0xff]
    %v262 = vld [vmem:[%s2 + $0x700] sm:$0xff]
    %v263 = vld [vmem:[%s2 + $0x708] sm:$0xff]
    %v264 = vld [vmem:[%s2 + $0x710] sm:$0xff]
    %v265 = vld [vmem:[%s2 + $0x718] sm:$0xff]
    %v266 = vld [vmem:[%s2 + $0x720] sm:$0xff]
    %v267 = vld [vmem:[%s2 + $0x728] sm:$0xff]
    %v268 = vld [vmem:[%s2 + $0x730] sm:$0xff]
    %v269 = vld [vmem:[%s2 + $0x738] sm:$0xff]
    %v270 = vld [vmem:[%s2 + $0x740] sm:$0xff]
    %v271 = vld [vmem:[%s2 + $0x748] sm:$0xff]
    %v272 = vld [vmem:[%s2 + $0x750] sm:$0xff]
    %v273 = vld [vmem:[%s2 + $0x758] sm:$0xff]
    %v274 = vld [vmem:[%s2 + $0x760] sm:$0xff]
    %v275 = vld [vmem:[%s2 + $0x768] sm:$0xff]
    %v276 = vld [vmem:[%s2 + $0x770] sm:$0xff]
    %v277 = vld [vmem:[%s2 + $0x778] sm:$0xff]
    %v278 = vld [vmem:[%s2 + $0x780] sm:$0xff]
    %v279 = vld [vmem:[%s2 + $0x788] sm:$0xff]
    %v280 = vld [vmem:[%s2 + $0x790] sm:$0xff]
    %v281 = vld [vmem:[%s2 + $0x798] sm:$0xff]
    %v282 = vld [vmem:[%s2 + $0x7a0] sm:$0xff]
    %v283 = vld [vmem:[%s2 + $0x7a8] sm:$0xff]
    %v284 = vld [vmem:[%s2 + $0x7b0] sm:$0xff]
    %v285 = vld [vmem:[%s2 + $0x7b8] sm:$0xff]
    %v286 = vld [vmem:[%s2 + $0x7c0] sm:$0xff]
    %v287 = vld [vmem:[%s2 + $0x7c8] sm:$0xff]
    %v288 = vld [vmem:[%s2 + $0x7d0] sm:$0xff]
    %v289 = vld [vmem:[%s2 + $0x7d8] sm:$0xff]
    %v290 = vld [vmem:[%s2 + $0x7e0] sm:$0xff]
    %v291 = vld [vmem:[%s2 + $0x7e8] sm:$0xff]
    %v292 = vld [vmem:[%s2 + $0x7f0] sm:$0xff]
    %v293 = vld [vmem:[%s2 + $0x7f8] sm:$0xff]
    %v294 = vld [vmem:[%s2 + $0x800] sm:$0xff]
    %v295 = vld [vmem:[%s2 + $0x808] sm:$0xff]
    %v296 = vld [vmem:[%s2 + $0x810] sm:$0xff]
    %v297 = vld [vmem:[%s2 + $0x818] sm:$0xff]
    %v298 = vld [vmem:[%s2 + $0x820] sm:$0xff]
    %v299 = vld [vmem:[%s2 + $0x828] sm:$0xff]
    %v300 = vld [vmem:[%s2 + $0x830] sm:$0xff]
    %v301 = vld [vmem:[%s2 + $0x838] sm:$0xff]
    %v302 = vld [vmem:[%s2 + $0x840] sm:$0xff]
    %v303 = vld [vmem:[%s2 + $0x848] sm:$0xff]
    %v304 = vld [vmem:[%s2 + $0x850] sm:$0xff]
    %v305 = vld [vmem:[%s2 + $0x858] sm:$0xff]
    %v306 = vld [vmem:[%s2 + $0x860] sm:$0xff]
    %v307 = vld [vmem:[%s2 + $0x868] sm:$0xff]
    %v308 = vld [vmem:[%s2 + $0x870] sm:$0xff]
    %v309 = vld [vmem:[%s2 + $0x878] sm:$0xff]
    %v310 = vld [vmem:[%s2 + $0x880] sm:$0xff]
    %v311 = vld [vmem:[%s2 + $0x888] sm:$0xff]
    %v312 = vld [vmem:[%s2 + $0x890] sm:$0xff]
    %v313 = vld [vmem:[%s2 + $0x898] sm:$0xff]
    %v314 = vld [vmem:[%s2 + $0x8a0] sm:$0xff]
    %v315 = vld [vmem:[%s2 + $0x8a8] sm:$0xff]
    %v316 = vld [vmem:[%s2 + $0x8b0] sm:$0xff]
    %v317 = vld [vmem:[%s2 + $0x8b8] sm:$0xff]
    %v318 = vld [vmem:[%s2 + $0x8c0] sm:$0xff]
    %v319 = vld [vmem:[%s2 + $0x8c8] sm:$0xff]
    %v320 = vld [vmem:[%s2 + $0x8d0] sm:$0xff]
    %v321 = vld [vmem:[%s2 + $0x8d8] sm:$0xff]
    %v322 = vld [vmem:[%s2 + $0x8e0] sm:$0xff]
    %v323 = vld [vmem:[%s2 + $0x8e8] sm:$0xff]
    %v324 = vld [vmem:[%s2 + $0x8f0] sm:$0xff]
    %v325 = vld [vmem:[%s2 + $0x8f8] sm:$0xff]
    %v326 = vld [vmem:[%s2 + $0x900] sm:$0xff]
    %v327 = vld [vmem:[%s2 + $0x908] sm:$0xff]
    %v328 = vld [vmem:[%s2 + $0x910] sm:$0xff]
    %v329 = vld [vmem:[%s2 + $0x918] sm:$0xff]
    %v330 = vld [vmem:[%s2 + $0x920] sm:$0xff]
    %v331 = vld [vmem:[%s2 + $0x928] sm:$0xff]
    %v332 = vld [vmem:[%s2 + $0x930] sm:$0xff]
    %v333 = vld [vmem:[%s2 + $0x938] sm:$0xff]
    %v334 = vld [vmem:[%s2 + $0x940] sm:$0xff]
    %v335 = vld [vmem:[%s2 + $0x948] sm:$0xff]
    %v336 = vld [vmem:[%s2 + $0x950] sm:$0xff]
    %v337 = vld [vmem:[%s2 + $0x958] sm:$0xff]
    %v338 = vld [vmem:[%s2 + $0x960] sm:$0xff]
    %v339 = vld [vmem:[%s2 + $0x968] sm:$0xff]
    %v340 = vld [vmem:[%s2 + $0x970] sm:$0xff]
    %v341 = vld [vmem:[%s2 + $0x978] sm:$0xff]
    %v342 = vld [vmem:[%s2 + $0x980] sm:$0xff]
    %v343 = vld [vmem:[%s2 + $0x988] sm:$0xff]
    %v344 = vld [vmem:[%s2 + $0x990] sm:$0xff]
    %v345 = vld [vmem:[%s2 + $0x998] sm:$0xff]
    %v346 = vld [vmem:[%s2 + $0x9a0] sm:$0xff]
    %v347 = vld [vmem:[%s2 + $0x9a8] sm:$0xff]
    %v348 = vld [vmem:[%s2 + $0x9b0] sm:$0xff]
    %v349 = vld [vmem:[%s2 + $0x9b8] sm:$0xff]
    %v350 = vld [vmem:[%s2 + $0x9c0] sm:$0xff]
    %v351 = vld [vmem:[%s2 + $0x9c8] sm:$0xff]
    %v352 = vld [vmem:[%s2 + $0x9d0] sm:$0xff]
    %v353 = vld [vmem:[%s2 + $0x9d8] sm:$0xff]
    %v354 = vld [vmem:[%s2 + $0x9e0] sm:$0xff]
    %v355 = vld [vmem:[%s2 + $0x9e8] sm:$0xff]
    %v356 = vld [vmem:[%s2 + $0x9f0] sm:$0xff]
    %v357 = vld [vmem:[%s2 + $0x9f8] sm:$0xff]
    %v358 = vld [vmem:[%s2 + $0xa00] sm:$0xff]
    %v359 = vld [vmem:[%s2 + $0xa08] sm:$0xff]
    %v360 = vld [vmem:[%s2 + $0xa10] sm:$0xff]
    %v361 = vld [vmem:[%s2 + $0xa18] sm:$0xff]
    %v362 = vld [vmem:[%s2 + $0xa20] sm:$0xff]
    %v363 = vld [vmem:[%s2 + $0xa28] sm:$0xff]
    %v364 = vld [vmem:[%s2 + $0xa30] sm:$0xff]
    %v365 = vld [vmem:[%s2 + $0xa38] sm:$0xff]
    %v366 = vld [vmem:[%s2 + $0xa40] sm:$0xff]
    %v367 = vld [vmem:[%s2 + $0xa48] sm:$0xff]
    %v368 = vld [vmem:[%s2 + $0xa50] sm:$0xff]
    %v369 = vld [vmem:[%s2 + $0xa58] sm:$0xff]
    %v370 = vld [vmem:[%s2 + $0xa60] sm:$0xff]
    %v371 = vld [vmem:[%s2 + $0xa68] sm:$0xff]
    %v372 = vld [vmem:[%s2 + $0xa70] sm:$0xff]
    %v373 = vld [vmem:[%s2 + $0xa78] sm:$0xff]
    %v374 = vld [vmem:[%s2 + $0xa80] sm:$0xff]
    %v375 = vld [vmem:[%s2 + $0xa88] sm:$0xff]
    %v376 = vld [vmem:[%s2 + $0xa90] sm:$0xff]
    %v377 = vld [vmem:[%s2 + $0xa98] sm:$0xff]
    %v378 = vld [vmem:[%s2 + $0xaa0] sm:$0xff]
    %v379 = vld [vmem:[%s2 + $0xaa8] sm:$0xff]
    %v380 = vld [vmem:[%s2 + $0xab0] sm:$0xff]
    %v381 = vld [vmem:[%s2 + $0xab8] sm:$0xff]
    %v382 = vld [vmem:[%s2 + $0xac0] sm:$0xff]
    %v383 = vld [vmem:[%s2 + $0xac8] sm:$0xff]
    %v384 = vld [vmem:[%s2 + $0xad0] sm:$0xff]
    %v385 = vld [vmem:[%s2 + $0xad8] sm:$0xff]
    %v386 = vld [vmem:[%s2 + $0xae0] sm:$0xff]
    %v387 = vld [vmem:[%s2 + $0xae8] sm:$0xff]
    %v388 = vld [vmem:[%s2 + $0xaf0] sm:$0xff]
    %v389 = vld [vmem:[%s2 + $0xaf8] sm:$0xff]
    %v390 = vld [vmem:[%s2 + $0xb00] sm:$0xff]
    %v391 = vld [vmem:[%s2 + $0xb08] sm:$0xff]
    %v392 = vld [vmem:[%s2 + $0xb10] sm:$0xff]
    %v393 = vld [vmem:[%s2 + $0xb18] sm:$0xff]
    %v394 = vld [vmem:[%s2 + $0xb20] sm:$0xff]
    %v395 = vld [vmem:[%s2 + $0xb28] sm:$0xff]
    %v396 = vld [vmem:[%s2 + $0xb30] sm:$0xff]
    %v397 = vld [vmem:[%s2 + $0xb38] sm:$0xff]
    %v398 = vld [vmem:[%s2 + $0xb40] sm:$0xff]
    %v399 = vld [vmem:[%s2 + $0xb48] sm:$0xff]
    %v400 = vld [vmem:[%s2 + $0xb50] sm:$0xff]
    %v401 = vld [vmem:[%s2 + $0xb58] sm:$0xff]
    %v402 = vld [vmem:[%s2 + $0xb60] sm:$0xff]
    %v403 = vld [vmem:[%s2 + $0xb68] sm:$0xff]
    %v404 = vld [vmem:[%s2 + $0xb70] sm:$0xff]
    %v405 = vld [vmem:[%s2 + $0xb78] sm:$0xff]
    %v406 = vld [vmem:[%s2 + $0xb80] sm:$0xff]
    %v407 = vld [vmem:[%s2 + $0xb88] sm:$0xff]
    %v408 = vld [vmem:[%s2 + $0xb90] sm:$0xff]
    %v409 = vld [vmem:[%s2 + $0xb98] sm:$0xff]
    %v410 = vld [vmem:[%s2 + $0xba0] sm:$0xff]
    %v411 = vld [vmem:[%s2 + $0xba8] sm:$0xff]
    %v412 = vld [vmem:[%s2 + $0xbb0] sm:$0xff]
    %v413 = vld [vmem:[%s2 + $0xbb8] sm:$0xff]
    %v414 = vld [vmem:[%s2 + $0xbc0] sm:$0xff]
    %v415 = vld [vmem:[%s2 + $0xbc8] sm:$0xff]
    %v416 = vld [vmem:[%s2 + $0xbd0] sm:$0x3]
    %v417 = vld [vmem:[%s2 + $0xbd8] sm:$0x3]
    %v418 = vld [vmem:[%s2 + $0xbe0] sm:$0x3]
    %v419 = vld [vmem:[%s2 + $0xbe8] sm:$0x3]
    %v420 = vld [vmem:[%s2 + $0xbf0] sm:$0x3]
    %v421 = vld [vmem:[%s2 + $0xbf8] sm:$0x3]
    %v422 = vld [vmem:[%s2 + $0xc00] sm:$0x3]
    %v423 = vld [vmem:[%s2 + $0xc08] sm:$0x3]
    %v424 = vld [vmem:[%s2 + $0xc10] sm:$0x3]
    %v425 = vld [vmem:[%s2 + $0xc18] sm:$0x3]
    %v426 = vld [vmem:[%s2 + $0xc20] sm:$0x3]
    %v427 = vld [vmem:[%s2 + $0xc28] sm:$0x3]
    %v428 = vld [vmem:[%s2 + $0xc30] sm:$0x3]
    %v429 = vld [vmem:[%s2 + $0xc38] sm:$0x3]
    %v430 = vld [vmem:[%s2 + $0xc40] sm:$0x3]
    %v431 = vld [vmem:[%s2 + $0xc48] sm:$0x3]
    %v432 = vld [vmem:[%s2 + $0xc50] sm:$0x3]
    %v433 = vld [vmem:[%s2 + $0xc58] sm:$0x3]
    %v434 = vld [vmem:[%s2 + $0xc60] sm:$0x3]
    %v435 = vld [vmem:[%s2 + $0xc68] sm:$0x3]
    %v436 = vld [vmem:[%s2 + $0xc70] sm:$0x3]
    %vm437 = vcmask 146432
    %v439 = vsel %vm437, %v37, 0
    %vm441 = vcmask 1041408
    %v443 = vsel %vm441, %v416, 0
    %v446 = vsel %vm441, %v417, 0
    %v449 = vsel %vm441, %v418, 0
    %v452 = vsel %vm441, %v419, 0
    %v455 = vsel %vm441, %v420, 0
    %v458 = vsel %vm441, %v421, 0
    %v461 = vsel %vm441, %v422, 0
    %v464 = vsel %vm441, %v423, 0
    %v467 = vsel %vm441, %v424, 0
    %v470 = vsel %vm441, %v425, 0
    %v473 = vsel %vm441, %v426, 0
    %v476 = vsel %vm441, %v427, 0
    %v479 = vsel %vm441, %v428, 0
    %v482 = vsel %vm441, %v429, 0
    %v485 = vsel %vm441, %v430, 0
    %v488 = vsel %vm441, %v431, 0
    %v491 = vsel %vm441, %v432, 0
    %v494 = vsel %vm441, %v433, 0
    %v497 = vsel %vm441, %v434, 0
    %v500 = vsel %vm441, %v435, 0
    %v503 = vsel %vm441, %v436, 0
    %505 = vmatprep.subr.mxu0 %v354
    %506 = vmatpush1.msra.mxu0 %v353
    %507 = vmatprep.subr.mxu0 %v333
    %508 = vmatpush1.msra.mxu0 %v332
    %509 = vmatprep.subr.mxu0 %v312
    %510 = vmatpush1.msra.mxu0 %v311
    %511 = vmatprep.subr.mxu0 %v291
    %512 = vmatpush1.msra.mxu0 %v290
    %513 = vmatprep.subr.mxu0 %v270
    %514 = vmatpush1.msra.mxu0 %v269
    %515 = vmatprep.subr.mxu0 %v249
    %516 = vmatpush1.msra.mxu0 %v248
    %517 = vmatprep.subr.mxu0 %v228
    %518 = vmatpush1.msra.mxu0 %v227
    %519 = vmatprep.subr.mxu0 %v207
    %520 = vmatpush1.msra.mxu0 %v206
    %521 = vmatprep.subr.mxu0 %v186
    %522 = vmatpush1.msra.mxu0 %v185
    %523 = vmatprep.subr.mxu0 %v165
    %524 = vmatpush1.msra.mxu0 %v164
    %525 = vmatprep.subr.mxu0 %v144
    %526 = vmatpush1.msra.mxu0 %v143
    %527 = vmatprep.subr.mxu0 %v123
    %528 = vmatpush1.msra.mxu0 %v122
    %529 = vmatprep.subr.mxu0 %v102
    %530 = vmatpush1.msra.mxu0 %v101
    %531 = vmatprep.subr.mxu0 %v81
    %532 = vmatpush1.msra.mxu0 %v80
    %533 = vmatprep.subr.mxu0 %v60
    %534 = vmatpush1.msra.mxu0 %v59
    %535 = vmatprep.subr.mxu0 %v39
    %536 = vmatpush1.msra.mxu0 %v38
    %537 = vmatprep.subr.mxu0 0.0
    %538 = vmatpush2.msra.mxu0 0.0
    %539 = vmatprep.subr.mxu0 0.0
    %540 = vmatpush2.msra.mxu0 0.0
    %541 = vmatprep.subr.mxu0 0.0
    %542 = vmatpush2.msra.mxu0 0.0
    %543 = vmatprep.subr.mxu0 0.0
    %544 = vmatpush2.msra.mxu0 0.0
    %545 = vmatprep.subr.mxu0 0.0
    %546 = vmatpush2.msra.mxu0 0.0
    %547 = vmatprep.subr.mxu0 0.0
    %548 = vmatpush2.msra.mxu0 0.0
    %549 = vmatprep.subr.mxu0 0.0
    %550 = vmatpush2.msra.mxu0 0.0
    %551 = vmatprep.subr.mxu0 0.0
    %552 = vmatpush2.msra.mxu0 0.0
    %553 = vmatprep.subr.mxu0 0.0
    %554 = vmatpush2.msra.mxu0 0.0
    %555 = vmatprep.subr.mxu0 0.0
    %556 = vmatpush2.msra.mxu0 0.0
    %557 = vmatprep.subr.mxu0 0.0
    %558 = vmatpush2.msra.mxu0 0.0
    %559 = vmatprep.subr.mxu0 0.0
    %560 = vmatpush2.msra.mxu0 0.0
    %561 = vmatprep.subr.mxu0 0.0
    %562 = vmatpush2.msra.mxu0 0.0
    %563 = vmatprep.subr.mxu0 %v446
    %564 = vmatpush2.msra.mxu0 %v443
    %565 = vmatprep.subr.mxu0 %v396
    %566 = vmatpush2.msra.mxu0 %v395
    %567 = vmatprep.subr.mxu0 %v375
    %568 = vmatpush2.msra.mxu0 %v374
    %569 = vmatprep.mubr.f32.mxu0 %v439
    %570 = vmatmul.mubr.f32.gmra.mxu0 %v36
    %v571 = vpop.f32.mrf.mxu0
    %v572 = vadd.f32 0.0, %v571
    %v573 = vpop.f32.mrf.mxu0
    %v574 = vadd.f32 0.0, %v573
    %575 = vdwg.mxu0
    %576 = vmatprep.subr.mxu0 %v356
    %577 = vmatpush1.msra.mxu0 %v355
    %578 = vmatprep.subr.mxu0 %v335
    %579 = vmatpush1.msra.mxu0 %v334
    %580 = vmatprep.subr.mxu0 %v314
    %581 = vmatpush1.msra.mxu0 %v313
    %582 = vmatprep.subr.mxu0 %v293
    %583 = vmatpush1.msra.mxu0 %v292
    %584 = vmatprep.subr.mxu0 %v272
    %585 = vmatpush1.msra.mxu0 %v271
    %586 = vmatprep.subr.mxu0 %v251
    %587 = vmatpush1.msra.mxu0 %v250
    %588 = vmatprep.subr.mxu0 %v230
    %589 = vmatpush1.msra.mxu0 %v229
    %590 = vmatprep.subr.mxu0 %v209
    %591 = vmatpush1.msra.mxu0 %v208
    %592 = vmatprep.subr.mxu0 %v188
    %593 = vmatpush1.msra.mxu0 %v187
    %594 = vmatprep.subr.mxu0 %v167
    %595 = vmatpush1.msra.mxu0 %v166
    %596 = vmatprep.subr.mxu0 %v146
    %597 = vmatpush1.msra.mxu0 %v145
    %598 = vmatprep.subr.mxu0 %v125
    %599 = vmatpush1.msra.mxu0 %v124
    %600 = vmatprep.subr.mxu0 %v104
    %601 = vmatpush1.msra.mxu0 %v103
    %602 = vmatprep.subr.mxu0 %v83
    %603 = vmatpush1.msra.mxu0 %v82
    %604 = vmatprep.subr.mxu0 %v62
    %605 = vmatpush1.msra.mxu0 %v61
    %606 = vmatprep.subr.mxu0 %v41
    %607 = vmatpush1.msra.mxu0 %v40
    %608 = vmatprep.subr.mxu0 0.0
    %609 = vmatpush2.msra.mxu0 0.0
    %610 = vmatprep.subr.mxu0 0.0
    %611 = vmatpush2.msra.mxu0 0.0
    %612 = vmatprep.subr.mxu0 0.0
    %613 = vmatpush2.msra.mxu0 0.0
    %614 = vmatprep.subr.mxu0 0.0
    %615 = vmatpush2.msra.mxu0 0.0
    %616 = vmatprep.subr.mxu0 0.0
    %617 = vmatpush2.msra.mxu0 0.0
    %618 = vmatprep.subr.mxu0 0.0
    %619 = vmatpush2.msra.mxu0 0.0
    %620 = vmatprep.subr.mxu0 0.0
    %621 = vmatpush2.msra.mxu0 0.0
    %622 = vmatprep.subr.mxu0 0.0
    %623 = vmatpush2.msra.mxu0 0.0
    %624 = vmatprep.subr.mxu0 0.0
    %625 = vmatpush2.msra.mxu0 0.0
    %626 = vmatprep.subr.mxu0 0.0
    %627 = vmatpush2.msra.mxu0 0.0
    %628 = vmatprep.subr.mxu0 0.0
    %629 = vmatpush2.msra.mxu0 0.0
    %630 = vmatprep.subr.mxu0 0.0
    %631 = vmatpush2.msra.mxu0 0.0
    %632 = vmatprep.subr.mxu0 0.0
    %633 = vmatpush2.msra.mxu0 0.0
    %634 = vmatprep.subr.mxu0 %v452
    %635 = vmatpush2.msra.mxu0 %v449
    %636 = vmatprep.subr.mxu0 %v398
    %637 = vmatpush2.msra.mxu0 %v397
    %638 = vmatprep.subr.mxu0 %v377
    %639 = vmatpush2.msra.mxu0 %v376
    %640 = vmatprep.mubr.f32.mxu0 %v439
    %641 = vmatmul.mubr.f32.gmra.mxu0 %v36
    %v642 = vpop.f32.mrf.mxu0
    %v643 = vadd.f32 0.0, %v642
    %v644 = vpop.f32.mrf.mxu0
    %v645 = vadd.f32 0.0, %v644
    %646 = vdwg.mxu0
    %647 = vmatprep.subr.mxu0 %v358
    %648 = vmatpush1.msra.mxu0 %v357
    %649 = vmatprep.subr.mxu0 %v337
    %650 = vmatpush1.msra.mxu0 %v336
    %651 = vmatprep.subr.mxu0 %v316
    %652 = vmatpush1.msra.mxu0 %v315
    %653 = vmatprep.subr.mxu0 %v295
    %654 = vmatpush1.msra.mxu0 %v294
    %655 = vmatprep.subr.mxu0 %v274
    %656 = vmatpush1.msra.mxu0 %v273
    %657 = vmatprep.subr.mxu0 %v253
    %658 = vmatpush1.msra.mxu0 %v252
    %659 = vmatprep.subr.mxu0 %v232
    %660 = vmatpush1.msra.mxu0 %v231
    %661 = vmatprep.subr.mxu0 %v211
    %662 = vmatpush1.msra.mxu0 %v210
    %663 = vmatprep.subr.mxu0 %v190
    %664 = vmatpush1.msra.mxu0 %v189
    %665 = vmatprep.subr.mxu0 %v169
    %666 = vmatpush1.msra.mxu0 %v168
    %667 = vmatprep.subr.mxu0 %v148
    %668 = vmatpush1.msra.mxu0 %v147
    %669 = vmatprep.subr.mxu0 %v127
    %670 = vmatpush1.msra.mxu0 %v126
    %671 = vmatprep.subr.mxu0 %v106
    %672 = vmatpush1.msra.mxu0 %v105
    %673 = vmatprep.subr.mxu0 %v85
    %674 = vmatpush1.msra.mxu0 %v84
    %675 = vmatprep.subr.mxu0 %v64
    %676 = vmatpush1.msra.mxu0 %v63
    %677 = vmatprep.subr.mxu0 %v43
    %678 = vmatpush1.msra.mxu0 %v42
    %679 = vmatprep.subr.mxu0 0.0
    %680 = vmatpush2.msra.mxu0 0.0
    %681 = vmatprep.subr.mxu0 0.0
    %682 = vmatpush2.msra.mxu0 0.0
    %683 = vmatprep.subr.mxu0 0.0
    %684 = vmatpush2.msra.mxu0 0.0
    %685 = vmatprep.subr.mxu0 0.0
    %686 = vmatpush2.msra.mxu0 0.0
    %687 = vmatprep.subr.mxu0 0.0
    %688 = vmatpush2.msra.mxu0 0.0
    %689 = vmatprep.subr.mxu0 0.0
    %690 = vmatpush2.msra.mxu0 0.0
    %691 = vmatprep.subr.mxu0 0.0
    %692 = vmatpush2.msra.mxu0 0.0
    %693 = vmatprep.subr.mxu0 0.0
    %694 = vmatpush2.msra.mxu0 0.0
    %695 = vmatprep.subr.mxu0 0.0
    %696 = vmatpush2.msra.mxu0 0.0
    %697 = vmatprep.subr.mxu0 0.0
    %698 = vmatpush2.msra.mxu0 0.0
    %699 = vmatprep.subr.mxu0 0.0
    %700 = vmatpush2.msra.mxu0 0.0
    %701 = vmatprep.subr.mxu0 0.0
    %702 = vmatpush2.msra.mxu0 0.0
    %703 = vmatprep.subr.mxu0 0.0
    %704 = vmatpush2.msra.mxu0 0.0
    %705 = vmatprep.subr.mxu0 %v458
    %706 = vmatpush2.msra.mxu0 %v455
    %707 = vmatprep.subr.mxu0 %v400
    %708 = vmatpush2.msra.mxu0 %v399
    %709 = vmatprep.subr.mxu0 %v379
    %710 = vmatpush2.msra.mxu0 %v378
    %711 = vmatprep.mubr.f32.mxu0 %v439
    %712 = vmatmul.mubr.f32.gmra.mxu0 %v36
    %v713 = vpop.f32.mrf.mxu0
    %v714 = vadd.f32 0.0, %v713
    %v715 = vpop.f32.mrf.mxu0
    %v716 = vadd.f32 0.0, %v715
    %717 = vdwg.mxu0
    %718 = vmatprep.subr.mxu0 %v360
    %719 = vmatpush1.msra.mxu0 %v359
    %720 = vmatprep.subr.mxu0 %v339
    %721 = vmatpush1.msra.mxu0 %v338
    %722 = vmatprep.subr.mxu0 %v318
    %723 = vmatpush1.msra.mxu0 %v317
    %724 = vmatprep.subr.mxu0 %v297
    %725 = vmatpush1.msra.mxu0 %v296
    %726 = vmatprep.subr.mxu0 %v276
    %727 = vmatpush1.msra.mxu0 %v275
    %728 = vmatprep.subr.mxu0 %v255
    %729 = vmatpush1.msra.mxu0 %v254
    %730 = vmatprep.subr.mxu0 %v234
    %731 = vmatpush1.msra.mxu0 %v233
    %732 = vmatprep.subr.mxu0 %v213
    %733 = vmatpush1.msra.mxu0 %v212
    %734 = vmatprep.subr.mxu0 %v192
    %735 = vmatpush1.msra.mxu0 %v191
    %736 = vmatprep.subr.mxu0 %v171
    %737 = vmatpush1.msra.mxu0 %v170
    %738 = vmatprep.subr.mxu0 %v150
    %739 = vmatpush1.msra.mxu0 %v149
    %740 = vmatprep.subr.mxu0 %v129
    %741 = vmatpush1.msra.mxu0 %v128
    %742 = vmatprep.subr.mxu0 %v108
    %743 = vmatpush1.msra.mxu0 %v107
    %744 = vmatprep.subr.mxu0 %v87
    %745 = vmatpush1.msra.mxu0 %v86
    %746 = vmatprep.subr.mxu0 %v66
    %747 = vmatpush1.msra.mxu0 %v65
    %748 = vmatprep.subr.mxu0 %v45
    %749 = vmatpush1.msra.mxu0 %v44
    %750 = vmatprep.subr.mxu0 0.0
    %751 = vmatpush2.msra.mxu0 0.0
    %752 = vmatprep.subr.mxu0 0.0
    %753 = vmatpush2.msra.mxu0 0.0
    %754 = vmatprep.subr.mxu0 0.0
    %755 = vmatpush2.msra.mxu0 0.0
    %756 = vmatprep.subr.mxu0 0.0
    %757 = vmatpush2.msra.mxu0 0.0
    %758 = vmatprep.subr.mxu0 0.0
    %759 = vmatpush2.msra.mxu0 0.0
    %760 = vmatprep.subr.mxu0 0.0
    %761 = vmatpush2.msra.mxu0 0.0
    %762 = vmatprep.subr.mxu0 0.0
    %763 = vmatpush2.msra.mxu0 0.0
    %764 = vmatprep.subr.mxu0 0.0
    %765 = vmatpush2.msra.mxu0 0.0
    %766 = vmatprep.subr.mxu0 0.0
    %767 = vmatpush2.msra.mxu0 0.0
    %768 = vmatprep.subr.mxu0 0.0
    %769 = vmatpush2.msra.mxu0 0.0
    %770 = vmatprep.subr.mxu0 0.0
    %771 = vmatpush2.msra.mxu0 0.0
    %772 = vmatprep.subr.mxu0 0.0
    %773 = vmatpush2.msra.mxu0 0.0
    %774 = vmatprep.subr.mxu0 0.0
    %775 = vmatpush2.msra.mxu0 0.0
    %776 = vmatprep.subr.mxu0 %v464
    %777 = vmatpush2.msra.mxu0 %v461
    %778 = vmatprep.subr.mxu0 %v402
    %779 = vmatpush2.msra.mxu0 %v401
    %780 = vmatprep.subr.mxu0 %v381
    %781 = vmatpush2.msra.mxu0 %v380
    %782 = vmatprep.mubr.f32.mxu0 %v439
    %783 = vmatmul.mubr.f32.gmra.mxu0 %v36
    %v784 = vpop.f32.mrf.mxu0
    %v785 = vadd.f32 0.0, %v784
    %v786 = vpop.f32.mrf.mxu0
    %v787 = vadd.f32 0.0, %v786
    %788 = vdwg.mxu0
    %789 = vmatprep.subr.mxu0 %v362
    %790 = vmatpush1.msra.mxu0 %v361
    %791 = vmatprep.subr.mxu0 %v341
    %792 = vmatpush1.msra.mxu0 %v340
    %793 = vmatprep.subr.mxu0 %v320
    %794 = vmatpush1.msra.mxu0 %v319
    %795 = vmatprep.subr.mxu0 %v299
    %796 = vmatpush1.msra.mxu0 %v298
    %797 = vmatprep.subr.mxu0 %v278
    %798 = vmatpush1.msra.mxu0 %v277
    %799 = vmatprep.subr.mxu0 %v257
    %800 = vmatpush1.msra.mxu0 %v256
    %801 = vmatprep.subr.mxu0 %v236
    %802 = vmatpush1.msra.mxu0 %v235
    %803 = vmatprep.subr.mxu0 %v215
    %804 = vmatpush1.msra.mxu0 %v214
    %805 = vmatprep.subr.mxu0 %v194
    %806 = vmatpush1.msra.mxu0 %v193
    %807 = vmatprep.subr.mxu0 %v173
    %808 = vmatpush1.msra.mxu0 %v172
    %809 = vmatprep.subr.mxu0 %v152
    %810 = vmatpush1.msra.mxu0 %v151
    %811 = vmatprep.subr.mxu0 %v131
    %812 = vmatpush1.msra.mxu0 %v130
    %813 = vmatprep.subr.mxu0 %v110
    %814 = vmatpush1.msra.mxu0 %v109
    %815 = vmatprep.subr.mxu0 %v89
    %816 = vmatpush1.msra.mxu0 %v88
    %817 = vmatprep.subr.mxu0 %v68
    %818 = vmatpush1.msra.mxu0 %v67
    %819 = vmatprep.subr.mxu0 %v47
    %820 = vmatpush1.msra.mxu0 %v46
    %821 = vmatprep.subr.mxu0 0.0
    %822 = vmatpush2.msra.mxu0 0.0
    %823 = vmatprep.subr.mxu0 0.0
    %824 = vmatpush2.msra.mxu0 0.0
    %825 = vmatprep.subr.mxu0 0.0
    %826 = vmatpush2.msra.mxu0 0.0
    %827 = vmatprep.subr.mxu0 0.0
    %828 = vmatpush2.msra.mxu0 0.0
    %829 = vmatprep.subr.mxu0 0.0
    %830 = vmatpush2.msra.mxu0 0.0
    %831 = vmatprep.subr.mxu0 0.0
    %832 = vmatpush2.msra.mxu0 0.0
    %833 = vmatprep.subr.mxu0 0.0
    %834 = vmatpush2.msra.mxu0 0.0
    %835 = vmatprep.subr.mxu0 0.0
    %836 = vmatpush2.msra.mxu0 0.0
    %837 = vmatprep.subr.mxu0 0.0
    %838 = vmatpush2.msra.mxu0 0.0
    %839 = vmatprep.subr.mxu0 0.0
    %840 = vmatpush2.msra.mxu0 0.0
    %841 = vmatprep.subr.mxu0 0.0
    %842 = vmatpush2.msra.mxu0 0.0
    %843 = vmatprep.subr.mxu0 0.0
    %844 = vmatpush2.msra.mxu0 0.0
    %845 = vmatprep.subr.mxu0 0.0
    %846 = vmatpush2.msra.mxu0 0.0
    %847 = vmatprep.subr.mxu0 %v470
    %848 = vmatpush2.msra.mxu0 %v467
    %849 = vmatprep.subr.mxu0 %v404
    %850 = vmatpush2.msra.mxu0 %v403
    %851 = vmatprep.subr.mxu0 %v383
    %852 = vmatpush2.msra.mxu0 %v382
    %853 = vmatprep.mubr.f32.mxu0 %v439
    %854 = vmatmul.mubr.f32.gmra.mxu0 %v36
    %v855 = vpop.f32.mrf.mxu0
    %v856 = vadd.f32 0.0, %v855
    %v857 = vpop.f32.mrf.mxu0
    %v858 = vadd.f32 0.0, %v857
    %859 = vdwg.mxu0
    %860 = vmatprep.subr.mxu0 %v364
    %861 = vmatpush1.msra.mxu0 %v363
    %862 = vmatprep.subr.mxu0 %v343
    %863 = vmatpush1.msra.mxu0 %v342
    %864 = vmatprep.subr.mxu0 %v322
    %865 = vmatpush1.msra.mxu0 %v321
    %866 = vmatprep.subr.mxu0 %v301
    %867 = vmatpush1.msra.mxu0 %v300
    %868 = vmatprep.subr.mxu0 %v280
    %869 = vmatpush1.msra.mxu0 %v279
    %870 = vmatprep.subr.mxu0 %v259
    %871 = vmatpush1.msra.mxu0 %v258
    %872 = vmatprep.subr.mxu0 %v238
    %873 = vmatpush1.msra.mxu0 %v237
    %874 = vmatprep.subr.mxu0 %v217
    %875 = vmatpush1.msra.mxu0 %v216
    %876 = vmatprep.subr.mxu0 %v196
    %877 = vmatpush1.msra.mxu0 %v195
    %878 = vmatprep.subr.mxu0 %v175
    %879 = vmatpush1.msra.mxu0 %v174
    %880 = vmatprep.subr.mxu0 %v154
    %881 = vmatpush1.msra.mxu0 %v153
    %882 = vmatprep.subr.mxu0 %v133
    %883 = vmatpush1.msra.mxu0 %v132
    %884 = vmatprep.subr.mxu0 %v112
    %885 = vmatpush1.msra.mxu0 %v111
    %886 = vmatprep.subr.mxu0 %v91
    %887 = vmatpush1.msra.mxu0 %v90
    %888 = vmatprep.subr.mxu0 %v70
    %889 = vmatpush1.msra.mxu0 %v69
    %890 = vmatprep.subr.mxu0 %v49
    %891 = vmatpush1.msra.mxu0 %v48
    %892 = vmatprep.subr.mxu0 0.0
    %893 = vmatpush2.msra.mxu0 0.0
    %894 = vmatprep.subr.mxu0 0.0
    %895 = vmatpush2.msra.mxu0 0.0
    %896 = vmatprep.subr.mxu0 0.0
    %897 = vmatpush2.msra.mxu0 0.0
    %898 = vmatprep.subr.mxu0 0.0
    %899 = vmatpush2.msra.mxu0 0.0
    %900 = vmatprep.subr.mxu0 0.0
    %901 = vmatpush2.msra.mxu0 0.0
    %902 = vmatprep.subr.mxu0 0.0
    %903 = vmatpush2.msra.mxu0 0.0
    %904 = vmatprep.subr.mxu0 0.0
    %905 = vmatpush2.msra.mxu0 0.0
    %906 = vmatprep.subr.mxu0 0.0
    %907 = vmatpush2.msra.mxu0 0.0
    %908 = vmatprep.subr.mxu0 0.0
    %909 = vmatpush2.msra.mxu0 0.0
    %910 = vmatprep.subr.mxu0 0.0
    %911 = vmatpush2.msra.mxu0 0.0
    %912 = vmatprep.subr.mxu0 0.0
    %913 = vmatpush2.msra.mxu0 0.0
    %914 = vmatprep.subr.mxu0 0.0
    %915 = vmatpush2.msra.mxu0 0.0
    %916 = vmatprep.subr.mxu0 0.0
    %917 = vmatpush2.msra.mxu0 0.0
    %918 = vmatprep.subr.mxu0 %v476
    %919 = vmatpush2.msra.mxu0 %v473
    %920 = vmatprep.subr.mxu0 %v406
    %921 = vmatpush2.msra.mxu0 %v405
    %922 = vmatprep.subr.mxu0 %v385
    %923 = vmatpush2.msra.mxu0 %v384
    %924 = vmatprep.mubr.f32.mxu0 %v439
    %925 = vmatmul.mubr.f32.gmra.mxu0 %v36
    %v926 = vpop.f32.mrf.mxu0
    %v927 = vadd.f32 0.0, %v926
    %v928 = vpop.f32.mrf.mxu0
    %v929 = vadd.f32 0.0, %v928
    %930 = vdwg.mxu0
    %931 = vmatprep.subr.mxu0 %v366
    %932 = vmatpush1.msra.mxu0 %v365
    %933 = vmatprep.subr.mxu0 %v345
    %934 = vmatpush1.msra.mxu0 %v344
    %935 = vmatprep.subr.mxu0 %v324
    %936 = vmatpush1.msra.mxu0 %v323
    %937 = vmatprep.subr.mxu0 %v303
    %938 = vmatpush1.msra.mxu0 %v302
    %939 = vmatprep.subr.mxu0 %v282
    %940 = vmatpush1.msra.mxu0 %v281
    %941 = vmatprep.subr.mxu0 %v261
    %942 = vmatpush1.msra.mxu0 %v260
    %943 = vmatprep.subr.mxu0 %v240
    %944 = vmatpush1.msra.mxu0 %v239
    %945 = vmatprep.subr.mxu0 %v219
    %946 = vmatpush1.msra.mxu0 %v218
    %947 = vmatprep.subr.mxu0 %v198
    %948 = vmatpush1.msra.mxu0 %v197
    %949 = vmatprep.subr.mxu0 %v177
    %950 = vmatpush1.msra.mxu0 %v176
    %951 = vmatprep.subr.mxu0 %v156
    %952 = vmatpush1.msra.mxu0 %v155
    %953 = vmatprep.subr.mxu0 %v135
    %954 = vmatpush1.msra.mxu0 %v134
    %955 = vmatprep.subr.mxu0 %v114
    %956 = vmatpush1.msra.mxu0 %v113
    %957 = vmatprep.subr.mxu0 %v93
    %958 = vmatpush1.msra.mxu0 %v92
    %959 = vmatprep.subr.mxu0 %v72
    %960 = vmatpush1.msra.mxu0 %v71
    %961 = vmatprep.subr.mxu0 %v51
    %962 = vmatpush1.msra.mxu0 %v50
    %963 = vmatprep.subr.mxu0 0.0
    %964 = vmatpush2.msra.mxu0 0.0
    %965 = vmatprep.subr.mxu0 0.0
    %966 = vmatpush2.msra.mxu0 0.0
    %967 = vmatprep.subr.mxu0 0.0
    %968 = vmatpush2.msra.mxu0 0.0
    %969 = vmatprep.subr.mxu0 0.0
    %970 = vmatpush2.msra.mxu0 0.0
    %971 = vmatprep.subr.mxu0 0.0
    %972 = vmatpush2.msra.mxu0 0.0
    %973 = vmatprep.subr.mxu0 0.0
    %974 = vmatpush2.msra.mxu0 0.0
    %975 = vmatprep.subr.mxu0 0.0
    %976 = vmatpush2.msra.mxu0 0.0
    %977 = vmatprep.subr.mxu0 0.0
    %978 = vmatpush2.msra.mxu0 0.0
    %979 = vmatprep.subr.mxu0 0.0
    %980 = vmatpush2.msra.mxu0 0.0
    %981 = vmatprep.subr.mxu0 0.0
    %982 = vmatpush2.msra.mxu0 0.0
    %983 = vmatprep.subr.mxu0 0.0
    %984 = vmatpush2.msra.mxu0 0.0
    %985 = vmatprep.subr.mxu0 0.0
    %986 = vmatpush2.msra.mxu0 0.0
    %987 = vmatprep.subr.mxu0 0.0
    %988 = vmatpush2.msra.mxu0 0.0
    %989 = vmatprep.subr.mxu0 %v482
    %990 = vmatpush2.msra.mxu0 %v479
    %991 = vmatprep.subr.mxu0 %v408
    %992 = vmatpush2.msra.mxu0 %v407
    %993 = vmatprep.subr.mxu0 %v387
    %994 = vmatpush2.msra.mxu0 %v386
    %995 = vmatprep.mubr.f32.mxu0 %v439
    %996 = vmatmul.mubr.f32.gmra.mxu0 %v36
    %v997 = vpop.f32.mrf.mxu0
    %v998 = vadd.f32 0.0, %v997
    %v999 = vpop.f32.mrf.mxu0
    %v1000 = vadd.f32 0.0, %v999
    %1001 = vdwg.mxu0
    %1002 = vmatprep.subr.mxu0 %v368
    %1003 = vmatpush1.msra.mxu0 %v367
    %1004 = vmatprep.subr.mxu0 %v347
    %1005 = vmatpush1.msra.mxu0 %v346
    %1006 = vmatprep.subr.mxu0 %v326
    %1007 = vmatpush1.msra.mxu0 %v325
    %1008 = vmatprep.subr.mxu0 %v305
    %1009 = vmatpush1.msra.mxu0 %v304
    %1010 = vmatprep.subr.mxu0 %v284
    %1011 = vmatpush1.msra.mxu0 %v283
    %1012 = vmatprep.subr.mxu0 %v263
    %1013 = vmatpush1.msra.mxu0 %v262
    %1014 = vmatprep.subr.mxu0 %v242
    %1015 = vmatpush1.msra.mxu0 %v241
    %1016 = vmatprep.subr.mxu0 %v221
    %1017 = vmatpush1.msra.mxu0 %v220
    %1018 = vmatprep.subr.mxu0 %v200
    %1019 = vmatpush1.msra.mxu0 %v199
    %1020 = vmatprep.subr.mxu0 %v179
    %1021 = vmatpush1.msra.mxu0 %v178
    %1022 = vmatprep.subr.mxu0 %v158
    %1023 = vmatpush1.msra.mxu0 %v157
    %1024 = vmatprep.subr.mxu0 %v137
    %1025 = vmatpush1.msra.mxu0 %v136
    %1026 = vmatprep.subr.mxu0 %v116
    %1027 = vmatpush1.msra.mxu0 %v115
    %1028 = vmatprep.subr.mxu0 %v95
    %1029 = vmatpush1.msra.mxu0 %v94
    %1030 = vmatprep.subr.mxu0 %v74
    %1031 = vmatpush1.msra.mxu0 %v73
    %1032 = vmatprep.subr.mxu0 %v53
    %1033 = vmatpush1.msra.mxu0 %v52
    %1034 = vmatprep.subr.mxu0 0.0
    %1035 = vmatpush2.msra.mxu0 0.0
    %1036 = vmatprep.subr.mxu0 0.0
    %1037 = vmatpush2.msra.mxu0 0.0
    %1038 = vmatprep.subr.mxu0 0.0
    %1039 = vmatpush2.msra.mxu0 0.0
    %1040 = vmatprep.subr.mxu0 0.0
    %1041 = vmatpush2.msra.mxu0 0.0
    %1042 = vmatprep.subr.mxu0 0.0
    %1043 = vmatpush2.msra.mxu0 0.0
    %1044 = vmatprep.subr.mxu0 0.0
    %1045 = vmatpush2.msra.mxu0 0.0
    %1046 = vmatprep.subr.mxu0 0.0
    %1047 = vmatpush2.msra.mxu0 0.0
    %1048 = vmatprep.subr.mxu0 0.0
    %1049 = vmatpush2.msra.mxu0 0.0
    %1050 = vmatprep.subr.mxu0 0.0
    %1051 = vmatpush2.msra.mxu0 0.0
    %1052 = vmatprep.subr.mxu0 0.0
    %1053 = vmatpush2.msra.mxu0 0.0
    %1054 = vmatprep.subr.mxu0 0.0
    %1055 = vmatpush2.msra.mxu0 0.0
    %1056 = vmatprep.subr.mxu0 0.0
    %1057 = vmatpush2.msra.mxu0 0.0
    %1058 = vmatprep.subr.mxu0 0.0
    %1059 = vmatpush2.msra.mxu0 0.0
    %1060 = vmatprep.subr.mxu0 %v488
    %1061 = vmatpush2.msra.mxu0 %v485
    %1062 = vmatprep.subr.mxu0 %v410
    %1063 = vmatpush2.msra.mxu0 %v409
    %1064 = vmatprep.subr.mxu0 %v389
    %1065 = vmatpush2.msra.mxu0 %v388
    %1066 = vmatprep.mubr.f32.mxu0 %v439
    %1067 = vmatmul.mubr.f32.gmra.mxu0 %v36
    %v1068 = vpop.f32.mrf.mxu0
    %v1069 = vadd.f32 0.0, %v1068
    %v1070 = vpop.f32.mrf.mxu0
    %v1071 = vadd.f32 0.0, %v1070
    %1072 = vdwg.mxu0
    %1073 = vmatprep.subr.mxu0 %v370
    %1074 = vmatpush1.msra.mxu0 %v369
    %1075 = vmatprep.subr.mxu0 %v349
    %1076 = vmatpush1.msra.mxu0 %v348
    %1077 = vmatprep.subr.mxu0 %v328
    %1078 = vmatpush1.msra.mxu0 %v327
    %1079 = vmatprep.subr.mxu0 %v307
    %1080 = vmatpush1.msra.mxu0 %v306
    %1081 = vmatprep.subr.mxu0 %v286
    %1082 = vmatpush1.msra.mxu0 %v285
    %1083 = vmatprep.subr.mxu0 %v265
    %1084 = vmatpush1.msra.mxu0 %v264
    %1085 = vmatprep.subr.mxu0 %v244
    %1086 = vmatpush1.msra.mxu0 %v243
    %1087 = vmatprep.subr.mxu0 %v223
    %1088 = vmatpush1.msra.mxu0 %v222
    %1089 = vmatprep.subr.mxu0 %v202
    %1090 = vmatpush1.msra.mxu0 %v201
    %1091 = vmatprep.subr.mxu0 %v181
    %1092 = vmatpush1.msra.mxu0 %v180
    %1093 = vmatprep.subr.mxu0 %v160
    %1094 = vmatpush1.msra.mxu0 %v159
    %1095 = vmatprep.subr.mxu0 %v139
    %1096 = vmatpush1.msra.mxu0 %v138
    %1097 = vmatprep.subr.mxu0 %v118
    %1098 = vmatpush1.msra.mxu0 %v117
    %1099 = vmatprep.subr.mxu0 %v97
    %1100 = vmatpush1.msra.mxu0 %v96
    %1101 = vmatprep.subr.mxu0 %v76
    %1102 = vmatpush1.msra.mxu0 %v75
    %1103 = vmatprep.subr.mxu0 %v55
    %1104 = vmatpush1.msra.mxu0 %v54
    %1105 = vmatprep.subr.mxu0 0.0
    %1106 = vmatpush2.msra.mxu0 0.0
    %1107 = vmatprep.subr.mxu0 0.0
    %1108 = vmatpush2.msra.mxu0 0.0
    %1109 = vmatprep.subr.mxu0 0.0
    %1110 = vmatpush2.msra.mxu0 0.0
    %1111 = vmatprep.subr.mxu0 0.0
    %1112 = vmatpush2.msra.mxu0 0.0
    %1113 = vmatprep.subr.mxu0 0.0
    %1114 = vmatpush2.msra.mxu0 0.0
    %1115 = vmatprep.subr.mxu0 0.0
    %1116 = vmatpush2.msra.mxu0 0.0
    %1117 = vmatprep.subr.mxu0 0.0
    %1118 = vmatpush2.msra.mxu0 0.0
    %1119 = vmatprep.subr.mxu0 0.0
    %1120 = vmatpush2.msra.mxu0 0.0
    %1121 = vmatprep.subr.mxu0 0.0
    %1122 = vmatpush2.msra.mxu0 0.0
    %1123 = vmatprep.subr.mxu0 0.0
    %1124 = vmatpush2.msra.mxu0 0.0
    %1125 = vmatprep.subr.mxu0 0.0
    %1126 = vmatpush2.msra.mxu0 0.0
    %1127 = vmatprep.subr.mxu0 0.0
    %1128 = vmatpush2.msra.mxu0 0.0
    %1129 = vmatprep.subr.mxu0 0.0
    %1130 = vmatpush2.msra.mxu0 0.0
    %1131 = vmatprep.subr.mxu0 %v494
    %1132 = vmatpush2.msra.mxu0 %v491
    %1133 = vmatprep.subr.mxu0 %v412
    %1134 = vmatpush2.msra.mxu0 %v411
    %1135 = vmatprep.subr.mxu0 %v391
    %1136 = vmatpush2.msra.mxu0 %v390
    %1137 = vmatprep.mubr.f32.mxu0 %v439
    %1138 = vmatmul.mubr.f32.gmra.mxu0 %v36
    %v1139 = vpop.f32.mrf.mxu0
    %v1140 = vadd.f32 0.0, %v1139
    %v1141 = vpop.f32.mrf.mxu0
    %v1142 = vadd.f32 0.0, %v1141
    %1143 = vdwg.mxu0
    %1144 = vmatprep.subr.mxu0 %v372
    %1145 = vmatpush1.msra.mxu0 %v371
    %1146 = vmatprep.subr.mxu0 %v351
    %1147 = vmatpush1.msra.mxu0 %v350
    %1148 = vmatprep.subr.mxu0 %v330
    %1149 = vmatpush1.msra.mxu0 %v329
    %1150 = vmatprep.subr.mxu0 %v309
    %1151 = vmatpush1.msra.mxu0 %v308
    %1152 = vmatprep.subr.mxu0 %v288
    %1153 = vmatpush1.msra.mxu0 %v287
    %1154 = vmatprep.subr.mxu0 %v267
    %1155 = vmatpush1.msra.mxu0 %v266
    %1156 = vmatprep.subr.mxu0 %v246
    %1157 = vmatpush1.msra.mxu0 %v245
    %1158 = vmatprep.subr.mxu0 %v225
    %1159 = vmatpush1.msra.mxu0 %v224
    %1160 = vmatprep.subr.mxu0 %v204
    %1161 = vmatpush1.msra.mxu0 %v203
    %1162 = vmatprep.subr.mxu0 %v183
    %1163 = vmatpush1.msra.mxu0 %v182
    %1164 = vmatprep.subr.mxu0 %v162
    %1165 = vmatpush1.msra.mxu0 %v161
    %1166 = vmatprep.subr.mxu0 %v141
    %1167 = vmatpush1.msra.mxu0 %v140
    %1168 = vmatprep.subr.mxu0 %v120
    %1169 = vmatpush1.msra.mxu0 %v119
    %1170 = vmatprep.subr.mxu0 %v99
    %1171 = vmatpush1.msra.mxu0 %v98
    %1172 = vmatprep.subr.mxu0 %v78
    %1173 = vmatpush1.msra.mxu0 %v77
    %1174 = vmatprep.subr.mxu0 %v57
    %1175 = vmatpush1.msra.mxu0 %v56
    %1176 = vmatprep.subr.mxu0 0.0
    %1177 = vmatpush2.msra.mxu0 0.0
    %1178 = vmatprep.subr.mxu0 0.0
    %1179 = vmatpush2.msra.mxu0 0.0
    %1180 = vmatprep.subr.mxu0 0.0
    %1181 = vmatpush2.msra.mxu0 0.0
    %1182 = vmatprep.subr.mxu0 0.0
    %1183 = vmatpush2.msra.mxu0 0.0
    %1184 = vmatprep.subr.mxu0 0.0
    %1185 = vmatpush2.msra.mxu0 0.0
    %1186 = vmatprep.subr.mxu0 0.0
    %1187 = vmatpush2.msra.mxu0 0.0
    %1188 = vmatprep.subr.mxu0 0.0
    %1189 = vmatpush2.msra.mxu0 0.0
    %1190 = vmatprep.subr.mxu0 0.0
    %1191 = vmatpush2.msra.mxu0 0.0
    %1192 = vmatprep.subr.mxu0 0.0
    %1193 = vmatpush2.msra.mxu0 0.0
    %1194 = vmatprep.subr.mxu0 0.0
    %1195 = vmatpush2.msra.mxu0 0.0
    %1196 = vmatprep.subr.mxu0 0.0
    %1197 = vmatpush2.msra.mxu0 0.0
    %1198 = vmatprep.subr.mxu0 0.0
    %1199 = vmatpush2.msra.mxu0 0.0
    %1200 = vmatprep.subr.mxu0 0.0
    %1201 = vmatpush2.msra.mxu0 0.0
    %1202 = vmatprep.subr.mxu0 %v500
    %1203 = vmatpush2.msra.mxu0 %v497
    %1204 = vmatprep.subr.mxu0 %v414
    %1205 = vmatpush2.msra.mxu0 %v413
    %1206 = vmatprep.subr.mxu0 %v393
    %1207 = vmatpush2.msra.mxu0 %v392
    %1208 = vmatprep.mubr.f32.mxu0 %v439
    %1209 = vmatmul.mubr.f32.gmra.mxu0 %v36
    %v1210 = vpop.f32.mrf.mxu0
    %v1211 = vadd.f32 0.0, %v1210
    %v1212 = vpop.f32.mrf.mxu0
    %v1213 = vadd.f32 0.0, %v1212
    %1214 = vdwg.mxu0
    %1215 = vmatprep.subr.mxu0 0.0
    %1216 = vmatpush1.msra.mxu0 %v373
    %1217 = vmatprep.subr.mxu0 0.0
    %1218 = vmatpush1.msra.mxu0 %v352
    %1219 = vmatprep.subr.mxu0 0.0
    %1220 = vmatpush1.msra.mxu0 %v331
    %1221 = vmatprep.subr.mxu0 0.0
    %1222 = vmatpush1.msra.mxu0 %v310
    %1223 = vmatprep.subr.mxu0 0.0
    %1224 = vmatpush1.msra.mxu0 %v289
    %1225 = vmatprep.subr.mxu0 0.0
    %1226 = vmatpush1.msra.mxu0 %v268
    %1227 = vmatprep.subr.mxu0 0.0
    %1228 = vmatpush1.msra.mxu0 %v247
    %1229 = vmatprep.subr.mxu0 0.0
    %1230 = vmatpush1.msra.mxu0 %v226
    %1231 = vmatprep.subr.mxu0 0.0
    %1232 = vmatpush1.msra.mxu0 %v205
    %1233 = vmatprep.subr.mxu0 0.0
    %1234 = vmatpush1.msra.mxu0 %v184
    %1235 = vmatprep.subr.mxu0 0.0
    %1236 = vmatpush1.msra.mxu0 %v163
    %1237 = vmatprep.subr.mxu0 0.0
    %1238 = vmatpush1.msra.mxu0 %v142
    %1239 = vmatprep.subr.mxu0 0.0
    %1240 = vmatpush1.msra.mxu0 %v121
    %1241 = vmatprep.subr.mxu0 0.0
    %1242 = vmatpush1.msra.mxu0 %v100
    %1243 = vmatprep.subr.mxu0 0.0
    %1244 = vmatpush1.msra.mxu0 %v79
    %1245 = vmatprep.subr.mxu0 0.0
    %1246 = vmatpush1.msra.mxu0 %v58
    %1247 = vmatprep.subr.mxu0 0.0
    %1248 = vmatpush2.msra.mxu0 0.0
    %1249 = vmatprep.subr.mxu0 0.0
    %1250 = vmatpush2.msra.mxu0 0.0
    %1251 = vmatprep.subr.mxu0 0.0
    %1252 = vmatpush2.msra.mxu0 0.0
    %1253 = vmatprep.subr.mxu0 0.0
    %1254 = vmatpush2.msra.mxu0 0.0
    %1255 = vmatprep.subr.mxu0 0.0
    %1256 = vmatpush2.msra.mxu0 0.0
    %1257 = vmatprep.subr.mxu0 0.0
    %1258 = vmatpush2.msra.mxu0 0.0
    %1259 = vmatprep.subr.mxu0 0.0
    %1260 = vmatpush2.msra.mxu0 0.0
    %1261 = vmatprep.subr.mxu0 0.0
    %1262 = vmatpush2.msra.mxu0 0.0
    %1263 = vmatprep.subr.mxu0 0.0
    %1264 = vmatpush2.msra.mxu0 0.0
    %1265 = vmatprep.subr.mxu0 0.0
    %1266 = vmatpush2.msra.mxu0 0.0
    %1267 = vmatprep.subr.mxu0 0.0
    %1268 = vmatpush2.msra.mxu0 0.0
    %1269 = vmatprep.subr.mxu0 0.0
    %1270 = vmatpush2.msra.mxu0 0.0
    %1271 = vmatprep.subr.mxu0 0.0
    %1272 = vmatpush2.msra.mxu0 0.0
    %1273 = vmatprep.subr.mxu0 0.0
    %1274 = vmatpush2.msra.mxu0 %v503
    %1275 = vmatprep.subr.mxu0 0.0
    %1276 = vmatpush2.msra.mxu0 %v415
    %1277 = vmatprep.subr.mxu0 0.0
    %1278 = vmatpush2.msra.mxu0 %v394
    %1279 = vmatprep.mubr.f32.mxu0 %v439
    %1280 = vmatmul.mubr.f32.gmra.mxu0 %v36
    %v1281 = vpop.f32.mrf.mxu0
    %v1282 = vadd.f32 0.0, %v1281
    %v1283 = vpop.f32.mrf.mxu0
    %1284 = vdwg.mxu0
    %v1285 = vld [vmem:[%s1] sm:$0xff]
    %v1286 = vld [vmem:[%s1 + $0x8] sm:$0xff]
    %v1287 = vld [vmem:[%s1 + $0x10] sm:$0xff]
    %v1288 = vld [vmem:[%s1 + $0x18] sm:$0xff]
    %v1289 = vld [vmem:[%s1 + $0x20] sm:$0xff]
    %v1290 = vld [vmem:[%s1 + $0x28] sm:$0xff]
    %v1291 = vld [vmem:[%s1 + $0x30] sm:$0xff]
    %v1292 = vld [vmem:[%s1 + $0x38] sm:$0xff]
    %v1293 = vld [vmem:[%s1 + $0x40] sm:$0xff]
    %v1294 = vld [vmem:[%s1 + $0x48] sm:$0xff]
    %v1295 = vld [vmem:[%s1 + $0x50] sm:$0xff]
    %v1296 = vld [vmem:[%s1 + $0x58] sm:$0xff]
    %v1297 = vld [vmem:[%s1 + $0x60] sm:$0xff]
    %v1298 = vld [vmem:[%s1 + $0x68] sm:$0xff]
    %v1299 = vld [vmem:[%s1 + $0x70] sm:$0xff]
    %v1300 = vld [vmem:[%s1 + $0x78] sm:$0xff]
    %v1301 = vld [vmem:[%s3] sm:$0xff]
    %v1302 = vld [vmem:[%s3 + $0x8] sm:$0xff]
    %v1303 = vld [vmem:[%s3 + $0x10] sm:$0xff]
    %v1304 = vld [vmem:[%s3 + $0x18] sm:$0xff]
    %v1305 = vld [vmem:[%s3 + $0x20] sm:$0xff]
    %v1306 = vld [vmem:[%s3 + $0x28] sm:$0xff]
    %v1307 = vld [vmem:[%s3 + $0x30] sm:$0xff]
    %v1308 = vld [vmem:[%s3 + $0x38] sm:$0xff]
    %v1309 = vld [vmem:[%s3 + $0x40] sm:$0xff]
    %v1310 = vld [vmem:[%s3 + $0x48] sm:$0xff]
    %v1311 = vld [vmem:[%s3 + $0x50] sm:$0xff]
    %v1312 = vld [vmem:[%s3 + $0x58] sm:$0xff]
    %v1313 = vld [vmem:[%s3 + $0x60] sm:$0xff]
    %v1314 = vld [vmem:[%s3 + $0x68] sm:$0xff]
    %vm1315 = vcmask 130048
    %v1317 = vsel %vm1315, %v1285, 0
    %v1320 = vsel %vm1315, %v1286, 0
    %v1323 = vsel %vm1315, %v1287, 0
    %v1326 = vsel %vm1315, %v1288, 0
    %v1329 = vsel %vm1315, %v1289, 0
    %v1332 = vsel %vm1315, %v1290, 0
    %v1335 = vsel %vm1315, %v1291, 0
    %v1338 = vsel %vm1315, %v1292, 0
    %v1341 = vsel %vm1315, %v1293, 0
    %v1344 = vsel %vm1315, %v1294, 0
    %v1347 = vsel %vm1315, %v1295, 0
    %v1350 = vsel %vm1315, %v1296, 0
    %v1353 = vsel %vm1315, %v1297, 0
    %v1356 = vsel %vm1315, %v1298, 0
    %v1359 = vsel %vm1315, %v1299, 0
    %v1362 = vsel %vm1315, %v1300, 0
    %1364 = vmatprep.subr.mxu0 0.0
    %1365 = vmatpush1.msra.mxu0 0.0
    %1366 = vmatprep.subr.mxu0 0.0
    %1367 = vmatpush1.msra.mxu0 0.0
    %1368 = vmatprep.subr.mxu0 0.0
    %1369 = vmatpush1.msra.mxu0 0.0
    %1370 = vmatprep.subr.mxu0 0.0
    %1371 = vmatpush1.msra.mxu0 0.0
    %1372 = vmatprep.subr.mxu0 0.0
    %1373 = vmatpush1.msra.mxu0 0.0
    %1374 = vmatprep.subr.mxu0 0.0
    %1375 = vmatpush1.msra.mxu0 0.0
    %1376 = vmatprep.subr.mxu0 0.0
    %1377 = vmatpush1.msra.mxu0 0.0
    %1378 = vmatprep.subr.mxu0 0.0
    %1379 = vmatpush1.msra.mxu0 0.0
    %1380 = vmatprep.subr.mxu0 0.0
    %1381 = vmatpush1.msra.mxu0 0.0
    %1382 = vmatprep.subr.mxu0 0.0
    %1383 = vmatpush1.msra.mxu0 0.0
    %1384 = vmatprep.subr.mxu0 0.0
    %1385 = vmatpush1.msra.mxu0 0.0
    %1386 = vmatprep.subr.mxu0 0.0
    %1387 = vmatpush1.msra.mxu0 0.0
    %1388 = vmatprep.subr.mxu0 0.0
    %1389 = vmatpush1.msra.mxu0 0.0
    %1390 = vmatprep.subr.mxu0 0.0
    %1391 = vmatpush1.msra.mxu0 0.0
    %1392 = vmatprep.subr.mxu0 %v1309
    %1393 = vmatpush1.msra.mxu0 %v1308
    %1394 = vmatprep.subr.mxu0 %v1302
    %1395 = vmatpush1.msra.mxu0 %v1301
    %1396 = vmatprep.subr.mxu0 0.0
    %1397 = vmatpush2.msra.mxu0 0.0
    %1398 = vmatprep.subr.mxu0 0.0
    %1399 = vmatpush2.msra.mxu0 0.0
    %1400 = vmatprep.subr.mxu0 0.0
    %1401 = vmatpush2.msra.mxu0 0.0
    %1402 = vmatprep.subr.mxu0 0.0
    %1403 = vmatpush2.msra.mxu0 0.0
    %1404 = vmatprep.subr.mxu0 0.0
    %1405 = vmatpush2.msra.mxu0 0.0
    %1406 = vmatprep.subr.mxu0 0.0
    %1407 = vmatpush2.msra.mxu0 0.0
    %1408 = vmatprep.subr.mxu0 0.0
    %1409 = vmatpush2.msra.mxu0 0.0
    %1410 = vmatprep.subr.mxu0 0.0
    %1411 = vmatpush2.msra.mxu0 0.0
    %1412 = vmatprep.subr.mxu0 0.0
    %1413 = vmatpush2.msra.mxu0 0.0
    %1414 = vmatprep.subr.mxu0 0.0
    %1415 = vmatpush2.msra.mxu0 0.0
    %1416 = vmatprep.subr.mxu0 0.0
    %1417 = vmatpush2.msra.mxu0 0.0
    %1418 = vmatprep.subr.mxu0 0.0
    %1419 = vmatpush2.msra.mxu0 0.0
    %1420 = vmatprep.subr.mxu0 0.0
    %1421 = vmatpush2.msra.mxu0 0.0
    %1422 = vmatprep.subr.mxu0 0.0
    %1423 = vmatpush2.msra.mxu0 0.0
    %1424 = vmatprep.subr.mxu0 0.0
    %1425 = vmatpush2.msra.mxu0 0.0
    %1426 = vmatprep.subr.mxu0 0.0
    %1427 = vmatpush2.msra.mxu0 0.0
    %1428 = vmatprep.mubr.f32.mxu0 0.0
    %1429 = vmatmul.mubr.f32.gmra.mxu0 %v1317
    %v1430 = vpop.f32.mrf.mxu0
    %v1431 = vadd.f32 0.0, %v1430
    %v1432 = vpop.f32.mrf.mxu0
    %v1433 = vadd.f32 0.0, %v1432
    %1434 = vmatprep.mubr.f32.mxu0 0.0
    %1435 = vmatmul.mubr.f32.gmra.mxu0 %v1320
    %v1436 = vpop.f32.mrf.mxu0
    %v1437 = vadd.f32 0.0, %v1436
    %v1438 = vpop.f32.mrf.mxu0
    %v1439 = vadd.f32 0.0, %v1438
    %1440 = vmatprep.mubr.f32.mxu0 0.0
    %1441 = vmatmul.mubr.f32.gmra.mxu0 %v1323
    %v1442 = vpop.f32.mrf.mxu0
    %v1443 = vadd.f32 0.0, %v1442
    %v1444 = vpop.f32.mrf.mxu0
    %v1445 = vadd.f32 0.0, %v1444
    %1446 = vmatprep.mubr.f32.mxu0 0.0
    %1447 = vmatmul.mubr.f32.gmra.mxu0 %v1326
    %v1448 = vpop.f32.mrf.mxu0
    %v1449 = vadd.f32 0.0, %v1448
    %v1450 = vpop.f32.mrf.mxu0
    %v1451 = vadd.f32 0.0, %v1450
    %1452 = vmatprep.mubr.f32.mxu0 0.0
    %1453 = vmatmul.mubr.f32.gmra.mxu0 %v1329
    %v1454 = vpop.f32.mrf.mxu0
    %v1455 = vadd.f32 0.0, %v1454
    %v1456 = vpop.f32.mrf.mxu0
    %v1457 = vadd.f32 0.0, %v1456
    %1458 = vmatprep.mubr.f32.mxu0 0.0
    %1459 = vmatmul.mubr.f32.gmra.mxu0 %v1332
    %v1460 = vpop.f32.mrf.mxu0
    %v1461 = vadd.f32 0.0, %v1460
    %v1462 = vpop.f32.mrf.mxu0
    %v1463 = vadd.f32 0.0, %v1462
    %1464 = vmatprep.mubr.f32.mxu0 0.0
    %1465 = vmatmul.mubr.f32.gmra.mxu0 %v1335
    %v1466 = vpop.f32.mrf.mxu0
    %v1467 = vadd.f32 0.0, %v1466
    %v1468 = vpop.f32.mrf.mxu0
    %v1469 = vadd.f32 0.0, %v1468
    %1470 = vmatprep.mubr.f32.mxu0 0.0
    %1471 = vmatmul.mubr.f32.gmra.mxu0 %v1338
    %v1472 = vpop.f32.mrf.mxu0
    %v1473 = vadd.f32 0.0, %v1472
    %v1474 = vpop.f32.mrf.mxu0
    %v1475 = vadd.f32 0.0, %v1474
    %1476 = vmatprep.mubr.f32.mxu0 0.0
    %1477 = vmatmul.mubr.f32.gmra.mxu0 %v1341
    %v1478 = vpop.f32.mrf.mxu0
    %v1479 = vadd.f32 0.0, %v1478
    %v1480 = vpop.f32.mrf.mxu0
    %v1481 = vadd.f32 0.0, %v1480
    %1482 = vmatprep.mubr.f32.mxu0 0.0
    %1483 = vmatmul.mubr.f32.gmra.mxu0 %v1344
    %v1484 = vpop.f32.mrf.mxu0
    %v1485 = vadd.f32 0.0, %v1484
    %v1486 = vpop.f32.mrf.mxu0
    %v1487 = vadd.f32 0.0, %v1486
    %1488 = vmatprep.mubr.f32.mxu0 0.0
    %1489 = vmatmul.mubr.f32.gmra.mxu0 %v1347
    %v1490 = vpop.f32.mrf.mxu0
    %v1491 = vadd.f32 0.0, %v1490
    %v1492 = vpop.f32.mrf.mxu0
    %v1493 = vadd.f32 0.0, %v1492
    %1494 = vmatprep.mubr.f32.mxu0 0.0
    %1495 = vmatmul.mubr.f32.gmra.mxu0 %v1350
    %v1496 = vpop.f32.mrf.mxu0
    %v1497 = vadd.f32 0.0, %v1496
    %v1498 = vpop.f32.mrf.mxu0
    %v1499 = vadd.f32 0.0, %v1498
    %1500 = vmatprep.mubr.f32.mxu0 0.0
    %1501 = vmatmul.mubr.f32.gmra.mxu0 %v1353
    %v1502 = vpop.f32.mrf.mxu0
    %v1503 = vpop.f32.mrf.mxu0
    %1504 = vmatprep.mubr.f32.mxu0 0.0
    %1505 = vmatmul.mubr.f32.gmra.mxu0 %v1356
    %v1506 = vpop.f32.mrf.mxu0
    %v1507 = vpop.f32.mrf.mxu0
    %1508 = vmatprep.mubr.f32.mxu0 0.0
    %1509 = vmatmul.mubr.f32.gmra.mxu0 %v1359
    %v1510 = vpop.f32.mrf.mxu0
    %v1511 = vpop.f32.mrf.mxu0
    %1512 = vmatprep.mubr.f32.mxu0 0.0
    %1513 = vmatmul.mubr.f32.gmra.mxu0 %v1362
    %v1514 = vpop.f32.mrf.mxu0
    %v1515 = vpop.f32.mrf.mxu0
    %1516 = vdwg.mxu0
    %1517 = vmatprep.subr.mxu0 0.0
    %1518 = vmatpush1.msra.mxu0 0.0
    %1519 = vmatprep.subr.mxu0 0.0
    %1520 = vmatpush1.msra.mxu0 0.0
    %1521 = vmatprep.subr.mxu0 0.0
    %1522 = vmatpush1.msra.mxu0 0.0
    %1523 = vmatprep.subr.mxu0 0.0
    %1524 = vmatpush1.msra.mxu0 0.0
    %1525 = vmatprep.subr.mxu0 0.0
    %1526 = vmatpush1.msra.mxu0 0.0
    %1527 = vmatprep.subr.mxu0 0.0
    %1528 = vmatpush1.msra.mxu0 0.0
    %1529 = vmatprep.subr.mxu0 0.0
    %1530 = vmatpush1.msra.mxu0 0.0
    %1531 = vmatprep.subr.mxu0 0.0
    %1532 = vmatpush1.msra.mxu0 0.0
    %1533 = vmatprep.subr.mxu0 0.0
    %1534 = vmatpush1.msra.mxu0 0.0
    %1535 = vmatprep.subr.mxu0 0.0
    %1536 = vmatpush1.msra.mxu0 0.0
    %1537 = vmatprep.subr.mxu0 0.0
    %1538 = vmatpush1.msra.mxu0 0.0
    %1539 = vmatprep.subr.mxu0 0.0
    %1540 = vmatpush1.msra.mxu0 0.0
    %1541 = vmatprep.subr.mxu0 0.0
    %1542 = vmatpush1.msra.mxu0 0.0
    %1543 = vmatprep.subr.mxu0 0.0
    %1544 = vmatpush1.msra.mxu0 0.0
    %1545 = vmatprep.subr.mxu0 %v1311
    %1546 = vmatpush1.msra.mxu0 %v1310
    %1547 = vmatprep.subr.mxu0 %v1304
    %1548 = vmatpush1.msra.mxu0 %v1303
    %1549 = vmatprep.subr.mxu0 0.0
    %1550 = vmatpush2.msra.mxu0 0.0
    %1551 = vmatprep.subr.mxu0 0.0
    %1552 = vmatpush2.msra.mxu0 0.0
    %1553 = vmatprep.subr.mxu0 0.0
    %1554 = vmatpush2.msra.mxu0 0.0
    %1555 = vmatprep.subr.mxu0 0.0
    %1556 = vmatpush2.msra.mxu0 0.0
    %1557 = vmatprep.subr.mxu0 0.0
    %1558 = vmatpush2.msra.mxu0 0.0
    %1559 = vmatprep.subr.mxu0 0.0
    %1560 = vmatpush2.msra.mxu0 0.0
    %1561 = vmatprep.subr.mxu0 0.0
    %1562 = vmatpush2.msra.mxu0 0.0
    %1563 = vmatprep.subr.mxu0 0.0
    %1564 = vmatpush2.msra.mxu0 0.0
    %1565 = vmatprep.subr.mxu0 0.0
    %1566 = vmatpush2.msra.mxu0 0.0
    %1567 = vmatprep.subr.mxu0 0.0
    %1568 = vmatpush2.msra.mxu0 0.0
    %1569 = vmatprep.subr.mxu0 0.0
    %1570 = vmatpush2.msra.mxu0 0.0
    %1571 = vmatprep.subr.mxu0 0.0
    %1572 = vmatpush2.msra.mxu0 0.0
    %1573 = vmatprep.subr.mxu0 0.0
    %1574 = vmatpush2.msra.mxu0 0.0
    %1575 = vmatprep.subr.mxu0 0.0
    %1576 = vmatpush2.msra.mxu0 0.0
    %1577 = vmatprep.subr.mxu0 0.0
    %1578 = vmatpush2.msra.mxu0 0.0
    %1579 = vmatprep.subr.mxu0 0.0
    %1580 = vmatpush2.msra.mxu0 0.0
    %1581 = vmatprep.mubr.f32.mxu0 0.0
    %1582 = vmatmul.mubr.f32.gmra.mxu0 %v1317
    %v1583 = vpop.f32.mrf.mxu0
    %v1584 = vadd.f32 0.0, %v1583
    %v1585 = vpop.f32.mrf.mxu0
    %v1586 = vadd.f32 0.0, %v1585
    %1587 = vmatprep.mubr.f32.mxu0 0.0
    %1588 = vmatmul.mubr.f32.gmra.mxu0 %v1320
    %v1589 = vpop.f32.mrf.mxu0
    %v1590 = vadd.f32 0.0, %v1589
    %v1591 = vpop.f32.mrf.mxu0
    %v1592 = vadd.f32 0.0, %v1591
    %1593 = vmatprep.mubr.f32.mxu0 0.0
    %1594 = vmatmul.mubr.f32.gmra.mxu0 %v1323
    %v1595 = vpop.f32.mrf.mxu0
    %v1596 = vadd.f32 0.0, %v1595
    %v1597 = vpop.f32.mrf.mxu0
    %v1598 = vadd.f32 0.0, %v1597
    %1599 = vmatprep.mubr.f32.mxu0 0.0
    %1600 = vmatmul.mubr.f32.gmra.mxu0 %v1326
    %v1601 = vpop.f32.mrf.mxu0
    %v1602 = vadd.f32 0.0, %v1601
    %v1603 = vpop.f32.mrf.mxu0
    %v1604 = vadd.f32 0.0, %v1603
    %1605 = vmatprep.mubr.f32.mxu0 0.0
    %1606 = vmatmul.mubr.f32.gmra.mxu0 %v1329
    %v1607 = vpop.f32.mrf.mxu0
    %v1608 = vadd.f32 0.0, %v1607
    %v1609 = vpop.f32.mrf.mxu0
    %v1610 = vadd.f32 0.0, %v1609
    %1611 = vmatprep.mubr.f32.mxu0 0.0
    %1612 = vmatmul.mubr.f32.gmra.mxu0 %v1332
    %v1613 = vpop.f32.mrf.mxu0
    %v1614 = vadd.f32 0.0, %v1613
    %v1615 = vpop.f32.mrf.mxu0
    %v1616 = vadd.f32 0.0, %v1615
    %1617 = vmatprep.mubr.f32.mxu0 0.0
    %1618 = vmatmul.mubr.f32.gmra.mxu0 %v1335
    %v1619 = vpop.f32.mrf.mxu0
    %v1620 = vadd.f32 0.0, %v1619
    %v1621 = vpop.f32.mrf.mxu0
    %v1622 = vadd.f32 0.0, %v1621
    %1623 = vmatprep.mubr.f32.mxu0 0.0
    %1624 = vmatmul.mubr.f32.gmra.mxu0 %v1338
    %v1625 = vpop.f32.mrf.mxu0
    %v1626 = vadd.f32 0.0, %v1625
    %v1627 = vpop.f32.mrf.mxu0
    %v1628 = vadd.f32 0.0, %v1627
    %1629 = vmatprep.mubr.f32.mxu0 0.0
    %1630 = vmatmul.mubr.f32.gmra.mxu0 %v1341
    %v1631 = vpop.f32.mrf.mxu0
    %v1632 = vadd.f32 0.0, %v1631
    %v1633 = vpop.f32.mrf.mxu0
    %v1634 = vadd.f32 0.0, %v1633
    %1635 = vmatprep.mubr.f32.mxu0 0.0
    %1636 = vmatmul.mubr.f32.gmra.mxu0 %v1344
    %v1637 = vpop.f32.mrf.mxu0
    %v1638 = vadd.f32 0.0, %v1637
    %v1639 = vpop.f32.mrf.mxu0
    %v1640 = vadd.f32 0.0, %v1639
    %1641 = vmatprep.mubr.f32.mxu0 0.0
    %1642 = vmatmul.mubr.f32.gmra.mxu0 %v1347
    %v1643 = vpop.f32.mrf.mxu0
    %v1644 = vadd.f32 0.0, %v1643
    %v1645 = vpop.f32.mrf.mxu0
    %v1646 = vadd.f32 0.0, %v1645
    %1647 = vmatprep.mubr.f32.mxu0 0.0
    %1648 = vmatmul.mubr.f32.gmra.mxu0 %v1350
    %v1649 = vpop.f32.mrf.mxu0
    %v1650 = vadd.f32 0.0, %v1649
    %v1651 = vpop.f32.mrf.mxu0
    %v1652 = vadd.f32 0.0, %v1651
    %1653 = vmatprep.mubr.f32.mxu0 0.0
    %1654 = vmatmul.mubr.f32.gmra.mxu0 %v1353
    %v1655 = vpop.f32.mrf.mxu0
    %v1656 = vpop.f32.mrf.mxu0
    %1657 = vmatprep.mubr.f32.mxu0 0.0
    %1658 = vmatmul.mubr.f32.gmra.mxu0 %v1356
    %v1659 = vpop.f32.mrf.mxu0
    %v1660 = vpop.f32.mrf.mxu0
    %1661 = vmatprep.mubr.f32.mxu0 0.0
    %1662 = vmatmul.mubr.f32.gmra.mxu0 %v1359
    %v1663 = vpop.f32.mrf.mxu0
    %v1664 = vpop.f32.mrf.mxu0
    %1665 = vmatprep.mubr.f32.mxu0 0.0
    %1666 = vmatmul.mubr.f32.gmra.mxu0 %v1362
    %v1667 = vpop.f32.mrf.mxu0
    %v1668 = vpop.f32.mrf.mxu0
    %1669 = vdwg.mxu0
    %1670 = vmatprep.subr.mxu0 0.0
    %1671 = vmatpush1.msra.mxu0 0.0
    %1672 = vmatprep.subr.mxu0 0.0
    %1673 = vmatpush1.msra.mxu0 0.0
    %1674 = vmatprep.subr.mxu0 0.0
    %1675 = vmatpush1.msra.mxu0 0.0
    %1676 = vmatprep.subr.mxu0 0.0
    %1677 = vmatpush1.msra.mxu0 0.0
    %1678 = vmatprep.subr.mxu0 0.0
    %1679 = vmatpush1.msra.mxu0 0.0
    %1680 = vmatprep.subr.mxu0 0.0
    %1681 = vmatpush1.msra.mxu0 0.0
    %1682 = vmatprep.subr.mxu0 0.0
    %1683 = vmatpush1.msra.mxu0 0.0
    %1684 = vmatprep.subr.mxu0 0.0
    %1685 = vmatpush1.msra.mxu0 0.0
    %1686 = vmatprep.subr.mxu0 0.0
    %1687 = vmatpush1.msra.mxu0 0.0
    %1688 = vmatprep.subr.mxu0 0.0
    %1689 = vmatpush1.msra.mxu0 0.0
    %1690 = vmatprep.subr.mxu0 0.0
    %1691 = vmatpush1.msra.mxu0 0.0
    %1692 = vmatprep.subr.mxu0 0.0
    %1693 = vmatpush1.msra.mxu0 0.0
    %1694 = vmatprep.subr.mxu0 0.0
    %1695 = vmatpush1.msra.mxu0 0.0
    %1696 = vmatprep.subr.mxu0 0.0
    %1697 = vmatpush1.msra.mxu0 0.0
    %1698 = vmatprep.subr.mxu0 %v1313
    %1699 = vmatpush1.msra.mxu0 %v1312
    %1700 = vmatprep.subr.mxu0 %v1306
    %1701 = vmatpush1.msra.mxu0 %v1305
    %1702 = vmatprep.subr.mxu0 0.0
    %1703 = vmatpush2.msra.mxu0 0.0
    %1704 = vmatprep.subr.mxu0 0.0
    %1705 = vmatpush2.msra.mxu0 0.0
    %1706 = vmatprep.subr.mxu0 0.0
    %1707 = vmatpush2.msra.mxu0 0.0
    %1708 = vmatprep.subr.mxu0 0.0
    %1709 = vmatpush2.msra.mxu0 0.0
    %1710 = vmatprep.subr.mxu0 0.0
    %1711 = vmatpush2.msra.mxu0 0.0
    %1712 = vmatprep.subr.mxu0 0.0
    %1713 = vmatpush2.msra.mxu0 0.0
    %1714 = vmatprep.subr.mxu0 0.0
    %1715 = vmatpush2.msra.mxu0 0.0
    %1716 = vmatprep.subr.mxu0 0.0
    %1717 = vmatpush2.msra.mxu0 0.0
    %1718 = vmatprep.subr.mxu0 0.0
    %1719 = vmatpush2.msra.mxu0 0.0
    %1720 = vmatprep.subr.mxu0 0.0
    %1721 = vmatpush2.msra.mxu0 0.0
    %1722 = vmatprep.subr.mxu0 0.0
    %1723 = vmatpush2.msra.mxu0 0.0
    %1724 = vmatprep.subr.mxu0 0.0
    %1725 = vmatpush2.msra.mxu0 0.0
    %1726 = vmatprep.subr.mxu0 0.0
    %1727 = vmatpush2.msra.mxu0 0.0
    %1728 = vmatprep.subr.mxu0 0.0
    %1729 = vmatpush2.msra.mxu0 0.0
    %1730 = vmatprep.subr.mxu0 0.0
    %1731 = vmatpush2.msra.mxu0 0.0
    %1732 = vmatprep.subr.mxu0 0.0
    %1733 = vmatpush2.msra.mxu0 0.0
    %1734 = vmatprep.mubr.f32.mxu0 0.0
    %1735 = vmatmul.mubr.f32.gmra.mxu0 %v1317
    %v1736 = vpop.f32.mrf.mxu0
    %v1737 = vadd.f32 0.0, %v1736
    %v1738 = vpop.f32.mrf.mxu0
    %v1739 = vadd.f32 0.0, %v1738
    %1740 = vmatprep.mubr.f32.mxu0 0.0
    %1741 = vmatmul.mubr.f32.gmra.mxu0 %v1320
    %v1742 = vpop.f32.mrf.mxu0
    %v1743 = vadd.f32 0.0, %v1742
    %v1744 = vpop.f32.mrf.mxu0
    %v1745 = vadd.f32 0.0, %v1744
    %1746 = vmatprep.mubr.f32.mxu0 0.0
    %1747 = vmatmul.mubr.f32.gmra.mxu0 %v1323
    %v1748 = vpop.f32.mrf.mxu0
    %v1749 = vadd.f32 0.0, %v1748
    %v1750 = vpop.f32.mrf.mxu0
    %v1751 = vadd.f32 0.0, %v1750
    %1752 = vmatprep.mubr.f32.mxu0 0.0
    %1753 = vmatmul.mubr.f32.gmra.mxu0 %v1326
    %v1754 = vpop.f32.mrf.mxu0
    %v1755 = vadd.f32 0.0, %v1754
    %v1756 = vpop.f32.mrf.mxu0
    %v1757 = vadd.f32 0.0, %v1756
    %1758 = vmatprep.mubr.f32.mxu0 0.0
    %1759 = vmatmul.mubr.f32.gmra.mxu0 %v1329
    %v1760 = vpop.f32.mrf.mxu0
    %v1761 = vadd.f32 0.0, %v1760
    %v1762 = vpop.f32.mrf.mxu0
    %v1763 = vadd.f32 0.0, %v1762
    %1764 = vmatprep.mubr.f32.mxu0 0.0
    %1765 = vmatmul.mubr.f32.gmra.mxu0 %v1332
    %v1766 = vpop.f32.mrf.mxu0
    %v1767 = vadd.f32 0.0, %v1766
    %v1768 = vpop.f32.mrf.mxu0
    %v1769 = vadd.f32 0.0, %v1768
    %1770 = vmatprep.mubr.f32.mxu0 0.0
    %1771 = vmatmul.mubr.f32.gmra.mxu0 %v1335
    %v1772 = vpop.f32.mrf.mxu0
    %v1773 = vadd.f32 0.0, %v1772
    %v1774 = vpop.f32.mrf.mxu0
    %v1775 = vadd.f32 0.0, %v1774
    %1776 = vmatprep.mubr.f32.mxu0 0.0
    %1777 = vmatmul.mubr.f32.gmra.mxu0 %v1338
    %v1778 = vpop.f32.mrf.mxu0
    %v1779 = vadd.f32 0.0, %v1778
    %v1780 = vpop.f32.mrf.mxu0
    %v1781 = vadd.f32 0.0, %v1780
    %1782 = vmatprep.mubr.f32.mxu0 0.0
    %1783 = vmatmul.mubr.f32.gmra.mxu0 %v1341
    %v1784 = vpop.f32.mrf.mxu0
    %v1785 = vadd.f32 0.0, %v1784
    %v1786 = vpop.f32.mrf.mxu0
    %v1787 = vadd.f32 0.0, %v1786
    %1788 = vmatprep.mubr.f32.mxu0 0.0
    %1789 = vmatmul.mubr.f32.gmra.mxu0 %v1344
    %v1790 = vpop.f32.mrf.mxu0
    %v1791 = vadd.f32 0.0, %v1790
    %v1792 = vpop.f32.mrf.mxu0
    %v1793 = vadd.f32 0.0, %v1792
    %1794 = vmatprep.mubr.f32.mxu0 0.0
    %1795 = vmatmul.mubr.f32.gmra.mxu0 %v1347
    %v1796 = vpop.f32.mrf.mxu0
    %v1797 = vadd.f32 0.0, %v1796
    %v1798 = vpop.f32.mrf.mxu0
    %v1799 = vadd.f32 0.0, %v1798
    %1800 = vmatprep.mubr.f32.mxu0 0.0
    %1801 = vmatmul.mubr.f32.gmra.mxu0 %v1350
    %v1802 = vpop.f32.mrf.mxu0
    %v1803 = vadd.f32 0.0, %v1802
    %v1804 = vpop.f32.mrf.mxu0
    %v1805 = vadd.f32 0.0, %v1804
    %1806 = vmatprep.mubr.f32.mxu0 0.0
    %1807 = vmatmul.mubr.f32.gmra.mxu0 %v1353
    %v1808 = vpop.f32.mrf.mxu0
    %v1809 = vpop.f32.mrf.mxu0
    %1810 = vmatprep.mubr.f32.mxu0 0.0
    %1811 = vmatmul.mubr.f32.gmra.mxu0 %v1356
    %v1812 = vpop.f32.mrf.mxu0
    %v1813 = vpop.f32.mrf.mxu0
    %1814 = vmatprep.mubr.f32.mxu0 0.0
    %1815 = vmatmul.mubr.f32.gmra.mxu0 %v1359
    %v1816 = vpop.f32.mrf.mxu0
    %v1817 = vpop.f32.mrf.mxu0
    %1818 = vmatprep.mubr.f32.mxu0 0.0
    %1819 = vmatmul.mubr.f32.gmra.mxu0 %v1362
    %v1820 = vpop.f32.mrf.mxu0
    %v1821 = vpop.f32.mrf.mxu0
    %1822 = vdwg.mxu0
    %1823 = vmatprep.subr.mxu0 0.0
    %1824 = vmatpush1.msra.mxu0 0.0
    %1825 = vmatprep.subr.mxu0 0.0
    %1826 = vmatpush1.msra.mxu0 0.0
    %1827 = vmatprep.subr.mxu0 0.0
    %1828 = vmatpush1.msra.mxu0 0.0
    %1829 = vmatprep.subr.mxu0 0.0
    %1830 = vmatpush1.msra.mxu0 0.0
    %1831 = vmatprep.subr.mxu0 0.0
    %1832 = vmatpush1.msra.mxu0 0.0
    %1833 = vmatprep.subr.mxu0 0.0
    %1834 = vmatpush1.msra.mxu0 0.0
    %1835 = vmatprep.subr.mxu0 0.0
    %1836 = vmatpush1.msra.mxu0 0.0
    %1837 = vmatprep.subr.mxu0 0.0
    %1838 = vmatpush1.msra.mxu0 0.0
    %1839 = vmatprep.subr.mxu0 0.0
    %1840 = vmatpush1.msra.mxu0 0.0
    %1841 = vmatprep.subr.mxu0 0.0
    %1842 = vmatpush1.msra.mxu0 0.0
    %1843 = vmatprep.subr.mxu0 0.0
    %1844 = vmatpush1.msra.mxu0 0.0
    %1845 = vmatprep.subr.mxu0 0.0
    %1846 = vmatpush1.msra.mxu0 0.0
    %1847 = vmatprep.subr.mxu0 0.0
    %1848 = vmatpush1.msra.mxu0 0.0
    %1849 = vmatprep.subr.mxu0 0.0
    %1850 = vmatpush1.msra.mxu0 0.0
    %1851 = vmatprep.subr.mxu0 0.0
    %1852 = vmatpush1.msra.mxu0 %v1314
    %1853 = vmatprep.subr.mxu0 0.0
    %1854 = vmatpush1.msra.mxu0 %v1307
    %1855 = vmatprep.subr.mxu0 0.0
    %1856 = vmatpush2.msra.mxu0 0.0
    %1857 = vmatprep.subr.mxu0 0.0
    %1858 = vmatpush2.msra.mxu0 0.0
    %1859 = vmatprep.subr.mxu0 0.0
    %1860 = vmatpush2.msra.mxu0 0.0
    %1861 = vmatprep.subr.mxu0 0.0
    %1862 = vmatpush2.msra.mxu0 0.0
    %1863 = vmatprep.subr.mxu0 0.0
    %1864 = vmatpush2.msra.mxu0 0.0
    %1865 = vmatprep.subr.mxu0 0.0
    %1866 = vmatpush2.msra.mxu0 0.0
    %1867 = vmatprep.subr.mxu0 0.0
    %1868 = vmatpush2.msra.mxu0 0.0
    %1869 = vmatprep.subr.mxu0 0.0
    %1870 = vmatpush2.msra.mxu0 0.0
    %1871 = vmatprep.subr.mxu0 0.0
    %1872 = vmatpush2.msra.mxu0 0.0
    %1873 = vmatprep.subr.mxu0 0.0
    %1874 = vmatpush2.msra.mxu0 0.0
    %1875 = vmatprep.subr.mxu0 0.0
    %1876 = vmatpush2.msra.mxu0 0.0
    %1877 = vmatprep.subr.mxu0 0.0
    %1878 = vmatpush2.msra.mxu0 0.0
    %1879 = vmatprep.subr.mxu0 0.0
    %1880 = vmatpush2.msra.mxu0 0.0
    %1881 = vmatprep.subr.mxu0 0.0
    %1882 = vmatpush2.msra.mxu0 0.0
    %1883 = vmatprep.subr.mxu0 0.0
    %1884 = vmatpush2.msra.mxu0 0.0
    %1885 = vmatprep.subr.mxu0 0.0
    %1886 = vmatpush2.msra.mxu0 0.0
    %1887 = vmatprep.mubr.f32.mxu0 0.0
    %1888 = vmatmul.mubr.f32.gmra.mxu0 %v1317
    %v1889 = vpop.f32.mrf.mxu0
    %v1890 = vadd.f32 0.0, %v1889
    %v1891 = vpop.f32.mrf.mxu0
    %1892 = vmatprep.mubr.f32.mxu0 0.0
    %1893 = vmatmul.mubr.f32.gmra.mxu0 %v1320
    %v1894 = vpop.f32.mrf.mxu0
    %v1895 = vadd.f32 0.0, %v1894
    %v1896 = vpop.f32.mrf.mxu0
    %1897 = vmatprep.mubr.f32.mxu0 0.0
    %1898 = vmatmul.mubr.f32.gmra.mxu0 %v1323
    %v1899 = vpop.f32.mrf.mxu0
    %v1900 = vadd.f32 0.0, %v1899
    %v1901 = vpop.f32.mrf.mxu0
    %1902 = vmatprep.mubr.f32.mxu0 0.0
    %1903 = vmatmul.mubr.f32.gmra.mxu0 %v1326
    %v1904 = vpop.f32.mrf.mxu0
    %v1905 = vadd.f32 0.0, %v1904
    %v1906 = vpop.f32.mrf.mxu0
    %1907 = vmatprep.mubr.f32.mxu0 0.0
    %1908 = vmatmul.mubr.f32.gmra.mxu0 %v1329
    %v1909 = vpop.f32.mrf.mxu0
    %v1910 = vadd.f32 0.0, %v1909
    %v1911 = vpop.f32.mrf.mxu0
    %1912 = vmatprep.mubr.f32.mxu0 0.0
    %1913 = vmatmul.mubr.f32.gmra.mxu0 %v1332
    %v1914 = vpop.f32.mrf.mxu0
    %v1915 = vadd.f32 0.0, %v1914
    %v1916 = vpop.f32.mrf.mxu0
    %1917 = vmatprep.mubr.f32.mxu0 0.0
    %1918 = vmatmul.mubr.f32.gmra.mxu0 %v1335
    %v1919 = vpop.f32.mrf.mxu0
    %v1920 = vadd.f32 0.0, %v1919
    %v1921 = vpop.f32.mrf.mxu0
    %1922 = vmatprep.mubr.f32.mxu0 0.0
    %1923 = vmatmul.mubr.f32.gmra.mxu0 %v1338
    %v1924 = vpop.f32.mrf.mxu0
    %v1925 = vadd.f32 0.0, %v1924
    %v1926 = vpop.f32.mrf.mxu0
    %1927 = vmatprep.mubr.f32.mxu0 0.0
    %1928 = vmatmul.mubr.f32.gmra.mxu0 %v1341
    %v1929 = vpop.f32.mrf.mxu0
    %v1930 = vadd.f32 0.0, %v1929
    %v1931 = vpop.f32.mrf.mxu0
    %1932 = vmatprep.mubr.f32.mxu0 0.0
    %1933 = vmatmul.mubr.f32.gmra.mxu0 %v1344
    %v1934 = vpop.f32.mrf.mxu0
    %v1935 = vadd.f32 0.0, %v1934
    %v1936 = vpop.f32.mrf.mxu0
    %1937 = vmatprep.mubr.f32.mxu0 0.0
    %1938 = vmatmul.mubr.f32.gmra.mxu0 %v1347
    %v1939 = vpop.f32.mrf.mxu0
    %v1940 = vadd.f32 0.0, %v1939
    %v1941 = vpop.f32.mrf.mxu0
    %1942 = vmatprep.mubr.f32.mxu0 0.0
    %1943 = vmatmul.mubr.f32.gmra.mxu0 %v1350
    %v1944 = vpop.f32.mrf.mxu0
    %v1945 = vadd.f32 0.0, %v1944
    %v1946 = vpop.f32.mrf.mxu0
    %1947 = vmatprep.mubr.f32.mxu0 0.0
    %1948 = vmatmul.mubr.f32.gmra.mxu0 %v1353
    %v1949 = vpop.f32.mrf.mxu0
    %v1950 = vpop.f32.mrf.mxu0
    %1951 = vmatprep.mubr.f32.mxu0 0.0
    %1952 = vmatmul.mubr.f32.gmra.mxu0 %v1356
    %v1953 = vpop.f32.mrf.mxu0
    %v1954 = vpop.f32.mrf.mxu0
    %1955 = vmatprep.mubr.f32.mxu0 0.0
    %1956 = vmatmul.mubr.f32.gmra.mxu0 %v1359
    %v1957 = vpop.f32.mrf.mxu0
    %v1958 = vpop.f32.mrf.mxu0
    %1959 = vmatprep.mubr.f32.mxu0 0.0
    %1960 = vmatmul.mubr.f32.gmra.mxu0 %v1362
    %v1961 = vpop.f32.mrf.mxu0
    %v1962 = vpop.f32.mrf.mxu0
    %1963 = vdwg.mxu0
    %v1964 = vmul.f32 %v1431, %v572
    %v1965 = vmul.f32 %v1433, %v574
    %v1966 = vmul.f32 %v1584, %v643
    %v1967 = vmul.f32 %v1586, %v645
    %v1968 = vmul.f32 %v1737, %v714
    %v1969 = vmul.f32 %v1739, %v716
    %v1970 = vmul.f32 %v1890, %v785
    %v1971 = vmul.f32 %v1437, %v787
    %v1972 = vmul.f32 %v1439, %v856
    %v1973 = vmul.f32 %v1590, %v858
    %v1974 = vmul.f32 %v1592, %v927
    %v1975 = vmul.f32 %v1743, %v929
    %v1976 = vmul.f32 %v1745, %v998
    %v1977 = vmul.f32 %v1895, %v1000
    %v1978 = vadd.f32 %v1964, %v1971
    %v1979 = vadd.f32 %v1965, %v1972
    %v1980 = vadd.f32 %v1966, %v1973
    %v1981 = vadd.f32 %v1967, %v1974
    %v1982 = vadd.f32 %v1968, %v1975
    %v1983 = vadd.f32 %v1969, %v1976
    %v1984 = vadd.f32 %v1970, %v1977
    %v1985 = vmul.f32 %v1443, %v1069
    %v1986 = vmul.f32 %v1445, %v1071
    %v1987 = vmul.f32 %v1596, %v1140
    %v1988 = vmul.f32 %v1598, %v1142
    %v1989 = vmul.f32 %v1749, %v1211
    %v1990 = vmul.f32 %v1751, %v1213
    %v1991 = vmul.f32 %v1900, %v1282
    %v1992 = vadd.f32 %v1978, %v1985
    %v1993 = vadd.f32 %v1979, %v1986
    %v1994 = vadd.f32 %v1980, %v1987
    %v1995 = vadd.f32 %v1981, %v1988
    %v1996 = vadd.f32 %v1982, %v1989
    %v1997 = vadd.f32 %v1983, %v1990
    %v1998 = vadd.f32 %v1984, %v1991
    %v1999 = vadd.f32 %v1992, %v1449
    %v2000 = vadd.f32 %v1993, %v1451
    %v2001 = vadd.f32 %v1994, %v1602
    %v2002 = vadd.f32 %v1995, %v1604
    %v2003 = vadd.f32 %v1996, %v1755
    %v2004 = vadd.f32 %v1997, %v1757
    %v2005 = vadd.f32 %v1998, %v1905
    %v2006 = vmul.f32 %v1455, %v572
    %v2007 = vmul.f32 %v1457, %v574
    %v2008 = vmul.f32 %v1608, %v643
    %v2009 = vmul.f32 %v1610, %v645
    %v2010 = vmul.f32 %v1761, %v714
    %v2011 = vmul.f32 %v1763, %v716
    %v2012 = vmul.f32 %v1910, %v785
    %v2013 = vmul.f32 %v1461, %v787
    %v2014 = vmul.f32 %v1463, %v856
    %v2015 = vmul.f32 %v1614, %v858
    %v2016 = vmul.f32 %v1616, %v927
    %v2017 = vmul.f32 %v1767, %v929
    %v2018 = vmul.f32 %v1769, %v998
    %v2019 = vmul.f32 %v1915, %v1000
    %v2020 = vadd.f32 %v2006, %v2013
    %v2021 = vadd.f32 %v2007, %v2014
    %v2022 = vadd.f32 %v2008, %v2015
    %v2023 = vadd.f32 %v2009, %v2016
    %v2024 = vadd.f32 %v2010, %v2017
    %v2025 = vadd.f32 %v2011, %v2018
    %v2026 = vadd.f32 %v2012, %v2019
    %v2027 = vmul.f32 %v1467, %v1069
    %v2028 = vmul.f32 %v1469, %v1071
    %v2029 = vmul.f32 %v1620, %v1140
    %v2030 = vmul.f32 %v1622, %v1142
    %v2031 = vmul.f32 %v1773, %v1211
    %v2032 = vmul.f32 %v1775, %v1213
    %v2033 = vmul.f32 %v1920, %v1282
    %v2034 = vadd.f32 %v2020, %v2027
    %v2035 = vadd.f32 %v2021, %v2028
    %v2036 = vadd.f32 %v2022, %v2029
    %v2037 = vadd.f32 %v2023, %v2030
    %v2038 = vadd.f32 %v2024, %v2031
    %v2039 = vadd.f32 %v2025, %v2032
    %v2040 = vadd.f32 %v2026, %v2033
    %v2041 = vadd.f32 %v2034, %v1473
    %v2042 = vadd.f32 %v2035, %v1475
    %v2043 = vadd.f32 %v2036, %v1626
    %v2044 = vadd.f32 %v2037, %v1628
    %v2045 = vadd.f32 %v2038, %v1779
    %v2046 = vadd.f32 %v2039, %v1781
    %v2047 = vadd.f32 %v2040, %v1925
    %v2048 = vmul.f32 %v1479, %v572
    %v2049 = vmul.f32 %v1481, %v574
    %v2050 = vmul.f32 %v1632, %v643
    %v2051 = vmul.f32 %v1634, %v645
    %v2052 = vmul.f32 %v1785, %v714
    %v2053 = vmul.f32 %v1787, %v716
    %v2054 = vmul.f32 %v1930, %v785
    %v2055 = vmul.f32 %v1485, %v787
    %v2056 = vmul.f32 %v1487, %v856
    %v2057 = vmul.f32 %v1638, %v858
    %v2058 = vmul.f32 %v1640, %v927
    %v2059 = vmul.f32 %v1791, %v929
    %v2060 = vmul.f32 %v1793, %v998
    %v2061 = vmul.f32 %v1935, %v1000
    %v2062 = vadd.f32 %v2048, %v2055
    %v2063 = vadd.f32 %v2049, %v2056
    %v2064 = vadd.f32 %v2050, %v2057
    %v2065 = vadd.f32 %v2051, %v2058
    %v2066 = vadd.f32 %v2052, %v2059
    %v2067 = vadd.f32 %v2053, %v2060
    %v2068 = vadd.f32 %v2054, %v2061
    %v2069 = vmul.f32 %v1491, %v1069
    %v2070 = vmul.f32 %v1493, %v1071
    %v2071 = vmul.f32 %v1644, %v1140
    %v2072 = vmul.f32 %v1646, %v1142
    %v2073 = vmul.f32 %v1797, %v1211
    %v2074 = vmul.f32 %v1799, %v1213
    %v2075 = vmul.f32 %v1940, %v1282
    %v2076 = vadd.f32 %v2062, %v2069
    %v2077 = vadd.f32 %v2063, %v2070
    %v2078 = vadd.f32 %v2064, %v2071
    %v2079 = vadd.f32 %v2065, %v2072
    %v2080 = vadd.f32 %v2066, %v2073
    %v2081 = vadd.f32 %v2067, %v2074
    %v2082 = vadd.f32 %v2068, %v2075
    %v2083 = vadd.f32 %v2076, %v1497
    %v2084 = vadd.f32 %v2077, %v1499
    %v2085 = vadd.f32 %v2078, %v1650
    %v2086 = vadd.f32 %v2079, %v1652
    %v2087 = vadd.f32 %v2080, %v1803
    %v2088 = vadd.f32 %v2081, %v1805
    %v2089 = vadd.f32 %v2082, %v1945
    %2090 = vst [vmem:[%s5] sm:$0xff] %v1999
    %2091 = vst [vmem:[%s5 + $0x8] sm:$0xff] %v2000
    %2092 = vst [vmem:[%s5 + $0x10] sm:$0xff] %v2001
    %2093 = vst [vmem:[%s5 + $0x18] sm:$0xff] %v2002
    %2094 = vst [vmem:[%s5 + $0x20] sm:$0xff] %v2003
    %2095 = vst [vmem:[%s5 + $0x28] sm:$0xff] %v2004
    %2096 = vst [vmem:[%s5 + $0x30] sm:$0xff] %v2005
    %s2097 = scalar_lea.vmem %s5, 56
    %2098 = vst [vmem:[%s2097] sm:$0xff] %v2041
    %2099 = vst [vmem:[%s2097 + $0x8] sm:$0xff] %v2042
    %2100 = vst [vmem:[%s2097 + $0x10] sm:$0xff] %v2043
    %2101 = vst [vmem:[%s2097 + $0x18] sm:$0xff] %v2044
    %2102 = vst [vmem:[%s2097 + $0x20] sm:$0xff] %v2045
    %2103 = vst [vmem:[%s2097 + $0x28] sm:$0xff] %v2046
    %2104 = vst [vmem:[%s2097 + $0x30] sm:$0xff] %v2047
    %s2105 = scalar_lea.vmem %s5, 112
    %2106 = vst [vmem:[%s2105] sm:$0xff] %v2083
    %2107 = vst [vmem:[%s2105 + $0x8] sm:$0xff] %v2084
    %2108 = vst [vmem:[%s2105 + $0x10] sm:$0xff] %v2085
    %2109 = vst [vmem:[%s2105 + $0x18] sm:$0xff] %v2086
    %2110 = vst [vmem:[%s2105 + $0x20] sm:$0xff] %v2087
    %2111 = vst [vmem:[%s2105 + $0x28] sm:$0xff] %v2088
    %2112 = vst [vmem:[%s2105 + $0x30] sm:$0xff] %v2089
    %v2113 = vld [vmem:[#allocation2] sm:$0xff]
    %v2114 = vld [vmem:[#allocation2 + $0x8] sm:$0xff]
    %v2115 = vld [vmem:[#allocation2 + $0x10] sm:$0xff]
    %v2116 = vld [vmem:[#allocation2 + $0x18] sm:$0xff]
    %v2117 = vld [vmem:[#allocation2 + $0x20] sm:$0xff]
    %v2118 = vld [vmem:[#allocation2 + $0x28] sm:$0xff]
    %v2119 = vld [vmem:[#allocation2 + $0x30] sm:$0xff]
    %v2120 = vld [vmem:[#allocation2 + $0x38] sm:$0xff]
    %v2121 = vld [vmem:[#allocation2 + $0x40] sm:$0xff]
    %v2122 = vld [vmem:[#allocation2 + $0x48] sm:$0xff]
    %v2123 = vld [vmem:[#allocation2 + $0x50] sm:$0xff]
    %v2124 = vld [vmem:[#allocation2 + $0x58] sm:$0xff]
    %v2125 = vld [vmem:[#allocation2 + $0x60] sm:$0xff]
    %v2126 = vld [vmem:[#allocation2 + $0x68] sm:$0xff]
    %v2127 = vld [vmem:[#allocation2 + $0x70] sm:$0xff]
    %v2128 = vld [vmem:[#allocation2 + $0x78] sm:$0xff]
    %v2129 = vld [vmem:[#allocation2 + $0x80] sm:$0xff]
    %v2130 = vld [vmem:[#allocation2 + $0x88] sm:$0xff]
    %v2131 = vld [vmem:[#allocation2 + $0x90] sm:$0xff]
    %v2132 = vld [vmem:[#allocation2 + $0x98] sm:$0xff]
    %v2133 = vld [vmem:[#allocation2 + $0xa0] sm:$0xff]
    %v2134 = vld [vmem:[#allocation2 + $0xa8] sm:$0xff]
    %v2135 = vld [vmem:[#allocation2 + $0xb0] sm:$0xff]
    %v2136 = vld [vmem:[#allocation2 + $0xb8] sm:$0xff]
    %v2137 = vld [vmem:[#allocation2 + $0xc0] sm:$0xff]
    %v2138 = vld [vmem:[#allocation2 + $0xc8] sm:$0xff]
    %v2139 = vld [vmem:[#allocation2 + $0xd0] sm:$0xff]
    %v2140 = vld [vmem:[#allocation2 + $0xd8] sm:$0xff]
    %v2141 = vld [vmem:[#allocation2 + $0xe0] sm:$0xff]
    %v2142 = vld [vmem:[#allocation2 + $0xe8] sm:$0xff]
    %v2143 = vld [vmem:[#allocation2 + $0xf0] sm:$0xff]
    %v2144 = vld [vmem:[#allocation2 + $0xf8] sm:$0xff]
    %v2145 = vld [vmem:[#allocation2 + $0x100] sm:$0xff]
    %v2146 = vld [vmem:[#allocation2 + $0x108] sm:$0xff]
    %v2147 = vld [vmem:[#allocation2 + $0x110] sm:$0xff]
    %v2148 = vld [vmem:[#allocation2 + $0x118] sm:$0xff]
    %v2149 = vld [vmem:[#allocation2 + $0x120] sm:$0xff]
    %v2150 = vld [vmem:[#allocation2 + $0x128] sm:$0xff]
    %v2151 = vld [vmem:[#allocation2 + $0x130] sm:$0xff]
    %v2152 = vld [vmem:[#allocation2 + $0x138] sm:$0xff]
    %v2153 = vld [vmem:[#allocation2 + $0x140] sm:$0xff]
    %v2154 = vld [vmem:[#allocation2 + $0x148] sm:$0xff]
    %v2155 = vld [vmem:[#allocation2 + $0x150] sm:$0xff]
    %v2156 = vld [vmem:[#allocation2 + $0x158] sm:$0xff]
    %v2157 = vld [vmem:[#allocation2 + $0x160] sm:$0xff]
    %v2158 = vld [vmem:[#allocation2 + $0x168] sm:$0xff]
    %v2159 = vld [vmem:[#allocation2 + $0x170] sm:$0xff]
    %v2160 = vld [vmem:[#allocation2 + $0x178] sm:$0xff]
    %v2161 = vld [vmem:[#allocation2 + $0x180] sm:$0xff]
    %v2162 = vld [vmem:[#allocation2 + $0x188] sm:$0xff]
    %v2163 = vld [vmem:[#allocation2 + $0x190] sm:$0xff]
    %v2164 = vld [vmem:[#allocation2 + $0x198] sm:$0xff]
    %v2165 = vld [vmem:[#allocation2 + $0x1a0] sm:$0xff]
    %v2166 = vld [vmem:[#allocation2 + $0x1a8] sm:$0xff]
    %v2167 = vld [vmem:[#allocation2 + $0x1b0] sm:$0xff]
    %v2168 = vld [vmem:[#allocation2 + $0x1b8] sm:$0xff]
    %v2169 = vld [vmem:[#allocation2 + $0x1c0] sm:$0xff]
    %v2170 = vld [vmem:[#allocation2 + $0x1c8] sm:$0xff]
    %v2171 = vld [vmem:[#allocation2 + $0x1d0] sm:$0xff]
    %v2172 = vld [vmem:[#allocation2 + $0x1d8] sm:$0xff]
    %v2173 = vld [vmem:[#allocation2 + $0x1e0] sm:$0xff]
    %v2174 = vld [vmem:[#allocation2 + $0x1e8] sm:$0xff]
    %v2175 = vld [vmem:[#allocation2 + $0x1f0] sm:$0xff]
    %v2176 = vld [vmem:[#allocation2 + $0x1f8] sm:$0xff]
    %v2177 = vld [vmem:[#allocation2 + $0x200] sm:$0xff]
    %v2178 = vld [vmem:[#allocation2 + $0x208] sm:$0xff]
    %v2179 = vld [vmem:[#allocation2 + $0x210] sm:$0xff]
    %v2180 = vld [vmem:[#allocation2 + $0x218] sm:$0xff]
    %v2181 = vld [vmem:[#allocation2 + $0x220] sm:$0xff]
    %v2182 = vld [vmem:[#allocation2 + $0x228] sm:$0xff]
    %v2183 = vld [vmem:[#allocation2 + $0x230] sm:$0xff]
    %v2184 = vld [vmem:[#allocation2 + $0x238] sm:$0xff]
    %v2185 = vld [vmem:[#allocation2 + $0x240] sm:$0xff]
    %v2186 = vld [vmem:[#allocation2 + $0x248] sm:$0xff]
    %v2187 = vld [vmem:[#allocation2 + $0x250] sm:$0xff]
    %v2188 = vld [vmem:[#allocation2 + $0x258] sm:$0xff]
    %v2189 = vld [vmem:[#allocation2 + $0x260] sm:$0xff]
    %v2190 = vld [vmem:[#allocation2 + $0x268] sm:$0xff]
    %v2191 = vld [vmem:[#allocation2 + $0x270] sm:$0xff]
    %v2192 = vld [vmem:[#allocation2 + $0x278] sm:$0xff]
    %v2193 = vld [vmem:[#allocation2 + $0x280] sm:$0xff]
    %v2194 = vld [vmem:[#allocation2 + $0x288] sm:$0xff]
    %v2195 = vld [vmem:[#allocation2 + $0x290] sm:$0xff]
    %v2196 = vld [vmem:[#allocation2 + $0x298] sm:$0xff]
    %v2197 = vld [vmem:[#allocation2 + $0x2a0] sm:$0xff]
    %v2198 = vld [vmem:[#allocation2 + $0x2a8] sm:$0xff]
    %v2199 = vld [vmem:[#allocation2 + $0x2b0] sm:$0xff]
    %v2200 = vld [vmem:[#allocation2 + $0x2b8] sm:$0xff]
    %v2201 = vld [vmem:[#allocation2 + $0x2c0] sm:$0xff]
    %v2202 = vld [vmem:[#allocation2 + $0x2c8] sm:$0xff]
    %v2203 = vld [vmem:[#allocation2 + $0x2d0] sm:$0xff]
    %v2204 = vld [vmem:[#allocation2 + $0x2d8] sm:$0xff]
    %v2205 = vld [vmem:[#allocation2 + $0x2e0] sm:$0xff]
    %v2206 = vld [vmem:[#allocation2 + $0x2e8] sm:$0xff]
    %v2207 = vld [vmem:[#allocation2 + $0x2f0] sm:$0xff]
    %v2208 = vld [vmem:[#allocation2 + $0x2f8] sm:$0xff]
    %v2209 = vld [vmem:[#allocation2 + $0x300] sm:$0xff]
    %v2210 = vld [vmem:[#allocation2 + $0x308] sm:$0xff]
    %v2211 = vld [vmem:[#allocation2 + $0x310] sm:$0xff]
    %v2212 = vld [vmem:[#allocation2 + $0x318] sm:$0xff]
    %v2213 = vld [vmem:[#allocation2 + $0x320] sm:$0xff]
    %v2214 = vld [vmem:[#allocation2 + $0x328] sm:$0xff]
    %v2215 = vld [vmem:[#allocation2 + $0x330] sm:$0xff]
    %v2216 = vld [vmem:[#allocation2 + $0x338] sm:$0xff]
    %v2217 = vld [vmem:[#allocation2 + $0x340] sm:$0xff]
    %v2218 = vld [vmem:[#allocation2 + $0x348] sm:$0xff]
    %v2219 = vld [vmem:[#allocation2 + $0x350] sm:$0xff]
    %v2220 = vld [vmem:[#allocation2 + $0x358] sm:$0xff]
    %v2221 = vld [vmem:[#allocation2 + $0x360] sm:$0xff]
    %v2222 = vld [vmem:[#allocation2 + $0x368] sm:$0xff]
    %v2223 = vld [vmem:[#allocation2 + $0x370] sm:$0xff]
    %v2224 = vld [vmem:[#allocation2 + $0x378] sm:$0xff]
    %2225 = vmatprep.subr.mxu0 0.0
    %2226 = vmatpush1.msra.mxu0 %v2128
    %2227 = vmatprep.subr.mxu0 0.0
    %2228 = vmatpush1.msra.mxu0 %v2127
    %2229 = vmatprep.subr.mxu0 0.0
    %2230 = vmatpush1.msra.mxu0 %v2126
    %2231 = vmatprep.subr.mxu0 0.0
    %2232 = vmatpush1.msra.mxu0 %v2125
    %2233 = vmatprep.subr.mxu0 0.0
    %2234 = vmatpush1.msra.mxu0 %v2124
    %2235 = vmatprep.subr.mxu0 0.0
    %2236 = vmatpush1.msra.mxu0 %v2123
    %2237 = vmatprep.subr.mxu0 0.0
    %2238 = vmatpush1.msra.mxu0 %v2122
    %2239 = vmatprep.subr.mxu0 0.0
    %2240 = vmatpush1.msra.mxu0 %v2121
    %2241 = vmatprep.subr.mxu0 0.0
    %2242 = vmatpush1.msra.mxu0 %v2120
    %2243 = vmatprep.subr.mxu0 0.0
    %2244 = vmatpush1.msra.mxu0 %v2119
    %2245 = vmatprep.subr.mxu0 0.0
    %2246 = vmatpush1.msra.mxu0 %v2118
    %2247 = vmatprep.subr.mxu0 0.0
    %2248 = vmatpush1.msra.mxu0 %v2117
    %2249 = vmatprep.subr.mxu0 0.0
    %2250 = vmatpush1.msra.mxu0 %v2116
    %2251 = vmatprep.subr.mxu0 0.0
    %2252 = vmatpush1.msra.mxu0 %v2115
    %2253 = vmatprep.subr.mxu0 0.0
    %2254 = vmatpush1.msra.mxu0 %v2114
    %2255 = vmatprep.subr.mxu0 0.0
    %2256 = vmatpush1.msra.mxu0 %v2113
    %2257 = vmatprep.subr.mxu0 0.0
    %2258 = vmatpush2.msra.mxu0 %v2144
    %2259 = vmatprep.subr.mxu0 0.0
    %2260 = vmatpush2.msra.mxu0 %v2143
    %2261 = vmatprep.subr.mxu0 0.0
    %2262 = vmatpush2.msra.mxu0 %v2142
    %2263 = vmatprep.subr.mxu0 0.0
    %2264 = vmatpush2.msra.mxu0 %v2141
    %2265 = vmatprep.subr.mxu0 0.0
    %2266 = vmatpush2.msra.mxu0 %v2140
    %2267 = vmatprep.subr.mxu0 0.0
    %2268 = vmatpush2.msra.mxu0 %v2139
    %2269 = vmatprep.subr.mxu0 0.0
    %2270 = vmatpush2.msra.mxu0 %v2138
    %2271 = vmatprep.subr.mxu0 0.0
    %2272 = vmatpush2.msra.mxu0 %v2137
    %2273 = vmatprep.subr.mxu0 0.0
    %2274 = vmatpush2.msra.mxu0 %v2136
    %2275 = vmatprep.subr.mxu0 0.0
    %2276 = vmatpush2.msra.mxu0 %v2135
    %2277 = vmatprep.subr.mxu0 0.0
    %2278 = vmatpush2.msra.mxu0 %v2134
    %2279 = vmatprep.subr.mxu0 0.0
    %2280 = vmatpush2.msra.mxu0 %v2133
    %2281 = vmatprep.subr.mxu0 0.0
    %2282 = vmatpush2.msra.mxu0 %v2132
    %2283 = vmatprep.subr.mxu0 0.0
    %2284 = vmatpush2.msra.mxu0 %v2131
    %2285 = vmatprep.subr.mxu0 0.0
    %2286 = vmatpush2.msra.mxu0 %v2130
    %2287 = vmatprep.subr.mxu0 0.0
    %2288 = vmatpush2.msra.mxu0 %v2129
    %2289 = vmatprep.mubr.f32.mxu0 %v2000
    %2290 = vmatmul.mubr.f32.gmra.mxu0 %v1999
    %v2291 = vpop.f32.mrf.mxu0
    %v2292 = vadd.f32 0.0, %v2291
    %v2293 = vpop.f32.mrf.mxu0
    %2294 = vdwg.mxu0
    %2295 = vmatprep.subr.mxu0 0.0
    %2296 = vmatpush1.msra.mxu0 %v2160
    %2297 = vmatprep.subr.mxu0 0.0
    %2298 = vmatpush1.msra.mxu0 %v2159
    %2299 = vmatprep.subr.mxu0 0.0
    %2300 = vmatpush1.msra.mxu0 %v2158
    %2301 = vmatprep.subr.mxu0 0.0
    %2302 = vmatpush1.msra.mxu0 %v2157
    %2303 = vmatprep.subr.mxu0 0.0
    %2304 = vmatpush1.msra.mxu0 %v2156
    %2305 = vmatprep.subr.mxu0 0.0
    %2306 = vmatpush1.msra.mxu0 %v2155
    %2307 = vmatprep.subr.mxu0 0.0
    %2308 = vmatpush1.msra.mxu0 %v2154
    %2309 = vmatprep.subr.mxu0 0.0
    %2310 = vmatpush1.msra.mxu0 %v2153
    %2311 = vmatprep.subr.mxu0 0.0
    %2312 = vmatpush1.msra.mxu0 %v2152
    %2313 = vmatprep.subr.mxu0 0.0
    %2314 = vmatpush1.msra.mxu0 %v2151
    %2315 = vmatprep.subr.mxu0 0.0
    %2316 = vmatpush1.msra.mxu0 %v2150
    %2317 = vmatprep.subr.mxu0 0.0
    %2318 = vmatpush1.msra.mxu0 %v2149
    %2319 = vmatprep.subr.mxu0 0.0
    %2320 = vmatpush1.msra.mxu0 %v2148
    %2321 = vmatprep.subr.mxu0 0.0
    %2322 = vmatpush1.msra.mxu0 %v2147
    %2323 = vmatprep.subr.mxu0 0.0
    %2324 = vmatpush1.msra.mxu0 %v2146
    %2325 = vmatprep.subr.mxu0 0.0
    %2326 = vmatpush1.msra.mxu0 %v2145
    %2327 = vmatprep.subr.mxu0 0.0
    %2328 = vmatpush2.msra.mxu0 %v2176
    %2329 = vmatprep.subr.mxu0 0.0
    %2330 = vmatpush2.msra.mxu0 %v2175
    %2331 = vmatprep.subr.mxu0 0.0
    %2332 = vmatpush2.msra.mxu0 %v2174
    %2333 = vmatprep.subr.mxu0 0.0
    %2334 = vmatpush2.msra.mxu0 %v2173
    %2335 = vmatprep.subr.mxu0 0.0
    %2336 = vmatpush2.msra.mxu0 %v2172
    %2337 = vmatprep.subr.mxu0 0.0
    %2338 = vmatpush2.msra.mxu0 %v2171
    %2339 = vmatprep.subr.mxu0 0.0
    %2340 = vmatpush2.msra.mxu0 %v2170
    %2341 = vmatprep.subr.mxu0 0.0
    %2342 = vmatpush2.msra.mxu0 %v2169
    %2343 = vmatprep.subr.mxu0 0.0
    %2344 = vmatpush2.msra.mxu0 %v2168
    %2345 = vmatprep.subr.mxu0 0.0
    %2346 = vmatpush2.msra.mxu0 %v2167
    %2347 = vmatprep.subr.mxu0 0.0
    %2348 = vmatpush2.msra.mxu0 %v2166
    %2349 = vmatprep.subr.mxu0 0.0
    %2350 = vmatpush2.msra.mxu0 %v2165
    %2351 = vmatprep.subr.mxu0 0.0
    %2352 = vmatpush2.msra.mxu0 %v2164
    %2353 = vmatprep.subr.mxu0 0.0
    %2354 = vmatpush2.msra.mxu0 %v2163
    %2355 = vmatprep.subr.mxu0 0.0
    %2356 = vmatpush2.msra.mxu0 %v2162
    %2357 = vmatprep.subr.mxu0 0.0
    %2358 = vmatpush2.msra.mxu0 %v2161
    %2359 = vmatprep.mubr.f32.mxu0 %v2002
    %2360 = vmatmul.mubr.f32.gmra.mxu0 %v2001
    %v2361 = vpop.f32.mrf.mxu0
    %v2362 = vadd.f32 %v2292, %v2361
    %v2363 = vpop.f32.mrf.mxu0
    %2364 = vdwg.mxu0
    %2365 = vmatprep.subr.mxu0 0.0
    %2366 = vmatpush1.msra.mxu0 %v2192
    %2367 = vmatprep.subr.mxu0 0.0
    %2368 = vmatpush1.msra.mxu0 %v2191
    %2369 = vmatprep.subr.mxu0 0.0
    %2370 = vmatpush1.msra.mxu0 %v2190
    %2371 = vmatprep.subr.mxu0 0.0
    %2372 = vmatpush1.msra.mxu0 %v2189
    %2373 = vmatprep.subr.mxu0 0.0
    %2374 = vmatpush1.msra.mxu0 %v2188
    %2375 = vmatprep.subr.mxu0 0.0
    %2376 = vmatpush1.msra.mxu0 %v2187
    %2377 = vmatprep.subr.mxu0 0.0
    %2378 = vmatpush1.msra.mxu0 %v2186
    %2379 = vmatprep.subr.mxu0 0.0
    %2380 = vmatpush1.msra.mxu0 %v2185
    %2381 = vmatprep.subr.mxu0 0.0
    %2382 = vmatpush1.msra.mxu0 %v2184
    %2383 = vmatprep.subr.mxu0 0.0
    %2384 = vmatpush1.msra.mxu0 %v2183
    %2385 = vmatprep.subr.mxu0 0.0
    %2386 = vmatpush1.msra.mxu0 %v2182
    %2387 = vmatprep.subr.mxu0 0.0
    %2388 = vmatpush1.msra.mxu0 %v2181
    %2389 = vmatprep.subr.mxu0 0.0
    %2390 = vmatpush1.msra.mxu0 %v2180
    %2391 = vmatprep.subr.mxu0 0.0
    %2392 = vmatpush1.msra.mxu0 %v2179
    %2393 = vmatprep.subr.mxu0 0.0
    %2394 = vmatpush1.msra.mxu0 %v2178
    %2395 = vmatprep.subr.mxu0 0.0
    %2396 = vmatpush1.msra.mxu0 %v2177
    %2397 = vmatprep.subr.mxu0 0.0
    %2398 = vmatpush2.msra.mxu0 %v2208
    %2399 = vmatprep.subr.mxu0 0.0
    %2400 = vmatpush2.msra.mxu0 %v2207
    %2401 = vmatprep.subr.mxu0 0.0
    %2402 = vmatpush2.msra.mxu0 %v2206
    %2403 = vmatprep.subr.mxu0 0.0
    %2404 = vmatpush2.msra.mxu0 %v2205
    %2405 = vmatprep.subr.mxu0 0.0
    %2406 = vmatpush2.msra.mxu0 %v2204
    %2407 = vmatprep.subr.mxu0 0.0
    %2408 = vmatpush2.msra.mxu0 %v2203
    %2409 = vmatprep.subr.mxu0 0.0
    %2410 = vmatpush2.msra.mxu0 %v2202
    %2411 = vmatprep.subr.mxu0 0.0
    %2412 = vmatpush2.msra.mxu0 %v2201
    %2413 = vmatprep.subr.mxu0 0.0
    %2414 = vmatpush2.msra.mxu0 %v2200
    %2415 = vmatprep.subr.mxu0 0.0
    %2416 = vmatpush2.msra.mxu0 %v2199
    %2417 = vmatprep.subr.mxu0 0.0
    %2418 = vmatpush2.msra.mxu0 %v2198
    %2419 = vmatprep.subr.mxu0 0.0
    %2420 = vmatpush2.msra.mxu0 %v2197
    %2421 = vmatprep.subr.mxu0 0.0
    %2422 = vmatpush2.msra.mxu0 %v2196
    %2423 = vmatprep.subr.mxu0 0.0
    %2424 = vmatpush2.msra.mxu0 %v2195
    %2425 = vmatprep.subr.mxu0 0.0
    %2426 = vmatpush2.msra.mxu0 %v2194
    %2427 = vmatprep.subr.mxu0 0.0
    %2428 = vmatpush2.msra.mxu0 %v2193
    %2429 = vmatprep.mubr.f32.mxu0 %v2004
    %2430 = vmatmul.mubr.f32.gmra.mxu0 %v2003
    %v2431 = vpop.f32.mrf.mxu0
    %v2432 = vadd.f32 %v2362, %v2431
    %v2433 = vpop.f32.mrf.mxu0
    %2434 = vdwg.mxu0
    %2435 = vmatprep.subr.mxu0 0.0
    %2436 = vmatpush1.msra.mxu0 %v2224
    %2437 = vmatprep.subr.mxu0 0.0
    %2438 = vmatpush1.msra.mxu0 %v2223
    %2439 = vmatprep.subr.mxu0 0.0
    %2440 = vmatpush1.msra.mxu0 %v2222
    %2441 = vmatprep.subr.mxu0 0.0
    %2442 = vmatpush1.msra.mxu0 %v2221
    %2443 = vmatprep.subr.mxu0 0.0
    %2444 = vmatpush1.msra.mxu0 %v2220
    %2445 = vmatprep.subr.mxu0 0.0
    %2446 = vmatpush1.msra.mxu0 %v2219
    %2447 = vmatprep.subr.mxu0 0.0
    %2448 = vmatpush1.msra.mxu0 %v2218
    %2449 = vmatprep.subr.mxu0 0.0
    %2450 = vmatpush1.msra.mxu0 %v2217
    %2451 = vmatprep.subr.mxu0 0.0
    %2452 = vmatpush1.msra.mxu0 %v2216
    %2453 = vmatprep.subr.mxu0 0.0
    %2454 = vmatpush1.msra.mxu0 %v2215
    %2455 = vmatprep.subr.mxu0 0.0
    %2456 = vmatpush1.msra.mxu0 %v2214
    %2457 = vmatprep.subr.mxu0 0.0
    %2458 = vmatpush1.msra.mxu0 %v2213
    %2459 = vmatprep.subr.mxu0 0.0
    %2460 = vmatpush1.msra.mxu0 %v2212
    %2461 = vmatprep.subr.mxu0 0.0
    %2462 = vmatpush1.msra.mxu0 %v2211
    %2463 = vmatprep.subr.mxu0 0.0
    %2464 = vmatpush1.msra.mxu0 %v2210
    %2465 = vmatprep.subr.mxu0 0.0
    %2466 = vmatpush1.msra.mxu0 %v2209
    %2467 = vmatprep.subr.mxu0 0.0
    %2468 = vmatpush2.msra.mxu0 0.0
    %2469 = vmatprep.subr.mxu0 0.0
    %2470 = vmatpush2.msra.mxu0 0.0
    %2471 = vmatprep.subr.mxu0 0.0
    %2472 = vmatpush2.msra.mxu0 0.0
    %2473 = vmatprep.subr.mxu0 0.0
    %2474 = vmatpush2.msra.mxu0 0.0
    %2475 = vmatprep.subr.mxu0 0.0
    %2476 = vmatpush2.msra.mxu0 0.0
    %2477 = vmatprep.subr.mxu0 0.0
    %2478 = vmatpush2.msra.mxu0 0.0
    %2479 = vmatprep.subr.mxu0 0.0
    %2480 = vmatpush2.msra.mxu0 0.0
    %2481 = vmatprep.subr.mxu0 0.0
    %2482 = vmatpush2.msra.mxu0 0.0
    %2483 = vmatprep.subr.mxu0 0.0
    %2484 = vmatpush2.msra.mxu0 0.0
    %2485 = vmatprep.subr.mxu0 0.0
    %2486 = vmatpush2.msra.mxu0 0.0
    %2487 = vmatprep.subr.mxu0 0.0
    %2488 = vmatpush2.msra.mxu0 0.0
    %2489 = vmatprep.subr.mxu0 0.0
    %2490 = vmatpush2.msra.mxu0 0.0
    %2491 = vmatprep.subr.mxu0 0.0
    %2492 = vmatpush2.msra.mxu0 0.0
    %2493 = vmatprep.subr.mxu0 0.0
    %2494 = vmatpush2.msra.mxu0 0.0
    %2495 = vmatprep.subr.mxu0 0.0
    %2496 = vmatpush2.msra.mxu0 0.0
    %2497 = vmatprep.subr.mxu0 0.0
    %2498 = vmatpush2.msra.mxu0 0.0
    %2499 = vmatprep.mubr.f32.mxu0 0.0
    %2500 = vmatmul.mubr.f32.gmra.mxu0 %v2005
    %v2501 = vpop.f32.mrf.mxu0
    %v2502 = vadd.f32 %v2432, %v2501
    %v2503 = vpop.f32.mrf.mxu0
    %2504 = vdwg.mxu0
    %2505 = vst [vmem:[%s6] sm:$0xff] %v2502
    %2506 = vmatprep.subr.mxu0 0.0
    %2507 = vmatpush1.msra.mxu0 %v2128
    %2508 = vmatprep.subr.mxu0 0.0
    %2509 = vmatpush1.msra.mxu0 %v2127
    %2510 = vmatprep.subr.mxu0 0.0
    %2511 = vmatpush1.msra.mxu0 %v2126
    %2512 = vmatprep.subr.mxu0 0.0
    %2513 = vmatpush1.msra.mxu0 %v2125
    %2514 = vmatprep.subr.mxu0 0.0
    %2515 = vmatpush1.msra.mxu0 %v2124
    %2516 = vmatprep.subr.mxu0 0.0
    %2517 = vmatpush1.msra.mxu0 %v2123
    %2518 = vmatprep.subr.mxu0 0.0
    %2519 = vmatpush1.msra.mxu0 %v2122
    %2520 = vmatprep.subr.mxu0 0.0
    %2521 = vmatpush1.msra.mxu0 %v2121
    %2522 = vmatprep.subr.mxu0 0.0
    %2523 = vmatpush1.msra.mxu0 %v2120
    %2524 = vmatprep.subr.mxu0 0.0
    %2525 = vmatpush1.msra.mxu0 %v2119
    %2526 = vmatprep.subr.mxu0 0.0
    %2527 = vmatpush1.msra.mxu0 %v2118
    %2528 = vmatprep.subr.mxu0 0.0
    %2529 = vmatpush1.msra.mxu0 %v2117
    %2530 = vmatprep.subr.mxu0 0.0
    %2531 = vmatpush1.msra.mxu0 %v2116
    %2532 = vmatprep.subr.mxu0 0.0
    %2533 = vmatpush1.msra.mxu0 %v2115
    %2534 = vmatprep.subr.mxu0 0.0
    %2535 = vmatpush1.msra.mxu0 %v2114
    %2536 = vmatprep.subr.mxu0 0.0
    %2537 = vmatpush1.msra.mxu0 %v2113
    %2538 = vmatprep.subr.mxu0 0.0
    %2539 = vmatpush2.msra.mxu0 %v2144
    %2540 = vmatprep.subr.mxu0 0.0
    %2541 = vmatpush2.msra.mxu0 %v2143
    %2542 = vmatprep.subr.mxu0 0.0
    %2543 = vmatpush2.msra.mxu0 %v2142
    %2544 = vmatprep.subr.mxu0 0.0
    %2545 = vmatpush2.msra.mxu0 %v2141
    %2546 = vmatprep.subr.mxu0 0.0
    %2547 = vmatpush2.msra.mxu0 %v2140
    %2548 = vmatprep.subr.mxu0 0.0
    %2549 = vmatpush2.msra.mxu0 %v2139
    %2550 = vmatprep.subr.mxu0 0.0
    %2551 = vmatpush2.msra.mxu0 %v2138
    %2552 = vmatprep.subr.mxu0 0.0
    %2553 = vmatpush2.msra.mxu0 %v2137
    %2554 = vmatprep.subr.mxu0 0.0
    %2555 = vmatpush2.msra.mxu0 %v2136
    %2556 = vmatprep.subr.mxu0 0.0
    %2557 = vmatpush2.msra.mxu0 %v2135
    %2558 = vmatprep.subr.mxu0 0.0
    %2559 = vmatpush2.msra.mxu0 %v2134
    %2560 = vmatprep.subr.mxu0 0.0
    %2561 = vmatpush2.msra.mxu0 %v2133
    %2562 = vmatprep.subr.mxu0 0.0
    %2563 = vmatpush2.msra.mxu0 %v2132
    %2564 = vmatprep.subr.mxu0 0.0
    %2565 = vmatpush2.msra.mxu0 %v2131
    %2566 = vmatprep.subr.mxu0 0.0
    %2567 = vmatpush2.msra.mxu0 %v2130
    %2568 = vmatprep.subr.mxu0 0.0
    %2569 = vmatpush2.msra.mxu0 %v2129
    %2570 = vmatprep.mubr.f32.mxu0 %v2042
    %2571 = vmatmul.mubr.f32.gmra.mxu0 %v2041
    %v2572 = vpop.f32.mrf.mxu0
    %v2573 = vadd.f32 0.0, %v2572
    %v2574 = vpop.f32.mrf.mxu0
    %2575 = vdwg.mxu0
    %2576 = vmatprep.subr.mxu0 0.0
    %2577 = vmatpush1.msra.mxu0 %v2160
    %2578 = vmatprep.subr.mxu0 0.0
    %2579 = vmatpush1.msra.mxu0 %v2159
    %2580 = vmatprep.subr.mxu0 0.0
    %2581 = vmatpush1.msra.mxu0 %v2158
    %2582 = vmatprep.subr.mxu0 0.0
    %2583 = vmatpush1.msra.mxu0 %v2157
    %2584 = vmatprep.subr.mxu0 0.0
    %2585 = vmatpush1.msra.mxu0 %v2156
    %2586 = vmatprep.subr.mxu0 0.0
    %2587 = vmatpush1.msra.mxu0 %v2155
    %2588 = vmatprep.subr.mxu0 0.0
    %2589 = vmatpush1.msra.mxu0 %v2154
    %2590 = vmatprep.subr.mxu0 0.0
    %2591 = vmatpush1.msra.mxu0 %v2153
    %2592 = vmatprep.subr.mxu0 0.0
    %2593 = vmatpush1.msra.mxu0 %v2152
    %2594 = vmatprep.subr.mxu0 0.0
    %2595 = vmatpush1.msra.mxu0 %v2151
    %2596 = vmatprep.subr.mxu0 0.0
    %2597 = vmatpush1.msra.mxu0 %v2150
    %2598 = vmatprep.subr.mxu0 0.0
    %2599 = vmatpush1.msra.mxu0 %v2149
    %2600 = vmatprep.subr.mxu0 0.0
    %2601 = vmatpush1.msra.mxu0 %v2148
    %2602 = vmatprep.subr.mxu0 0.0
    %2603 = vmatpush1.msra.mxu0 %v2147
    %2604 = vmatprep.subr.mxu0 0.0
    %2605 = vmatpush1.msra.mxu0 %v2146
    %2606 = vmatprep.subr.mxu0 0.0
    %2607 = vmatpush1.msra.mxu0 %v2145
    %2608 = vmatprep.subr.mxu0 0.0
    %2609 = vmatpush2.msra.mxu0 %v2176
    %2610 = vmatprep.subr.mxu0 0.0
    %2611 = vmatpush2.msra.mxu0 %v2175
    %2612 = vmatprep.subr.mxu0 0.0
    %2613 = vmatpush2.msra.mxu0 %v2174
    %2614 = vmatprep.subr.mxu0 0.0
    %2615 = vmatpush2.msra.mxu0 %v2173
    %2616 = vmatprep.subr.mxu0 0.0
    %2617 = vmatpush2.msra.mxu0 %v2172
    %2618 = vmatprep.subr.mxu0 0.0
    %2619 = vmatpush2.msra.mxu0 %v2171
    %2620 = vmatprep.subr.mxu0 0.0
    %2621 = vmatpush2.msra.mxu0 %v2170
    %2622 = vmatprep.subr.mxu0 0.0
    %2623 = vmatpush2.msra.mxu0 %v2169
    %2624 = vmatprep.subr.mxu0 0.0
    %2625 = vmatpush2.msra.mxu0 %v2168
    %2626 = vmatprep.subr.mxu0 0.0
    %2627 = vmatpush2.msra.mxu0 %v2167
    %2628 = vmatprep.subr.mxu0 0.0
    %2629 = vmatpush2.msra.mxu0 %v2166
    %2630 = vmatprep.subr.mxu0 0.0
    %2631 = vmatpush2.msra.mxu0 %v2165
    %2632 = vmatprep.subr.mxu0 0.0
    %2633 = vmatpush2.msra.mxu0 %v2164
    %2634 = vmatprep.subr.mxu0 0.0
    %2635 = vmatpush2.msra.mxu0 %v2163
    %2636 = vmatprep.subr.mxu0 0.0
    %2637 = vmatpush2.msra.mxu0 %v2162
    %2638 = vmatprep.subr.mxu0 0.0
    %2639 = vmatpush2.msra.mxu0 %v2161
    %2640 = vmatprep.mubr.f32.mxu0 %v2044
    %2641 = vmatmul.mubr.f32.gmra.mxu0 %v2043
    %v2642 = vpop.f32.mrf.mxu0
    %v2643 = vadd.f32 %v2573, %v2642
    %v2644 = vpop.f32.mrf.mxu0
    %2645 = vdwg.mxu0
    %2646 = vmatprep.subr.mxu0 0.0
    %2647 = vmatpush1.msra.mxu0 %v2192
    %2648 = vmatprep.subr.mxu0 0.0
    %2649 = vmatpush1.msra.mxu0 %v2191
    %2650 = vmatprep.subr.mxu0 0.0
    %2651 = vmatpush1.msra.mxu0 %v2190
    %2652 = vmatprep.subr.mxu0 0.0
    %2653 = vmatpush1.msra.mxu0 %v2189
    %2654 = vmatprep.subr.mxu0 0.0
    %2655 = vmatpush1.msra.mxu0 %v2188
    %2656 = vmatprep.subr.mxu0 0.0
    %2657 = vmatpush1.msra.mxu0 %v2187
    %2658 = vmatprep.subr.mxu0 0.0
    %2659 = vmatpush1.msra.mxu0 %v2186
    %2660 = vmatprep.subr.mxu0 0.0
    %2661 = vmatpush1.msra.mxu0 %v2185
    %2662 = vmatprep.subr.mxu0 0.0
    %2663 = vmatpush1.msra.mxu0 %v2184
    %2664 = vmatprep.subr.mxu0 0.0
    %2665 = vmatpush1.msra.mxu0 %v2183
    %2666 = vmatprep.subr.mxu0 0.0
    %2667 = vmatpush1.msra.mxu0 %v2182
    %2668 = vmatprep.subr.mxu0 0.0
    %2669 = vmatpush1.msra.mxu0 %v2181
    %2670 = vmatprep.subr.mxu0 0.0
    %2671 = vmatpush1.msra.mxu0 %v2180
    %2672 = vmatprep.subr.mxu0 0.0
    %2673 = vmatpush1.msra.mxu0 %v2179
    %2674 = vmatprep.subr.mxu0 0.0
    %2675 = vmatpush1.msra.mxu0 %v2178
    %2676 = vmatprep.subr.mxu0 0.0
    %2677 = vmatpush1.msra.mxu0 %v2177
    %2678 = vmatprep.subr.mxu0 0.0
    %2679 = vmatpush2.msra.mxu0 %v2208
    %2680 = vmatprep.subr.mxu0 0.0
    %2681 = vmatpush2.msra.mxu0 %v2207
    %2682 = vmatprep.subr.mxu0 0.0
    %2683 = vmatpush2.msra.mxu0 %v2206
    %2684 = vmatprep.subr.mxu0 0.0
    %2685 = vmatpush2.msra.mxu0 %v2205
    %2686 = vmatprep.subr.mxu0 0.0
    %2687 = vmatpush2.msra.mxu0 %v2204
    %2688 = vmatprep.subr.mxu0 0.0
    %2689 = vmatpush2.msra.mxu0 %v2203
    %2690 = vmatprep.subr.mxu0 0.0
    %2691 = vmatpush2.msra.mxu0 %v2202
    %2692 = vmatprep.subr.mxu0 0.0
    %2693 = vmatpush2.msra.mxu0 %v2201
    %2694 = vmatprep.subr.mxu0 0.0
    %2695 = vmatpush2.msra.mxu0 %v2200
    %2696 = vmatprep.subr.mxu0 0.0
    %2697 = vmatpush2.msra.mxu0 %v2199
    %2698 = vmatprep.subr.mxu0 0.0
    %2699 = vmatpush2.msra.mxu0 %v2198
    %2700 = vmatprep.subr.mxu0 0.0
    %2701 = vmatpush2.msra.mxu0 %v2197
    %2702 = vmatprep.subr.mxu0 0.0
    %2703 = vmatpush2.msra.mxu0 %v2196
    %2704 = vmatprep.subr.mxu0 0.0
    %2705 = vmatpush2.msra.mxu0 %v2195
    %2706 = vmatprep.subr.mxu0 0.0
    %2707 = vmatpush2.msra.mxu0 %v2194
    %2708 = vmatprep.subr.mxu0 0.0
    %2709 = vmatpush2.msra.mxu0 %v2193
    %2710 = vmatprep.mubr.f32.mxu0 %v2046
    %2711 = vmatmul.mubr.f32.gmra.mxu0 %v2045
    %v2712 = vpop.f32.mrf.mxu0
    %v2713 = vadd.f32 %v2643, %v2712
    %v2714 = vpop.f32.mrf.mxu0
    %2715 = vdwg.mxu0
    %2716 = vmatprep.subr.mxu0 0.0
    %2717 = vmatpush1.msra.mxu0 %v2224
    %2718 = vmatprep.subr.mxu0 0.0
    %2719 = vmatpush1.msra.mxu0 %v2223
    %2720 = vmatprep.subr.mxu0 0.0
    %2721 = vmatpush1.msra.mxu0 %v2222
    %2722 = vmatprep.subr.mxu0 0.0
    %2723 = vmatpush1.msra.mxu0 %v2221
    %2724 = vmatprep.subr.mxu0 0.0
    %2725 = vmatpush1.msra.mxu0 %v2220
    %2726 = vmatprep.subr.mxu0 0.0
    %2727 = vmatpush1.msra.mxu0 %v2219
    %2728 = vmatprep.subr.mxu0 0.0
    %2729 = vmatpush1.msra.mxu0 %v2218
    %2730 = vmatprep.subr.mxu0 0.0
    %2731 = vmatpush1.msra.mxu0 %v2217
    %2732 = vmatprep.subr.mxu0 0.0
    %2733 = vmatpush1.msra.mxu0 %v2216
    %2734 = vmatprep.subr.mxu0 0.0
    %2735 = vmatpush1.msra.mxu0 %v2215
    %2736 = vmatprep.subr.mxu0 0.0
    %2737 = vmatpush1.msra.mxu0 %v2214
    %2738 = vmatprep.subr.mxu0 0.0
    %2739 = vmatpush1.msra.mxu0 %v2213
    %2740 = vmatprep.subr.mxu0 0.0
    %2741 = vmatpush1.msra.mxu0 %v2212
    %2742 = vmatprep.subr.mxu0 0.0
    %2743 = vmatpush1.msra.mxu0 %v2211
    %2744 = vmatprep.subr.mxu0 0.0
    %2745 = vmatpush1.msra.mxu0 %v2210
    %2746 = vmatprep.subr.mxu0 0.0
    %2747 = vmatpush1.msra.mxu0 %v2209
    %2748 = vmatprep.subr.mxu0 0.0
    %2749 = vmatpush2.msra.mxu0 0.0
    %2750 = vmatprep.subr.mxu0 0.0
    %2751 = vmatpush2.msra.mxu0 0.0
    %2752 = vmatprep.subr.mxu0 0.0
    %2753 = vmatpush2.msra.mxu0 0.0
    %2754 = vmatprep.subr.mxu0 0.0
    %2755 = vmatpush2.msra.mxu0 0.0
    %2756 = vmatprep.subr.mxu0 0.0
    %2757 = vmatpush2.msra.mxu0 0.0
    %2758 = vmatprep.subr.mxu0 0.0
    %2759 = vmatpush2.msra.mxu0 0.0
    %2760 = vmatprep.subr.mxu0 0.0
    %2761 = vmatpush2.msra.mxu0 0.0
    %2762 = vmatprep.subr.mxu0 0.0
    %2763 = vmatpush2.msra.mxu0 0.0
    %2764 = vmatprep.subr.mxu0 0.0
    %2765 = vmatpush2.msra.mxu0 0.0
    %2766 = vmatprep.subr.mxu0 0.0
    %2767 = vmatpush2.msra.mxu0 0.0
    %2768 = vmatprep.subr.mxu0 0.0
    %2769 = vmatpush2.msra.mxu0 0.0
    %2770 = vmatprep.subr.mxu0 0.0
    %2771 = vmatpush2.msra.mxu0 0.0
    %2772 = vmatprep.subr.mxu0 0.0
    %2773 = vmatpush2.msra.mxu0 0.0
    %2774 = vmatprep.subr.mxu0 0.0
    %2775 = vmatpush2.msra.mxu0 0.0
    %2776 = vmatprep.subr.mxu0 0.0
    %2777 = vmatpush2.msra.mxu0 0.0
    %2778 = vmatprep.subr.mxu0 0.0
    %2779 = vmatpush2.msra.mxu0 0.0
    %2780 = vmatprep.mubr.f32.mxu0 0.0
    %2781 = vmatmul.mubr.f32.gmra.mxu0 %v2047
    %v2782 = vpop.f32.mrf.mxu0
    %v2783 = vadd.f32 %v2713, %v2782
    %v2784 = vpop.f32.mrf.mxu0
    %2785 = vdwg.mxu0
    %s2786 = scalar_lea.vmem %s6, 8
    %2787 = vst [vmem:[%s2786] sm:$0xff] %v2783
    %2788 = vmatprep.subr.mxu0 0.0
    %2789 = vmatpush1.msra.mxu0 %v2128
    %2790 = vmatprep.subr.mxu0 0.0
    %2791 = vmatpush1.msra.mxu0 %v2127
    %2792 = vmatprep.subr.mxu0 0.0
    %2793 = vmatpush1.msra.mxu0 %v2126
    %2794 = vmatprep.subr.mxu0 0.0
    %2795 = vmatpush1.msra.mxu0 %v2125
    %2796 = vmatprep.subr.mxu0 0.0
    %2797 = vmatpush1.msra.mxu0 %v2124
    %2798 = vmatprep.subr.mxu0 0.0
    %2799 = vmatpush1.msra.mxu0 %v2123
    %2800 = vmatprep.subr.mxu0 0.0
    %2801 = vmatpush1.msra.mxu0 %v2122
    %2802 = vmatprep.subr.mxu0 0.0
    %2803 = vmatpush1.msra.mxu0 %v2121
    %2804 = vmatprep.subr.mxu0 0.0
    %2805 = vmatpush1.msra.mxu0 %v2120
    %2806 = vmatprep.subr.mxu0 0.0
    %2807 = vmatpush1.msra.mxu0 %v2119
    %2808 = vmatprep.subr.mxu0 0.0
    %2809 = vmatpush1.msra.mxu0 %v2118
    %2810 = vmatprep.subr.mxu0 0.0
    %2811 = vmatpush1.msra.mxu0 %v2117
    %2812 = vmatprep.subr.mxu0 0.0
    %2813 = vmatpush1.msra.mxu0 %v2116
    %2814 = vmatprep.subr.mxu0 0.0
    %2815 = vmatpush1.msra.mxu0 %v2115
    %2816 = vmatprep.subr.mxu0 0.0
    %2817 = vmatpush1.msra.mxu0 %v2114
    %2818 = vmatprep.subr.mxu0 0.0
    %2819 = vmatpush1.msra.mxu0 %v2113
    %2820 = vmatprep.subr.mxu0 0.0
    %2821 = vmatpush2.msra.mxu0 %v2144
    %2822 = vmatprep.subr.mxu0 0.0
    %2823 = vmatpush2.msra.mxu0 %v2143
    %2824 = vmatprep.subr.mxu0 0.0
    %2825 = vmatpush2.msra.mxu0 %v2142
    %2826 = vmatprep.subr.mxu0 0.0
    %2827 = vmatpush2.msra.mxu0 %v2141
    %2828 = vmatprep.subr.mxu0 0.0
    %2829 = vmatpush2.msra.mxu0 %v2140
    %2830 = vmatprep.subr.mxu0 0.0
    %2831 = vmatpush2.msra.mxu0 %v2139
    %2832 = vmatprep.subr.mxu0 0.0
    %2833 = vmatpush2.msra.mxu0 %v2138
    %2834 = vmatprep.subr.mxu0 0.0
    %2835 = vmatpush2.msra.mxu0 %v2137
    %2836 = vmatprep.subr.mxu0 0.0
    %2837 = vmatpush2.msra.mxu0 %v2136
    %2838 = vmatprep.subr.mxu0 0.0
    %2839 = vmatpush2.msra.mxu0 %v2135
    %2840 = vmatprep.subr.mxu0 0.0
    %2841 = vmatpush2.msra.mxu0 %v2134
    %2842 = vmatprep.subr.mxu0 0.0
    %2843 = vmatpush2.msra.mxu0 %v2133
    %2844 = vmatprep.subr.mxu0 0.0
    %2845 = vmatpush2.msra.mxu0 %v2132
    %2846 = vmatprep.subr.mxu0 0.0
    %2847 = vmatpush2.msra.mxu0 %v2131
    %2848 = vmatprep.subr.mxu0 0.0
    %2849 = vmatpush2.msra.mxu0 %v2130
    %2850 = vmatprep.subr.mxu0 0.0
    %2851 = vmatpush2.msra.mxu0 %v2129
    %2852 = vmatprep.mubr.f32.mxu0 %v2084
    %2853 = vmatmul.mubr.f32.gmra.mxu0 %v2083
    %v2854 = vpop.f32.mrf.mxu0
    %v2855 = vadd.f32 0.0, %v2854
    %v2856 = vpop.f32.mrf.mxu0
    %2857 = vdwg.mxu0
    %2858 = vmatprep.subr.mxu0 0.0
    %2859 = vmatpush1.msra.mxu0 %v2160
    %2860 = vmatprep.subr.mxu0 0.0
    %2861 = vmatpush1.msra.mxu0 %v2159
    %2862 = vmatprep.subr.mxu0 0.0
    %2863 = vmatpush1.msra.mxu0 %v2158
    %2864 = vmatprep.subr.mxu0 0.0
    %2865 = vmatpush1.msra.mxu0 %v2157
    %2866 = vmatprep.subr.mxu0 0.0
    %2867 = vmatpush1.msra.mxu0 %v2156
    %2868 = vmatprep.subr.mxu0 0.0
    %2869 = vmatpush1.msra.mxu0 %v2155
    %2870 = vmatprep.subr.mxu0 0.0
    %2871 = vmatpush1.msra.mxu0 %v2154
    %2872 = vmatprep.subr.mxu0 0.0
    %2873 = vmatpush1.msra.mxu0 %v2153
    %2874 = vmatprep.subr.mxu0 0.0
    %2875 = vmatpush1.msra.mxu0 %v2152
    %2876 = vmatprep.subr.mxu0 0.0
    %2877 = vmatpush1.msra.mxu0 %v2151
    %2878 = vmatprep.subr.mxu0 0.0
    %2879 = vmatpush1.msra.mxu0 %v2150
    %2880 = vmatprep.subr.mxu0 0.0
    %2881 = vmatpush1.msra.mxu0 %v2149
    %2882 = vmatprep.subr.mxu0 0.0
    %2883 = vmatpush1.msra.mxu0 %v2148
    %2884 = vmatprep.subr.mxu0 0.0
    %2885 = vmatpush1.msra.mxu0 %v2147
    %2886 = vmatprep.subr.mxu0 0.0
    %2887 = vmatpush1.msra.mxu0 %v2146
    %2888 = vmatprep.subr.mxu0 0.0
    %2889 = vmatpush1.msra.mxu0 %v2145
    %2890 = vmatprep.subr.mxu0 0.0
    %2891 = vmatpush2.msra.mxu0 %v2176
    %2892 = vmatprep.subr.mxu0 0.0
    %2893 = vmatpush2.msra.mxu0 %v2175
    %2894 = vmatprep.subr.mxu0 0.0
    %2895 = vmatpush2.msra.mxu0 %v2174
    %2896 = vmatprep.subr.mxu0 0.0
    %2897 = vmatpush2.msra.mxu0 %v2173
    %2898 = vmatprep.subr.mxu0 0.0
    %2899 = vmatpush2.msra.mxu0 %v2172
    %2900 = vmatprep.subr.mxu0 0.0
    %2901 = vmatpush2.msra.mxu0 %v2171
    %2902 = vmatprep.subr.mxu0 0.0
    %2903 = vmatpush2.msra.mxu0 %v2170
    %2904 = vmatprep.subr.mxu0 0.0
    %2905 = vmatpush2.msra.mxu0 %v2169
    %2906 = vmatprep.subr.mxu0 0.0
    %2907 = vmatpush2.msra.mxu0 %v2168
    %2908 = vmatprep.subr.mxu0 0.0
    %2909 = vmatpush2.msra.mxu0 %v2167
    %2910 = vmatprep.subr.mxu0 0.0
    %2911 = vmatpush2.msra.mxu0 %v2166
    %2912 = vmatprep.subr.mxu0 0.0
    %2913 = vmatpush2.msra.mxu0 %v2165
    %2914 = vmatprep.subr.mxu0 0.0
    %2915 = vmatpush2.msra.mxu0 %v2164
    %2916 = vmatprep.subr.mxu0 0.0
    %2917 = vmatpush2.msra.mxu0 %v2163
    %2918 = vmatprep.subr.mxu0 0.0
    %2919 = vmatpush2.msra.mxu0 %v2162
    %2920 = vmatprep.subr.mxu0 0.0
    %2921 = vmatpush2.msra.mxu0 %v2161
    %2922 = vmatprep.mubr.f32.mxu0 %v2086
    %2923 = vmatmul.mubr.f32.gmra.mxu0 %v2085
    %v2924 = vpop.f32.mrf.mxu0
    %v2925 = vadd.f32 %v2855, %v2924
    %v2926 = vpop.f32.mrf.mxu0
    %2927 = vdwg.mxu0
    %2928 = vmatprep.subr.mxu0 0.0
    %2929 = vmatpush1.msra.mxu0 %v2192
    %2930 = vmatprep.subr.mxu0 0.0
    %2931 = vmatpush1.msra.mxu0 %v2191
    %2932 = vmatprep.subr.mxu0 0.0
    %2933 = vmatpush1.msra.mxu0 %v2190
    %2934 = vmatprep.subr.mxu0 0.0
    %2935 = vmatpush1.msra.mxu0 %v2189
    %2936 = vmatprep.subr.mxu0 0.0
    %2937 = vmatpush1.msra.mxu0 %v2188
    %2938 = vmatprep.subr.mxu0 0.0
    %2939 = vmatpush1.msra.mxu0 %v2187
    %2940 = vmatprep.subr.mxu0 0.0
    %2941 = vmatpush1.msra.mxu0 %v2186
    %2942 = vmatprep.subr.mxu0 0.0
    %2943 = vmatpush1.msra.mxu0 %v2185
    %2944 = vmatprep.subr.mxu0 0.0
    %2945 = vmatpush1.msra.mxu0 %v2184
    %2946 = vmatprep.subr.mxu0 0.0
    %2947 = vmatpush1.msra.mxu0 %v2183
    %2948 = vmatprep.subr.mxu0 0.0
    %2949 = vmatpush1.msra.mxu0 %v2182
    %2950 = vmatprep.subr.mxu0 0.0
    %2951 = vmatpush1.msra.mxu0 %v2181
    %2952 = vmatprep.subr.mxu0 0.0
    %2953 = vmatpush1.msra.mxu0 %v2180
    %2954 = vmatprep.subr.mxu0 0.0
    %2955 = vmatpush1.msra.mxu0 %v2179
    %2956 = vmatprep.subr.mxu0 0.0
    %2957 = vmatpush1.msra.mxu0 %v2178
    %2958 = vmatprep.subr.mxu0 0.0
    %2959 = vmatpush1.msra.mxu0 %v2177
    %2960 = vmatprep.subr.mxu0 0.0
    %2961 = vmatpush2.msra.mxu0 %v2208
    %2962 = vmatprep.subr.mxu0 0.0
    %2963 = vmatpush2.msra.mxu0 %v2207
    %2964 = vmatprep.subr.mxu0 0.0
    %2965 = vmatpush2.msra.mxu0 %v2206
    %2966 = vmatprep.subr.mxu0 0.0
    %2967 = vmatpush2.msra.mxu0 %v2205
    %2968 = vmatprep.subr.mxu0 0.0
    %2969 = vmatpush2.msra.mxu0 %v2204
    %2970 = vmatprep.subr.mxu0 0.0
    %2971 = vmatpush2.msra.mxu0 %v2203
    %2972 = vmatprep.subr.mxu0 0.0
    %2973 = vmatpush2.msra.mxu0 %v2202
    %2974 = vmatprep.subr.mxu0 0.0
    %2975 = vmatpush2.msra.mxu0 %v2201
    %2976 = vmatprep.subr.mxu0 0.0
    %2977 = vmatpush2.msra.mxu0 %v2200
    %2978 = vmatprep.subr.mxu0 0.0
    %2979 = vmatpush2.msra.mxu0 %v2199
    %2980 = vmatprep.subr.mxu0 0.0
    %2981 = vmatpush2.msra.mxu0 %v2198
    %2982 = vmatprep.subr.mxu0 0.0
    %2983 = vmatpush2.msra.mxu0 %v2197
    %2984 = vmatprep.subr.mxu0 0.0
    %2985 = vmatpush2.msra.mxu0 %v2196
    %2986 = vmatprep.subr.mxu0 0.0
    %2987 = vmatpush2.msra.mxu0 %v2195
    %2988 = vmatprep.subr.mxu0 0.0
    %2989 = vmatpush2.msra.mxu0 %v2194
    %2990 = vmatprep.subr.mxu0 0.0
    %2991 = vmatpush2.msra.mxu0 %v2193
    %2992 = vmatprep.mubr.f32.mxu0 %v2088
    %2993 = vmatmul.mubr.f32.gmra.mxu0 %v2087
    %v2994 = vpop.f32.mrf.mxu0
    %v2995 = vadd.f32 %v2925, %v2994
    %v2996 = vpop.f32.mrf.mxu0
    %2997 = vdwg.mxu0
    %2998 = vmatprep.subr.mxu0 0.0
    %2999 = vmatpush1.msra.mxu0 %v2224
    %3000 = vmatprep.subr.mxu0 0.0
    %3001 = vmatpush1.msra.mxu0 %v2223
    %3002 = vmatprep.subr.mxu0 0.0
    %3003 = vmatpush1.msra.mxu0 %v2222
    %3004 = vmatprep.subr.mxu0 0.0
    %3005 = vmatpush1.msra.mxu0 %v2221
    %3006 = vmatprep.subr.mxu0 0.0
    %3007 = vmatpush1.msra.mxu0 %v2220
    %3008 = vmatprep.subr.mxu0 0.0
    %3009 = vmatpush1.msra.mxu0 %v2219
    %3010 = vmatprep.subr.mxu0 0.0
    %3011 = vmatpush1.msra.mxu0 %v2218
    %3012 = vmatprep.subr.mxu0 0.0
    %3013 = vmatpush1.msra.mxu0 %v2217
    %3014 = vmatprep.subr.mxu0 0.0
    %3015 = vmatpush1.msra.mxu0 %v2216
    %3016 = vmatprep.subr.mxu0 0.0
    %3017 = vmatpush1.msra.mxu0 %v2215
    %3018 = vmatprep.subr.mxu0 0.0
    %3019 = vmatpush1.msra.mxu0 %v2214
    %3020 = vmatprep.subr.mxu0 0.0
    %3021 = vmatpush1.msra.mxu0 %v2213
    %3022 = vmatprep.subr.mxu0 0.0
    %3023 = vmatpush1.msra.mxu0 %v2212
    %3024 = vmatprep.subr.mxu0 0.0
    %3025 = vmatpush1.msra.mxu0 %v2211
    %3026 = vmatprep.subr.mxu0 0.0
    %3027 = vmatpush1.msra.mxu0 %v2210
    %3028 = vmatprep.subr.mxu0 0.0
    %3029 = vmatpush1.msra.mxu0 %v2209
    %3030 = vmatprep.subr.mxu0 0.0
    %3031 = vmatpush2.msra.mxu0 0.0
    %3032 = vmatprep.subr.mxu0 0.0
    %3033 = vmatpush2.msra.mxu0 0.0
    %3034 = vmatprep.subr.mxu0 0.0
    %3035 = vmatpush2.msra.mxu0 0.0
    %3036 = vmatprep.subr.mxu0 0.0
    %3037 = vmatpush2.msra.mxu0 0.0
    %3038 = vmatprep.subr.mxu0 0.0
    %3039 = vmatpush2.msra.mxu0 0.0
    %3040 = vmatprep.subr.mxu0 0.0
    %3041 = vmatpush2.msra.mxu0 0.0
    %3042 = vmatprep.subr.mxu0 0.0
    %3043 = vmatpush2.msra.mxu0 0.0
    %3044 = vmatprep.subr.mxu0 0.0
    %3045 = vmatpush2.msra.mxu0 0.0
    %3046 = vmatprep.subr.mxu0 0.0
    %3047 = vmatpush2.msra.mxu0 0.0
    %3048 = vmatprep.subr.mxu0 0.0
    %3049 = vmatpush2.msra.mxu0 0.0
    %3050 = vmatprep.subr.mxu0 0.0
    %3051 = vmatpush2.msra.mxu0 0.0
    %3052 = vmatprep.subr.mxu0 0.0
    %3053 = vmatpush2.msra.mxu0 0.0
    %3054 = vmatprep.subr.mxu0 0.0
    %3055 = vmatpush2.msra.mxu0 0.0
    %3056 = vmatprep.subr.mxu0 0.0
    %3057 = vmatpush2.msra.mxu0 0.0
    %3058 = vmatprep.subr.mxu0 0.0
    %3059 = vmatpush2.msra.mxu0 0.0
    %3060 = vmatprep.subr.mxu0 0.0
    %3061 = vmatpush2.msra.mxu0 0.0
    %3062 = vmatprep.mubr.f32.mxu0 0.0
    %3063 = vmatmul.mubr.f32.gmra.mxu0 %v2089
    %v3064 = vpop.f32.mrf.mxu0
    %v3065 = vadd.f32 %v2995, %v3064
    %v3066 = vpop.f32.mrf.mxu0
    %3067 = vdwg.mxu0
    %s3068 = scalar_lea.vmem %s6, 16
    %3069 = vst [vmem:[%s3068] sm:$0xff] %v3065
    // Predicated region
    $region26: #{mano_forward.1} parent=1 // pred_check
      _
    $region27: #{mano_forward.1} parent=1 // pred_check_branch
      %3071 = sbr.rel (0) target = $region29
    $region28: #{mano_forward.1} parent=1 // pred_region
      _
    $region29: #{mano_forward.1} parent=1 // pred_fallthru
      _
    // Predicated region
    $region30: #{mano_forward.1} parent=1 // pred_check
      _
    $region31: #{mano_forward.1} parent=1 // pred_check_branch
      %3073 = sbr.rel (0) target = $region33
    $region32: #{mano_forward.1} parent=1 // pred_region
      _
    $region33: #{mano_forward.1} parent=1 // pred_fallthru
      _
    // Predicated region
    $region34: #{mano_forward.1} parent=1 // pred_check
      _
    $region35: #{mano_forward.1} parent=1 // pred_check_branch
      %3075 = sbr.rel (0) target = $region37
    $region36: #{mano_forward.1} parent=1 // pred_region
      _
    $region37: #{mano_forward.1} parent=1 // pred_fallthru
      _
    // Predicated region
    $region38: #{mano_forward.1} parent=1 // pred_check
      _
    $region39: #{mano_forward.1} parent=1 // pred_check_branch
      %3077 = sbr.rel (0) target = $region41
    $region40: #{mano_forward.1} parent=1 // pred_region
      _
    $region41: #{mano_forward.1} parent=1 // pred_fallthru
      _
    %3078 = vsyncpa [#allocation3], 1

</llo_original>
